<compile_context>
chip_gen: v7x
topology: tpu7x:2x2x1
jax: 0.10.0
libtpu: 0.0.40
codegen_flags: <defaults>
</compile_context>

<pallas_src>
import functools
import math

import jax
import jax.numpy as jnp
from jax import lax
from jax.experimental import pallas as pl
from jax.experimental.pallas import tpu as pltpu


def _hardswish(x):
    # PyTorch nn.Hardswish: x * relu6(x + 3) / 6
    return x * jnp.clip(x + 3.0, 0.0, 6.0) * (1.0 / 6.0)


def _row_chunk(rows, cols, chans, budget_vregs=16, cap=16):
    """Rows per inner-loop step so the f32 working set stays ~budget_vregs vregs."""
    per_row = max(1, math.ceil(cols / 8) * math.ceil(chans / 128))
    return max(1, min(budget_vregs // per_row if budget_vregs // per_row else 1,
                      rows, cap))


# --------------------------- fused MBConv kernel ------------------------------
def _mbconv_kernel(*refs, K, stride, padding, expand, has_residual,
                   exp_chunk, dw_chunk):
    it = iter(refs)
    x_ref = next(it)                                   # (H, W, Cin)
    if expand:
        wexp_ref, b1_ref = next(it), next(it)          # (Cin, C), (1, C)
    wdw_ref, b2_ref = next(it), next(it)               # (K, K, C), (1, C)
    sew1_ref, seb1_ref = next(it), next(it)            # (C, Cr), (1, Cr)
    sew2_ref, seb2_ref = next(it), next(it)            # (Cr, C), (1, C)
    wpt_ref, b3_ref = next(it), next(it)               # (Cout, C), (1, Cout)
    res_ref = next(it) if has_residual else None       # (Ho, Wo, Cout)
    o_ref = next(it)                                   # (Ho, Wo, Cout)
    pad_ref = next(it)                                 # (Hp, Wp, C) VMEM scratch
    dw_ref = next(it)                                  # (Ho, Wo, C) VMEM scratch

    H, W, Cin = x_ref.shape
    Hp, Wp, C = pad_ref.shape
    Ho, Wo, Cout = o_ref.shape

    # ---- zero only the halo of the padded hidden buffer (no full pad copy) ----
    if padding > 0:
        pad_ref[pl.ds(0, padding), :, :] = jnp.zeros((padding, Wp, C), jnp.float32)
        pad_ref[pl.ds(padding + H, padding), :, :] = jnp.zeros((padding, Wp, C), jnp.float32)
        pad_ref[pl.ds(padding, H), pl.ds(0, padding), :] = jnp.zeros((H, padding, C), jnp.float32)
        pad_ref[pl.ds(padding, H), pl.ds(padding + W, padding), :] = jnp.zeros((H, padding, C), jnp.float32)

    # ---- 1x1 expand + BN + Hardswish, written straight into the interior ------
    # (BN1 scale is pre-folded into wexp; only the shift is added here.)
    def expand_rows(r0, rc):
        xr = x_ref[pl.ds(r0, rc), :, :].reshape(rc * W, Cin)
        if expand:
            h2 = jnp.dot(xr, wexp_ref[...], preferred_element_type=jnp.float32)
            h2 = _hardswish(h2 + b1_ref[...])
        else:
            h2 = xr  # no expansion layer when hidden == in_channels
        pad_ref[pl.ds(padding + r0, rc), pl.ds(padding, W), :] = h2.reshape(rc, W, C)

    ne_full, ne_rem = H // exp_chunk, H % exp_chunk

    def _exp_body(i, carry):
        expand_rows(pl.multiple_of(i * exp_chunk, exp_chunk), exp_chunk)
        return carry

    lax.fori_loop(0, ne_full, _exp_body, 0, unroll=ne_full <= 4)
    if ne_rem:
        expand_rows(ne_full * exp_chunk, ne_rem)

    # ---- depthwise conv + BN + Hardswish, SE pool accumulated on the fly ------
    # (BN2 scale pre-folded into the depthwise taps.)
    def dw_rows(r0, rc, pooled):
        acc = jnp.zeros((rc, Wo, C), jnp.float32)
        for kh in range(K):
            for kw in range(K):
                if stride == 1:
                    patch = pad_ref[pl.ds(r0 + kh, rc), pl.ds(kw, Wo), :]
                else:
                    patch = pad_ref[pl.ds(r0 * stride + kh, rc, stride),
                                    pl.ds(kw, Wo, stride), :]
                acc = acc + patch * wdw_ref[kh, kw, :]
        y = _hardswish(acc + b2_ref[0])
        dw_ref[pl.ds(r0, rc), :, :] = y
        return pooled + jnp.sum(y.reshape(rc * Wo, C), axis=0, keepdims=True)

    nd_full, nd_rem = Ho // dw_chunk, Ho % dw_chunk
    pooled = jnp.zeros((1, C), jnp.float32)

    def _dw_body(i, p):
        return dw_rows(pl.multiple_of(i * dw_chunk, dw_chunk), dw_chunk, p)

    pooled = lax.fori_loop(0, nd_full, _dw_body, pooled, unroll=nd_full <= 4)
    if nd_rem:
        pooled = dw_rows(nd_full * dw_chunk, nd_rem, pooled)

    # ---- Squeeze-Excitation: GAP -> 1x1 + Hardswish -> 1x1 -> sigmoid ---------
    pooled = pooled * (1.0 / float(Ho * Wo))
    p8 = jnp.broadcast_to(pooled, (8, C))              # full sublane tile for MXU
    se_h = _hardswish(
        jnp.dot(p8, sew1_ref[...], preferred_element_type=jnp.float32) + seb1_ref[...])
    se_g = jax.nn.sigmoid(
        jnp.dot(se_h, sew2_ref[...], preferred_element_type=jnp.float32) + seb2_ref[...])
    gate = se_g[0:1, :]                                # (1, C)

    # SE gate folded into the (already BN3-scaled, transposed) projection weight:
    # y = dw @ (diag(gate) . Wproj) computed as a B-transposed matmul.
    w_eff_t = wpt_ref[...] * gate                      # (Cout, C)

    # ---- 1x1 projection + BN shift (+ residual), chunked over output rows -----
    def proj_rows(r0, rc):
        d2 = dw_ref[pl.ds(r0, rc), :, :].reshape(rc * Wo, C)
        y2 = lax.dot_general(d2, w_eff_t, (((1,), (1,)), ((), ())),
                             preferred_element_type=jnp.float32) + b3_ref[...]
        y3 = y2.reshape(rc, Wo, Cout)
        if has_residual:
            y3 = y3 + res_ref[pl.ds(r0, rc), :, :]
        o_ref[pl.ds(r0, rc), :, :] = y3.astype(o_ref.dtype)

    def _proj_body(i, carry):
        proj_rows(pl.multiple_of(i * dw_chunk, dw_chunk), dw_chunk)
        return carry

    lax.fori_loop(0, nd_full, _proj_body, 0, unroll=nd_full <= 4)
    if nd_rem:
        proj_rows(nd_full * dw_chunk, nd_rem)
    # TODO(synk): nn.Dropout is training-only (self.training); eval path is identity.
    # TODO(synk): lane-dense (N, Ho, Wo*Cout) output layout skipped to avoid an
    # in-kernel cross-lane relayout when Cout < 128; revisit for large stages.


# -------------------- glue: BN folding, wrapper, full forward -----------------
def fold_bn(gamma, beta, mean, var, eps=1e-5):
    scale = gamma / jnp.sqrt(var + eps)
    shift = beta - mean * scale
    return scale, shift


def inverted_residual_block(x_nchw, params, *, kernel_size, stride, padding, expand_ratio):
    N, Cin, H, W = x_nchw.shape
    hidden = Cin * expand_ratio
    expand = Cin != hidden
    C = hidden
    Cout = params["w_proj"].shape[1]
    Cr = params["se_w1"].shape[1]
    use_residual = (Cin == Cout) and (stride == 1)
    K = kernel_size
    Hp, Wp = H + 2 * padding, W + 2 * padding
    Ho = (Hp - K) // stride + 1
    Wo = (Wp - K) // stride + 1

    # NCHW -> NHWC at the module boundary.
    # TODO(synk): in a chain of MBConv blocks, carry NHWC end-to-end to drop these relayouts.
    x = jnp.transpose(x_nchw, (0, 2, 3, 1)).astype(jnp.float32)

    # Fold BN scales into the conv weights host-side (O(C*Cout) work); only the
    # additive shifts are applied in-kernel. The projection weight is passed
    # pre-transposed (Cout, C) so the SE gate folds in with a (1, C) broadcast.
    s1, b1 = fold_bn(*params["bn1"])
    s2, b2 = fold_bn(*params["bn2"])
    s3, b3 = fold_bn(*params["bn3"])
    w_exp_s = params["w_exp"] * s1[None, :]                       # (Cin, C)
    w_dw_s = params["w_dw"] * s2[None, None, :]                   # (K, K, C)
    w_proj_t = jnp.transpose(params["w_proj"] * s3[None, :])      # (Cout, C)

    exp_chunk = _row_chunk(H, W, max(C, Cin))
    dw_chunk = _row_chunk(Ho, Wo, max(C, Cout))

    kernel = functools.partial(
        _mbconv_kernel, K=K, stride=stride, padding=padding, expand=expand,
        has_residual=use_residual, exp_chunk=exp_chunk, dw_chunk=dw_chunk)

    const2 = lambda n: (0, 0)
    const3 = lambda n: (0, 0, 0)
    per_img = lambda n: (n, 0, 0, 0)

    in_specs = [pl.BlockSpec((None, H, W, Cin), per_img)]
    args = [x]
    if expand:
        in_specs += [pl.BlockSpec((Cin, C), const2), pl.BlockSpec((1, C), const2)]
        args += [w_exp_s, b1.reshape(1, C)]
    in_specs += [
        pl.BlockSpec((K, K, C), const3), pl.BlockSpec((1, C), const2),
        pl.BlockSpec((C, Cr), const2), pl.BlockSpec((1, Cr), const2),
        pl.BlockSpec((Cr, C), const2), pl.BlockSpec((1, C), const2),
        pl.BlockSpec((Cout, C), const2), pl.BlockSpec((1, Cout), const2),
    ]
    args += [
        w_dw_s, b2.reshape(1, C),
        params["se_w1"], params["se_b1"].reshape(1, Cr),
        params["se_w2"], params["se_b2"].reshape(1, C),
        w_proj_t, b3.reshape(1, Cout),
    ]
    if use_residual:
        in_specs.append(pl.BlockSpec((None, Ho, Wo, Cout), per_img))
        args.append(x)

    # VMEM budget (bytes): scratches + double-buffered input/output blocks + weights.
    # Only raise the scoped limit when actually needed (v5e default 16 MiB, v6e/v7x 32 MiB).
    weight_elems = (Cin * C + K * K * C + C * Cr + Cr * C + Cout * C
                    + 3 * C + Cr + Cout)
    vmem_need = 4 * (Hp * Wp * C + Ho * Wo * C
                     + 2 * (H * W * Cin + Ho * Wo * Cout
                            + (Ho * Wo * Cout if use_residual else 0))
                     + 2 * weight_elems)
    cp_kwargs = {"dimension_semantics": ("parallel",)}  # grid over images; N>=2 keeps both v7x cores busy
    if vmem_need > 24 * (1 << 20):
        cp_kwargs["vmem_limit_bytes"] = min(int(vmem_need * 1.25), 64 * (1 << 20))

    out = pl.pallas_call(
        kernel,
        out_shape=jax.ShapeDtypeStruct((N, Ho, Wo, Cout), jnp.float32),
        grid=(N,),
        in_specs=in_specs,
        out_specs=pl.BlockSpec((None, Ho, Wo, Cout), per_img),
        scratch_shapes=[
            pltpu.VMEM((Hp, Wp, C), jnp.float32),   # zero-haloed expanded image (VMEM only)
            pltpu.VMEM((Ho, Wo, C), jnp.float32),   # depthwise output (never hits HBM)
        ],
        compiler_params=pltpu.CompilerParams(**cp_kwargs),
    )(*args)

    return jnp.transpose(out, (0, 3, 1, 2))  # NHWC -> NCHW


# -------------------- pure-JAX reference (for correctness check) --------------
def _ref_block(x_nchw, params, *, kernel_size, stride, padding, expand_ratio):
    hi = jax.lax.Precision.HIGHEST
    N, Cin, H, W = x_nchw.shape
    hidden = Cin * expand_ratio
    Cout = params["w_proj"].shape[1]
    use_residual = (Cin == Cout) and (stride == 1)
    x = jnp.transpose(x_nchw, (0, 2, 3, 1)).astype(jnp.float32)

    if Cin != hidden:
        s1, b1 = fold_bn(*params["bn1"])
        h = _hardswish(jnp.einsum("nhwc,cd->nhwd", x, params["w_exp"], precision=hi) * s1 + b1)
    else:
        h = x

    s2, b2 = fold_bn(*params["bn2"])
    K = kernel_size
    hp = jnp.pad(h, ((0, 0), (padding, padding), (padding, padding), (0, 0)))
    Hp, Wp = H + 2 * padding, W + 2 * padding
    Ho = (Hp - K) // stride + 1
    Wo = (Wp - K) // stride + 1
    acc = jnp.zeros((N, Ho, Wo, hidden), jnp.float32)
    for kh in range(K):
        for kw in range(K):
            patch = hp[:, kh:kh + stride * (Ho - 1) + 1:stride,
                       kw:kw + stride * (Wo - 1) + 1:stride, :]
            acc = acc + patch * params["w_dw"][kh, kw, :]
    hdw = _hardswish(acc * s2 + b2)

    pooled = jnp.mean(hdw, axis=(1, 2))
    se = _hardswish(jnp.einsum("nc,cr->nr", pooled, params["se_w1"], precision=hi) + params["se_b1"])
    gate = jax.nn.sigmoid(jnp.einsum("nr,rc->nc", se, params["se_w2"], precision=hi) + params["se_b2"])

    s3, b3 = fold_bn(*params["bn3"])
    y = jnp.einsum("nhwc,cd->nhwd", hdw * gate[:, None, None, :], params["w_proj"], precision=hi)
    y = y * s3 + b3
    if use_residual:
        y = y + x
    return jnp.transpose(y, (0, 3, 1, 2))


# -------------------- params ---------------------------------------------------
def init_params(key, in_channels, out_channels, kernel_size, expand_ratio, reduction=4):
    hidden = in_channels * expand_ratio
    reduced = int(in_channels / reduction)
    keys = jax.random.split(key, 10)

    def bn_params(k, c):
        k1, k2, k3, k4 = jax.random.split(k, 4)
        gamma = 1.0 + 0.1 * jax.random.normal(k1, (c,), jnp.float32)
        beta = 0.1 * jax.random.normal(k2, (c,), jnp.float32)
        mean = 0.1 * jax.random.normal(k3, (c,), jnp.float32)
        var = 1.0 + 0.1 * jnp.abs(jax.random.normal(k4, (c,), jnp.float32))
        return (gamma, beta, mean, var)

    return {
        # Conv2d(in, hidden, 1) weight (hidden, in, 1, 1) stored as (in, hidden)
        "w_exp": 0.2 * jax.random.normal(keys[0], (in_channels, hidden), jnp.float32),
        "bn1": bn_params(keys[1], hidden),
        # depthwise Conv2d(hidden, hidden, K, groups=hidden) weight as (K, K, hidden)
        "w_dw": 0.2 * jax.random.normal(keys[2], (kernel_size, kernel_size, hidden), jnp.float32),
        "bn2": bn_params(keys[3], hidden),
        # SE 1x1 convs (with bias)
        "se_w1": 0.2 * jax.random.normal(keys[4], (hidden, reduced), jnp.float32),
        "se_b1": 0.1 * jax.random.normal(keys[5], (reduced,), jnp.float32),
        "se_w2": 0.2 * jax.random.normal(keys[6], (reduced, hidden), jnp.float32),
        "se_b2": 0.1 * jax.random.normal(keys[7], (hidden,), jnp.float32),
        # projection Conv2d(hidden, out, 1, bias=False) weight as (hidden, out)
        "w_proj": 0.2 * jax.random.normal(keys[8], (hidden, out_channels), jnp.float32),
        "bn3": bn_params(keys[9], out_channels),
    }


if __name__ == "__main__":
    key = jax.random.PRNGKey(0)
    kx, kp = jax.random.split(key)

    # Small MBConv config: in=out=8, k=3, stride=1, pad=1, expand_ratio=2 (hidden=16)
    in_c, out_c, ks, stride, padding, expand_ratio = 8, 8, 3, 1, 1, 2
    x = jax.random.normal(kx, (2, in_c, 16, 16), jnp.float32)  # NCHW like PyTorch
    params = init_params(kp, in_c, out_c, ks, expand_ratio)

    out = inverted_residual_block(
        x, params, kernel_size=ks, stride=stride, padding=padding, expand_ratio=expand_ratio
    )
    out = jax.block_until_ready(out)
    assert out.shape == (2, out_c, 16, 16)

    ref = jax.block_until_ready(
        _ref_block(x, params, kernel_size=ks, stride=stride, padding=padding,
                   expand_ratio=expand_ratio)
    )
    max_err = float(jnp.max(jnp.abs(out - ref)))
    assert max_err < 5e-3, f"mismatch vs reference: max abs err {max_err}"

    print("KERNEL_OK")
</pallas_src>

<mosaic_0001>
module attributes {stable_mosaic.version = 11 : i64} {
  func.func @_mbconv_kernel(%arg0: i32, %arg1: memref<1x16x16x8xf32, #tpu.memory_space<vmem>>, %arg2: memref<8x16xf32, #tpu.memory_space<vmem>>, %arg3: memref<1x16xf32, #tpu.memory_space<vmem>>, %arg4: memref<3x3x16xf32, #tpu.memory_space<vmem>>, %arg5: memref<1x16xf32, #tpu.memory_space<vmem>>, %arg6: memref<16x2xf32, #tpu.memory_space<vmem>>, %arg7: memref<1x2xf32, #tpu.memory_space<vmem>>, %arg8: memref<2x16xf32, #tpu.memory_space<vmem>>, %arg9: memref<1x16xf32, #tpu.memory_space<vmem>>, %arg10: memref<8x16xf32, #tpu.memory_space<vmem>>, %arg11: memref<1x8xf32, #tpu.memory_space<vmem>>, %arg12: memref<1x16x16x8xf32, #tpu.memory_space<vmem>>, %arg13: memref<1x16x16x8xf32, #tpu.memory_space<vmem>>, %arg14: memref<18x18x16xf32, #tpu.memory_space<vmem>>, %arg15: memref<16x16x16xf32, #tpu.memory_space<vmem>>) attributes {dimension_semantics = [#tpu.dimension_semantics<parallel>], iteration_bounds = array<i64: 2>, scalar_prefetch = 0 : i64, scratch_operands = 2 : i64, tpu.core_type = #tpu.core_type<tc>, window_params = [{transform_indices = @transform_0, window_bounds = array<i64: 1, 16, 16, 8>}, {pipeline_mode = #tpu.pipeline_mode<synchronous>, transform_indices = @transform_1, window_bounds = array<i64: 8, 16>}, {pipeline_mode = #tpu.pipeline_mode<synchronous>, transform_indices = @transform_2, window_bounds = array<i64: 1, 16>}, {pipeline_mode = #tpu.pipeline_mode<synchronous>, transform_indices = @transform_3, window_bounds = array<i64: 3, 3, 16>}, {pipeline_mode = #tpu.pipeline_mode<synchronous>, transform_indices = @transform_4, window_bounds = array<i64: 1, 16>}, {pipeline_mode = #tpu.pipeline_mode<synchronous>, transform_indices = @transform_5, window_bounds = array<i64: 16, 2>}, {pipeline_mode = #tpu.pipeline_mode<synchronous>, transform_indices = @transform_6, window_bounds = array<i64: 1, 2>}, {pipeline_mode = #tpu.pipeline_mode<synchronous>, transform_indices = @transform_7, window_bounds = array<i64: 2, 16>}, {pipeline_mode = #tpu.pipeline_mode<synchronous>, transform_indices = @transform_8, window_bounds = array<i64: 1, 16>}, {pipeline_mode = #tpu.pipeline_mode<synchronous>, transform_indices = @transform_9, window_bounds = array<i64: 8, 16>}, {pipeline_mode = #tpu.pipeline_mode<synchronous>, transform_indices = @transform_10, window_bounds = array<i64: 1, 8>}, {transform_indices = @transform_11, window_bounds = array<i64: 1, 16, 16, 8>}, {transform_indices = @transform_12, window_bounds = array<i64: 1, 16, 16, 8>}]} {
    %cst = arith.constant 0.000000e+00 : f32
    %0 = vector.broadcast %cst : f32 to vector<1x18x16xf32>
    %c0 = arith.constant 0 : index
    %c0_0 = arith.constant 0 : index
    %c0_1 = arith.constant 0 : index
    %1 = vector.load %arg14[%c0, %c0_0, %c0_1] : memref<18x18x16xf32, #tpu.memory_space<vmem>>, vector<1x18x16xf32>
    tpu.vector_store %arg14[%c0, %c0_0, %c0_1], %0 {strides = array<i32>} : memref<18x18x16xf32, #tpu.memory_space<vmem>>, vector<1x18x16xf32>,
    %cst_2 = arith.constant 0.000000e+00 : f32
    %2 = vector.broadcast %cst_2 : f32 to vector<1x18x16xf32>
    %c17 = arith.constant 17 : index
    %c0_3 = arith.constant 0 : index
    %c0_4 = arith.constant 0 : index
    %3 = vector.load %arg14[%c17, %c0_3, %c0_4] : memref<18x18x16xf32, #tpu.memory_space<vmem>>, vector<1x18x16xf32>
    tpu.vector_store %arg14[%c17, %c0_3, %c0_4], %2 {strides = array<i32>} : memref<18x18x16xf32, #tpu.memory_space<vmem>>, vector<1x18x16xf32>,
    %cst_5 = arith.constant 0.000000e+00 : f32
    %4 = vector.broadcast %cst_5 : f32 to vector<16x1x16xf32>
    %c1 = arith.constant 1 : index
    %c0_6 = arith.constant 0 : index
    %c0_7 = arith.constant 0 : index
    %5 = vector.load %arg14[%c1, %c0_6, %c0_7] : memref<18x18x16xf32, #tpu.memory_space<vmem>>, vector<16x1x16xf32>
    tpu.vector_store %arg14[%c1, %c0_6, %c0_7], %4 {strides = array<i32>} : memref<18x18x16xf32, #tpu.memory_space<vmem>>, vector<16x1x16xf32>,
    %cst_8 = arith.constant 0.000000e+00 : f32
    %6 = vector.broadcast %cst_8 : f32 to vector<16x1x16xf32>
    %c1_9 = arith.constant 1 : index
    %c17_10 = arith.constant 17 : index
    %c0_11 = arith.constant 0 : index
    %7 = vector.load %arg14[%c1_9, %c17_10, %c0_11] : memref<18x18x16xf32, #tpu.memory_space<vmem>>, vector<16x1x16xf32>
    tpu.vector_store %arg14[%c1_9, %c17_10, %c0_11], %6 {strides = array<i32>} : memref<18x18x16xf32, #tpu.memory_space<vmem>>, vector<16x1x16xf32>,
    %c0_i32 = arith.constant 0 : i32
    %c8_i32 = arith.constant 8 : i32
    %8 = arith.muli %c0_i32, %c8_i32 : i32
    %9 = tpu.assume_multiple %8, 8 : i32
    %c0_12 = arith.constant 0 : index
    %10 = arith.index_cast %9 : i32 to index
    %c0_13 = arith.constant 0 : index
    %c0_14 = arith.constant 0 : index
    %11 = vector.load %arg1[%c0_12, %10, %c0_13, %c0_14] : memref<1x16x16x8xf32, #tpu.memory_space<vmem>>, vector<1x8x16x8xf32>
    %12 = vector.shape_cast %11 : vector<1x8x16x8xf32> to vector<8x16x8xf32>
    %13 = vector.shape_cast %12 : vector<8x16x8xf32> to vector<128x8xf32>
    %c0_15 = arith.constant 0 : index
    %c0_16 = arith.constant 0 : index
    %14 = vector.load %arg2[%c0_15, %c0_16] : memref<8x16xf32, #tpu.memory_space<vmem>>, vector<8x16xf32>
    %cst_17 = arith.constant dense<0.000000e+00> : vector<128x16xf32>
    %15 = tpu.matmul %13, %14, %cst_17 {dimension_numbers = #tpu.dot_dimension_numbers<[1], [0], [0], [1], [0, 0, 1, 1], [], []>} : vector<128x8xf32>, vector<8x16xf32>, vector<128x16xf32> -> vector<128x16xf32>
    %c0_18 = arith.constant 0 : index
    %c0_19 = arith.constant 0 : index
    %16 = vector.load %arg3[%c0_18, %c0_19] : memref<1x16xf32, #tpu.memory_space<vmem>>, vector<1x16xf32>
    %17 = vector.broadcast %16 : vector<1x16xf32> to vector<128x16xf32>
    %18 = arith.addf %15, %17 : vector<128x16xf32>
    %cst_20 = arith.constant 3.000000e+00 : f32
    %19 = vector.broadcast %cst_20 : f32 to vector<128x16xf32>
    %20 = arith.addf %18, %19 : vector<128x16xf32>
    %cst_21 = arith.constant 0.000000e+00 : f32
    %cst_22 = arith.constant 6.000000e+00 : f32
    %21 = vector.broadcast %cst_21 : f32 to vector<128x16xf32>
    %22 = arith.maximumf %21, %20 : vector<128x16xf32>
    %23 = vector.broadcast %cst_22 : f32 to vector<128x16xf32>
    %24 = arith.minimumf %23, %22 : vector<128x16xf32>
    %25 = arith.mulf %18, %24 : vector<128x16xf32>
    %cst_23 = arith.constant 0.166666672 : f32
    %26 = vector.broadcast %cst_23 : f32 to vector<128x16xf32>
    %27 = arith.mulf %25, %26 : vector<128x16xf32>
    %28 = vector.shape_cast %27 : vector<128x16xf32> to vector<8x16x16xf32>
    %c1_i32 = arith.constant 1 : i32
    %29 = arith.addi %c1_i32, %9 : i32
    %30 = arith.index_cast %29 : i32 to index
    %c1_24 = arith.constant 1 : index
    %c0_25 = arith.constant 0 : index
    %31 = vector.load %arg14[%30, %c1_24, %c0_25] : memref<18x18x16xf32, #tpu.memory_space<vmem>>, vector<8x16x16xf32>
    tpu.vector_store %arg14[%30, %c1_24, %c0_25], %28 {strides = array<i32>} : memref<18x18x16xf32, #tpu.memory_space<vmem>>, vector<8x16x16xf32>,
    %c1_i32_26 = arith.constant 1 : i32
    %c8_i32_27 = arith.constant 8 : i32
    %32 = arith.muli %c1_i32_26, %c8_i32_27 : i32
    %33 = tpu.assume_multiple %32, 8 : i32
    %c0_28 = arith.constant 0 : index
    %34 = arith.index_cast %33 : i32 to index
    %c0_29 = arith.constant 0 : index
    %c0_30 = arith.constant 0 : index
    %35 = vector.load %arg1[%c0_28, %34, %c0_29, %c0_30] : memref<1x16x16x8xf32, #tpu.memory_space<vmem>>, vector<1x8x16x8xf32>
    %36 = vector.shape_cast %35 : vector<1x8x16x8xf32> to vector<8x16x8xf32>
    %37 = vector.shape_cast %36 : vector<8x16x8xf32> to vector<128x8xf32>
    %c0_31 = arith.constant 0 : index
    %c0_32 = arith.constant 0 : index
    %38 = vector.load %arg2[%c0_31, %c0_32] : memref<8x16xf32, #tpu.memory_space<vmem>>, vector<8x16xf32>
    %cst_33 = arith.constant dense<0.000000e+00> : vector<128x16xf32>
    %39 = tpu.matmul %37, %38, %cst_33 {dimension_numbers = #tpu.dot_dimension_numbers<[1], [0], [0], [1], [0, 0, 1, 1], [], []>} : vector<128x8xf32>, vector<8x16xf32>, vector<128x16xf32> -> vector<128x16xf32>
    %c0_34 = arith.constant 0 : index
    %c0_35 = arith.constant 0 : index
    %40 = vector.load %arg3[%c0_34, %c0_35] : memref<1x16xf32, #tpu.memory_space<vmem>>, vector<1x16xf32>
    %41 = vector.broadcast %40 : vector<1x16xf32> to vector<128x16xf32>
    %42 = arith.addf %39, %41 : vector<128x16xf32>
    %cst_36 = arith.constant 3.000000e+00 : f32
    %43 = vector.broadcast %cst_36 : f32 to vector<128x16xf32>
    %44 = arith.addf %42, %43 : vector<128x16xf32>
    %cst_37 = arith.constant 0.000000e+00 : f32
    %cst_38 = arith.constant 6.000000e+00 : f32
    %45 = vector.broadcast %cst_37 : f32 to vector<128x16xf32>
    %46 = arith.maximumf %45, %44 : vector<128x16xf32>
    %47 = vector.broadcast %cst_38 : f32 to vector<128x16xf32>
    %48 = arith.minimumf %47, %46 : vector<128x16xf32>
    %49 = arith.mulf %42, %48 : vector<128x16xf32>
    %cst_39 = arith.constant 0.166666672 : f32
    %50 = vector.broadcast %cst_39 : f32 to vector<128x16xf32>
    %51 = arith.mulf %49, %50 : vector<128x16xf32>
    %52 = vector.shape_cast %51 : vector<128x16xf32> to vector<8x16x16xf32>
    %c1_i32_40 = arith.constant 1 : i32
    %53 = arith.addi %c1_i32_40, %33 : i32
    %54 = arith.index_cast %53 : i32 to index
    %c1_41 = arith.constant 1 : index
    %c0_42 = arith.constant 0 : index
    %55 = vector.load %arg14[%54, %c1_41, %c0_42] : memref<18x18x16xf32, #tpu.memory_space<vmem>>, vector<8x16x16xf32>
    tpu.vector_store %arg14[%54, %c1_41, %c0_42], %52 {strides = array<i32>} : memref<18x18x16xf32, #tpu.memory_space<vmem>>, vector<8x16x16xf32>,
    %c2_i32 = arith.constant 2 : i32
    %cst_43 = arith.constant 0.000000e+00 : f32
    %56 = vector.broadcast %cst_43 : f32 to vector<1x16xf32>
    %c0_i32_44 = arith.constant 0 : i32
    %c8_i32_45 = arith.constant 8 : i32
    %57 = arith.muli %c0_i32_44, %c8_i32_45 : i32
    %58 = tpu.assume_multiple %57, 8 : i32
    %cst_46 = arith.constant 0.000000e+00 : f32
    %59 = vector.broadcast %cst_46 : f32 to vector<8x16x16xf32>
    %c0_i32_47 = arith.constant 0 : i32
    %60 = arith.addi %58, %c0_i32_47 : i32
    %61 = arith.index_cast %60 : i32 to index
    %c0_48 = arith.constant 0 : index
    %c0_49 = arith.constant 0 : index
    %62 = vector.load %arg14[%61, %c0_48, %c0_49] : memref<18x18x16xf32, #tpu.memory_space<vmem>>, vector<8x16x16xf32>
    %c0_50 = arith.constant 0 : index
    %c0_51 = arith.constant 0 : index
    %c0_52 = arith.constant 0 : index
    %63 = vector.load %arg4[%c0_50, %c0_51, %c0_52] : memref<3x3x16xf32, #tpu.memory_space<vmem>>, vector<1x1x16xf32>
    %64 = vector.shape_cast %63 : vector<1x1x16xf32> to vector<16xf32>
    %65 = vector.shape_cast %64 : vector<16xf32> to vector<1x1x16xf32>
    %66 = vector.broadcast %65 : vector<1x1x16xf32> to vector<8x16x16xf32>
    %67 = arith.mulf %62, %66 : vector<8x16x16xf32>
    %68 = arith.addf %59, %67 : vector<8x16x16xf32>
    %c0_i32_53 = arith.constant 0 : i32
    %69 = arith.addi %58, %c0_i32_53 : i32
    %70 = arith.index_cast %69 : i32 to index
    %c1_54 = arith.constant 1 : index
    %c0_55 = arith.constant 0 : index
    %71 = vector.load %arg14[%70, %c1_54, %c0_55] : memref<18x18x16xf32, #tpu.memory_space<vmem>>, vector<8x16x16xf32>
    %c0_56 = arith.constant 0 : index
    %c1_57 = arith.constant 1 : index
    %c0_58 = arith.constant 0 : index
    %72 = vector.load %arg4[%c0_56, %c1_57, %c0_58] : memref<3x3x16xf32, #tpu.memory_space<vmem>>, vector<1x1x16xf32>
    %73 = vector.shape_cast %72 : vector<1x1x16xf32> to vector<16xf32>
    %74 = vector.shape_cast %73 : vector<16xf32> to vector<1x1x16xf32>
    %75 = vector.broadcast %74 : vector<1x1x16xf32> to vector<8x16x16xf32>
    %76 = arith.mulf %71, %75 : vector<8x16x16xf32>
    %77 = arith.addf %68, %76 : vector<8x16x16xf32>
    %c0_i32_59 = arith.constant 0 : i32
    %78 = arith.addi %58, %c0_i32_59 : i32
    %79 = arith.index_cast %78 : i32 to index
    %c2 = arith.constant 2 : index
    %c0_60 = arith.constant 0 : index
    %80 = vector.load %arg14[%79, %c2, %c0_60] : memref<18x18x16xf32, #tpu.memory_space<vmem>>, vector<8x16x16xf32>
    %c0_61 = arith.constant 0 : index
    %c2_62 = arith.constant 2 : index
    %c0_63 = arith.constant 0 : index
    %81 = vector.load %arg4[%c0_61, %c2_62, %c0_63] : memref<3x3x16xf32, #tpu.memory_space<vmem>>, vector<1x1x16xf32>
    %82 = vector.shape_cast %81 : vector<1x1x16xf32> to vector<16xf32>
    %83 = vector.shape_cast %82 : vector<16xf32> to vector<1x1x16xf32>
    %84 = vector.broadcast %83 : vector<1x1x16xf32> to vector<8x16x16xf32>
    %85 = arith.mulf %80, %84 : vector<8x16x16xf32>
    %86 = arith.addf %77, %85 : vector<8x16x16xf32>
    %c1_i32_64 = arith.constant 1 : i32
    %87 = arith.addi %58, %c1_i32_64 : i32
    %88 = arith.index_cast %87 : i32 to index
    %c0_65 = arith.constant 0 : index
    %c0_66 = arith.constant 0 : index
    %89 = vector.load %arg14[%88, %c0_65, %c0_66] : memref<18x18x16xf32, #tpu.memory_space<vmem>>, vector<8x16x16xf32>
    %c1_67 = arith.constant 1 : index
    %c0_68 = arith.constant 0 : index
    %c0_69 = arith.constant 0 : index
    %90 = vector.load %arg4[%c1_67, %c0_68, %c0_69] : memref<3x3x16xf32, #tpu.memory_space<vmem>>, vector<1x1x16xf32>
    %91 = vector.shape_cast %90 : vector<1x1x16xf32> to vector<16xf32>
    %92 = vector.shape_cast %91 : vector<16xf32> to vector<1x1x16xf32>
    %93 = vector.broadcast %92 : vector<1x1x16xf32> to vector<8x16x16xf32>
    %94 = arith.mulf %89, %93 : vector<8x16x16xf32>
    %95 = arith.addf %86, %94 : vector<8x16x16xf32>
    %c1_i32_70 = arith.constant 1 : i32
    %96 = arith.addi %58, %c1_i32_70 : i32
    %97 = arith.index_cast %96 : i32 to index
    %c1_71 = arith.constant 1 : index
    %c0_72 = arith.constant 0 : index
    %98 = vector.load %arg14[%97, %c1_71, %c0_72] : memref<18x18x16xf32, #tpu.memory_space<vmem>>, vector<8x16x16xf32>
    %c1_73 = arith.constant 1 : index
    %c1_74 = arith.constant 1 : index
    %c0_75 = arith.constant 0 : index
    %99 = vector.load %arg4[%c1_73, %c1_74, %c0_75] : memref<3x3x16xf32, #tpu.memory_space<vmem>>, vector<1x1x16xf32>
    %100 = vector.shape_cast %99 : vector<1x1x16xf32> to vector<16xf32>
    %101 = vector.shape_cast %100 : vector<16xf32> to vector<1x1x16xf32>
    %102 = vector.broadcast %101 : vector<1x1x16xf32> to vector<8x16x16xf32>
    %103 = arith.mulf %98, %102 : vector<8x16x16xf32>
    %104 = arith.addf %95, %103 : vector<8x16x16xf32>
    %c1_i32_76 = arith.constant 1 : i32
    %105 = arith.addi %58, %c1_i32_76 : i32
    %106 = arith.index_cast %105 : i32 to index
    %c2_77 = arith.constant 2 : index
    %c0_78 = arith.constant 0 : index
    %107 = vector.load %arg14[%106, %c2_77, %c0_78] : memref<18x18x16xf32, #tpu.memory_space<vmem>>, vector<8x16x16xf32>
    %c1_79 = arith.constant 1 : index
    %c2_80 = arith.constant 2 : index
    %c0_81 = arith.constant 0 : index
    %108 = vector.load %arg4[%c1_79, %c2_80, %c0_81] : memref<3x3x16xf32, #tpu.memory_space<vmem>>, vector<1x1x16xf32>
    %109 = vector.shape_cast %108 : vector<1x1x16xf32> to vector<16xf32>
    %110 = vector.shape_cast %109 : vector<16xf32> to vector<1x1x16xf32>
    %111 = vector.broadcast %110 : vector<1x1x16xf32> to vector<8x16x16xf32>
    %112 = arith.mulf %107, %111 : vector<8x16x16xf32>
    %113 = arith.addf %104, %112 : vector<8x16x16xf32>
    %c2_i32_82 = arith.constant 2 : i32
    %114 = arith.addi %58, %c2_i32_82 : i32
    %115 = arith.index_cast %114 : i32 to index
    %c0_83 = arith.constant 0 : index
    %c0_84 = arith.constant 0 : index
    %116 = vector.load %arg14[%115, %c0_83, %c0_84] : memref<18x18x16xf32, #tpu.memory_space<vmem>>, vector<8x16x16xf32>
    %c2_85 = arith.constant 2 : index
    %c0_86 = arith.constant 0 : index
    %c0_87 = arith.constant 0 : index
    %117 = vector.load %arg4[%c2_85, %c0_86, %c0_87] : memref<3x3x16xf32, #tpu.memory_space<vmem>>, vector<1x1x16xf32>
    %118 = vector.shape_cast %117 : vector<1x1x16xf32> to vector<16xf32>
    %119 = vector.shape_cast %118 : vector<16xf32> to vector<1x1x16xf32>
    %120 = vector.broadcast %119 : vector<1x1x16xf32> to vector<8x16x16xf32>
    %121 = arith.mulf %116, %120 : vector<8x16x16xf32>
    %122 = arith.addf %113, %121 : vector<8x16x16xf32>
    %c2_i32_88 = arith.constant 2 : i32
    %123 = arith.addi %58, %c2_i32_88 : i32
    %124 = arith.index_cast %123 : i32 to index
    %c1_89 = arith.constant 1 : index
    %c0_90 = arith.constant 0 : index
    %125 = vector.load %arg14[%124, %c1_89, %c0_90] : memref<18x18x16xf32, #tpu.memory_space<vmem>>, vector<8x16x16xf32>
    %c2_91 = arith.constant 2 : index
    %c1_92 = arith.constant 1 : index
    %c0_93 = arith.constant 0 : index
    %126 = vector.load %arg4[%c2_91, %c1_92, %c0_93] : memref<3x3x16xf32, #tpu.memory_space<vmem>>, vector<1x1x16xf32>
    %127 = vector.shape_cast %126 : vector<1x1x16xf32> to vector<16xf32>
    %128 = vector.shape_cast %127 : vector<16xf32> to vector<1x1x16xf32>
    %129 = vector.broadcast %128 : vector<1x1x16xf32> to vector<8x16x16xf32>
    %130 = arith.mulf %125, %129 : vector<8x16x16xf32>
    %131 = arith.addf %122, %130 : vector<8x16x16xf32>
    %c2_i32_94 = arith.constant 2 : i32
    %132 = arith.addi %58, %c2_i32_94 : i32
    %133 = arith.index_cast %132 : i32 to index
    %c2_95 = arith.constant 2 : index
    %c0_96 = arith.constant 0 : index
    %134 = vector.load %arg14[%133, %c2_95, %c0_96] : memref<18x18x16xf32, #tpu.memory_space<vmem>>, vector<8x16x16xf32>
    %c2_97 = arith.constant 2 : index
    %c2_98 = arith.constant 2 : index
    %c0_99 = arith.constant 0 : index
    %135 = vector.load %arg4[%c2_97, %c2_98, %c0_99] : memref<3x3x16xf32, #tpu.memory_space<vmem>>, vector<1x1x16xf32>
    %136 = vector.shape_cast %135 : vector<1x1x16xf32> to vector<16xf32>
    %137 = vector.shape_cast %136 : vector<16xf32> to vector<1x1x16xf32>
    %138 = vector.broadcast %137 : vector<1x1x16xf32> to vector<8x16x16xf32>
    %139 = arith.mulf %134, %138 : vector<8x16x16xf32>
    %140 = arith.addf %131, %139 : vector<8x16x16xf32>
    %c0_100 = arith.constant 0 : index
    %c0_101 = arith.constant 0 : index
    %141 = vector.load %arg5[%c0_100, %c0_101] : memref<1x16xf32, #tpu.memory_space<vmem>>, vector<1x16xf32>
    %142 = vector.shape_cast %141 : vector<1x16xf32> to vector<16xf32>
    %143 = vector.shape_cast %142 : vector<16xf32> to vector<1x1x16xf32>
    %144 = vector.broadcast %143 : vector<1x1x16xf32> to vector<8x16x16xf32>
    %145 = arith.addf %140, %144 : vector<8x16x16xf32>
    %cst_102 = arith.constant 3.000000e+00 : f32
    %146 = vector.broadcast %cst_102 : f32 to vector<8x16x16xf32>
    %147 = arith.addf %145, %146 : vector<8x16x16xf32>
    %cst_103 = arith.constant 0.000000e+00 : f32
    %cst_104 = arith.constant 6.000000e+00 : f32
    %148 = vector.broadcast %cst_103 : f32 to vector<8x16x16xf32>
    %149 = arith.maximumf %148, %147 : vector<8x16x16xf32>
    %150 = vector.broadcast %cst_104 : f32 to vector<8x16x16xf32>
    %151 = arith.minimumf %150, %149 : vector<8x16x16xf32>
    %152 = arith.mulf %145, %151 : vector<8x16x16xf32>
    %cst_105 = arith.constant 0.166666672 : f32
    %153 = vector.broadcast %cst_105 : f32 to vector<8x16x16xf32>
    %154 = arith.mulf %152, %153 : vector<8x16x16xf32>
    %155 = arith.index_cast %58 : i32 to index
    %c0_106 = arith.constant 0 : index
    %c0_107 = arith.constant 0 : index
    %156 = vector.load %arg15[%155, %c0_106, %c0_107] : memref<16x16x16xf32, #tpu.memory_space<vmem>>, vector<8x16x16xf32>
    tpu.vector_store %arg15[%155, %c0_106, %c0_107], %154 {strides = array<i32>} : memref<16x16x16xf32, #tpu.memory_space<vmem>>, vector<8x16x16xf32>,
    %157 = vector.shape_cast %154 : vector<8x16x16xf32> to vector<128x16xf32>
    %cst_108 = arith.constant dense<0.000000e+00> : vector<16xf32>
    %158 = vector.multi_reduction <add>, %157, %cst_108 [0] : vector<128x16xf32> to vector<16xf32>
    %159 = vector.shape_cast %158 : vector<16xf32> to vector<1x16xf32>
    %160 = arith.addf %56, %159 : vector<1x16xf32>
    %c1_i32_109 = arith.constant 1 : i32
    %c8_i32_110 = arith.constant 8 : i32
    %161 = arith.muli %c1_i32_109, %c8_i32_110 : i32
    %162 = tpu.assume_multiple %161, 8 : i32
    %cst_111 = arith.constant 0.000000e+00 : f32
    %163 = vector.broadcast %cst_111 : f32 to vector<8x16x16xf32>
    %c0_i32_112 = arith.constant 0 : i32
    %164 = arith.addi %162, %c0_i32_112 : i32
    %165 = arith.index_cast %164 : i32 to index
    %c0_113 = arith.constant 0 : index
    %c0_114 = arith.constant 0 : index
    %166 = vector.load %arg14[%165, %c0_113, %c0_114] : memref<18x18x16xf32, #tpu.memory_space<vmem>>, vector<8x16x16xf32>
    %c0_115 = arith.constant 0 : index
    %c0_116 = arith.constant 0 : index
    %c0_117 = arith.constant 0 : index
    %167 = vector.load %arg4[%c0_115, %c0_116, %c0_117] : memref<3x3x16xf32, #tpu.memory_space<vmem>>, vector<1x1x16xf32>
    %168 = vector.shape_cast %167 : vector<1x1x16xf32> to vector<16xf32>
    %169 = vector.shape_cast %168 : vector<16xf32> to vector<1x1x16xf32>
    %170 = vector.broadcast %169 : vector<1x1x16xf32> to vector<8x16x16xf32>
    %171 = arith.mulf %166, %170 : vector<8x16x16xf32>
    %172 = arith.addf %163, %171 : vector<8x16x16xf32>
    %c0_i32_118 = arith.constant 0 : i32
    %173 = arith.addi %162, %c0_i32_118 : i32
    %174 = arith.index_cast %173 : i32 to index
    %c1_119 = arith.constant 1 : index
    %c0_120 = arith.constant 0 : index
    %175 = vector.load %arg14[%174, %c1_119, %c0_120] : memref<18x18x16xf32, #tpu.memory_space<vmem>>, vector<8x16x16xf32>
    %c0_121 = arith.constant 0 : index
    %c1_122 = arith.constant 1 : index
    %c0_123 = arith.constant 0 : index
    %176 = vector.load %arg4[%c0_121, %c1_122, %c0_123] : memref<3x3x16xf32, #tpu.memory_space<vmem>>, vector<1x1x16xf32>
    %177 = vector.shape_cast %176 : vector<1x1x16xf32> to vector<16xf32>
    %178 = vector.shape_cast %177 : vector<16xf32> to vector<1x1x16xf32>
    %179 = vector.broadcast %178 : vector<1x1x16xf32> to vector<8x16x16xf32>
    %180 = arith.mulf %175, %179 : vector<8x16x16xf32>
    %181 = arith.addf %172, %180 : vector<8x16x16xf32>
    %c0_i32_124 = arith.constant 0 : i32
    %182 = arith.addi %162, %c0_i32_124 : i32
    %183 = arith.index_cast %182 : i32 to index
    %c2_125 = arith.constant 2 : index
    %c0_126 = arith.constant 0 : index
    %184 = vector.load %arg14[%183, %c2_125, %c0_126] : memref<18x18x16xf32, #tpu.memory_space<vmem>>, vector<8x16x16xf32>
    %c0_127 = arith.constant 0 : index
    %c2_128 = arith.constant 2 : index
    %c0_129 = arith.constant 0 : index
    %185 = vector.load %arg4[%c0_127, %c2_128, %c0_129] : memref<3x3x16xf32, #tpu.memory_space<vmem>>, vector<1x1x16xf32>
    %186 = vector.shape_cast %185 : vector<1x1x16xf32> to vector<16xf32>
    %187 = vector.shape_cast %186 : vector<16xf32> to vector<1x1x16xf32>
    %188 = vector.broadcast %187 : vector<1x1x16xf32> to vector<8x16x16xf32>
    %189 = arith.mulf %184, %188 : vector<8x16x16xf32>
    %190 = arith.addf %181, %189 : vector<8x16x16xf32>
    %c1_i32_130 = arith.constant 1 : i32
    %191 = arith.addi %162, %c1_i32_130 : i32
    %192 = arith.index_cast %191 : i32 to index
    %c0_131 = arith.constant 0 : index
    %c0_132 = arith.constant 0 : index
    %193 = vector.load %arg14[%192, %c0_131, %c0_132] : memref<18x18x16xf32, #tpu.memory_space<vmem>>, vector<8x16x16xf32>
    %c1_133 = arith.constant 1 : index
    %c0_134 = arith.constant 0 : index
    %c0_135 = arith.constant 0 : index
    %194 = vector.load %arg4[%c1_133, %c0_134, %c0_135] : memref<3x3x16xf32, #tpu.memory_space<vmem>>, vector<1x1x16xf32>
    %195 = vector.shape_cast %194 : vector<1x1x16xf32> to vector<16xf32>
    %196 = vector.shape_cast %195 : vector<16xf32> to vector<1x1x16xf32>
    %197 = vector.broadcast %196 : vector<1x1x16xf32> to vector<8x16x16xf32>
    %198 = arith.mulf %193, %197 : vector<8x16x16xf32>
    %199 = arith.addf %190, %198 : vector<8x16x16xf32>
    %c1_i32_136 = arith.constant 1 : i32
    %200 = arith.addi %162, %c1_i32_136 : i32
    %201 = arith.index_cast %200 : i32 to index
    %c1_137 = arith.constant 1 : index
    %c0_138 = arith.constant 0 : index
    %202 = vector.load %arg14[%201, %c1_137, %c0_138] : memref<18x18x16xf32, #tpu.memory_space<vmem>>, vector<8x16x16xf32>
    %c1_139 = arith.constant 1 : index
    %c1_140 = arith.constant 1 : index
    %c0_141 = arith.constant 0 : index
    %203 = vector.load %arg4[%c1_139, %c1_140, %c0_141] : memref<3x3x16xf32, #tpu.memory_space<vmem>>, vector<1x1x16xf32>
    %204 = vector.shape_cast %203 : vector<1x1x16xf32> to vector<16xf32>
    %205 = vector.shape_cast %204 : vector<16xf32> to vector<1x1x16xf32>
    %206 = vector.broadcast %205 : vector<1x1x16xf32> to vector<8x16x16xf32>
    %207 = arith.mulf %202, %206 : vector<8x16x16xf32>
    %208 = arith.addf %199, %207 : vector<8x16x16xf32>
    %c1_i32_142 = arith.constant 1 : i32
    %209 = arith.addi %162, %c1_i32_142 : i32
    %210 = arith.index_cast %209 : i32 to index
    %c2_143 = arith.constant 2 : index
    %c0_144 = arith.constant 0 : index
    %211 = vector.load %arg14[%210, %c2_143, %c0_144] : memref<18x18x16xf32, #tpu.memory_space<vmem>>, vector<8x16x16xf32>
    %c1_145 = arith.constant 1 : index
    %c2_146 = arith.constant 2 : index
    %c0_147 = arith.constant 0 : index
    %212 = vector.load %arg4[%c1_145, %c2_146, %c0_147] : memref<3x3x16xf32, #tpu.memory_space<vmem>>, vector<1x1x16xf32>
    %213 = vector.shape_cast %212 : vector<1x1x16xf32> to vector<16xf32>
    %214 = vector.shape_cast %213 : vector<16xf32> to vector<1x1x16xf32>
    %215 = vector.broadcast %214 : vector<1x1x16xf32> to vector<8x16x16xf32>
    %216 = arith.mulf %211, %215 : vector<8x16x16xf32>
    %217 = arith.addf %208, %216 : vector<8x16x16xf32>
    %c2_i32_148 = arith.constant 2 : i32
    %218 = arith.addi %162, %c2_i32_148 : i32
    %219 = arith.index_cast %218 : i32 to index
    %c0_149 = arith.constant 0 : index
    %c0_150 = arith.constant 0 : index
    %220 = vector.load %arg14[%219, %c0_149, %c0_150] : memref<18x18x16xf32, #tpu.memory_space<vmem>>, vector<8x16x16xf32>
    %c2_151 = arith.constant 2 : index
    %c0_152 = arith.constant 0 : index
    %c0_153 = arith.constant 0 : index
    %221 = vector.load %arg4[%c2_151, %c0_152, %c0_153] : memref<3x3x16xf32, #tpu.memory_space<vmem>>, vector<1x1x16xf32>
    %222 = vector.shape_cast %221 : vector<1x1x16xf32> to vector<16xf32>
    %223 = vector.shape_cast %222 : vector<16xf32> to vector<1x1x16xf32>
    %224 = vector.broadcast %223 : vector<1x1x16xf32> to vector<8x16x16xf32>
    %225 = arith.mulf %220, %224 : vector<8x16x16xf32>
    %226 = arith.addf %217, %225 : vector<8x16x16xf32>
    %c2_i32_154 = arith.constant 2 : i32
    %227 = arith.addi %162, %c2_i32_154 : i32
    %228 = arith.index_cast %227 : i32 to index
    %c1_155 = arith.constant 1 : index
    %c0_156 = arith.constant 0 : index
    %229 = vector.load %arg14[%228, %c1_155, %c0_156] : memref<18x18x16xf32, #tpu.memory_space<vmem>>, vector<8x16x16xf32>
    %c2_157 = arith.constant 2 : index
    %c1_158 = arith.constant 1 : index
    %c0_159 = arith.constant 0 : index
    %230 = vector.load %arg4[%c2_157, %c1_158, %c0_159] : memref<3x3x16xf32, #tpu.memory_space<vmem>>, vector<1x1x16xf32>
    %231 = vector.shape_cast %230 : vector<1x1x16xf32> to vector<16xf32>
    %232 = vector.shape_cast %231 : vector<16xf32> to vector<1x1x16xf32>
    %233 = vector.broadcast %232 : vector<1x1x16xf32> to vector<8x16x16xf32>
    %234 = arith.mulf %229, %233 : vector<8x16x16xf32>
    %235 = arith.addf %226, %234 : vector<8x16x16xf32>
    %c2_i32_160 = arith.constant 2 : i32
    %236 = arith.addi %162, %c2_i32_160 : i32
    %237 = arith.index_cast %236 : i32 to index
    %c2_161 = arith.constant 2 : index
    %c0_162 = arith.constant 0 : index
    %238 = vector.load %arg14[%237, %c2_161, %c0_162] : memref<18x18x16xf32, #tpu.memory_space<vmem>>, vector<8x16x16xf32>
    %c2_163 = arith.constant 2 : index
    %c2_164 = arith.constant 2 : index
    %c0_165 = arith.constant 0 : index
    %239 = vector.load %arg4[%c2_163, %c2_164, %c0_165] : memref<3x3x16xf32, #tpu.memory_space<vmem>>, vector<1x1x16xf32>
    %240 = vector.shape_cast %239 : vector<1x1x16xf32> to vector<16xf32>
    %241 = vector.shape_cast %240 : vector<16xf32> to vector<1x1x16xf32>
    %242 = vector.broadcast %241 : vector<1x1x16xf32> to vector<8x16x16xf32>
    %243 = arith.mulf %238, %242 : vector<8x16x16xf32>
    %244 = arith.addf %235, %243 : vector<8x16x16xf32>
    %c0_166 = arith.constant 0 : index
    %c0_167 = arith.constant 0 : index
    %245 = vector.load %arg5[%c0_166, %c0_167] : memref<1x16xf32, #tpu.memory_space<vmem>>, vector<1x16xf32>
    %246 = vector.shape_cast %245 : vector<1x16xf32> to vector<16xf32>
    %247 = vector.shape_cast %246 : vector<16xf32> to vector<1x1x16xf32>
    %248 = vector.broadcast %247 : vector<1x1x16xf32> to vector<8x16x16xf32>
    %249 = arith.addf %244, %248 : vector<8x16x16xf32>
    %cst_168 = arith.constant 3.000000e+00 : f32
    %250 = vector.broadcast %cst_168 : f32 to vector<8x16x16xf32>
    %251 = arith.addf %249, %250 : vector<8x16x16xf32>
    %cst_169 = arith.constant 0.000000e+00 : f32
    %cst_170 = arith.constant 6.000000e+00 : f32
    %252 = vector.broadcast %cst_169 : f32 to vector<8x16x16xf32>
    %253 = arith.maximumf %252, %251 : vector<8x16x16xf32>
    %254 = vector.broadcast %cst_170 : f32 to vector<8x16x16xf32>
    %255 = arith.minimumf %254, %253 : vector<8x16x16xf32>
    %256 = arith.mulf %249, %255 : vector<8x16x16xf32>
    %cst_171 = arith.constant 0.166666672 : f32
    %257 = vector.broadcast %cst_171 : f32 to vector<8x16x16xf32>
    %258 = arith.mulf %256, %257 : vector<8x16x16xf32>
    %259 = arith.index_cast %162 : i32 to index
    %c0_172 = arith.constant 0 : index
    %c0_173 = arith.constant 0 : index
    %260 = vector.load %arg15[%259, %c0_172, %c0_173] : memref<16x16x16xf32, #tpu.memory_space<vmem>>, vector<8x16x16xf32>
    tpu.vector_store %arg15[%259, %c0_172, %c0_173], %258 {strides = array<i32>} : memref<16x16x16xf32, #tpu.memory_space<vmem>>, vector<8x16x16xf32>,
    %261 = vector.shape_cast %258 : vector<8x16x16xf32> to vector<128x16xf32>
    %cst_174 = arith.constant dense<0.000000e+00> : vector<16xf32>
    %262 = vector.multi_reduction <add>, %261, %cst_174 [0] : vector<128x16xf32> to vector<16xf32>
    %263 = vector.shape_cast %262 : vector<16xf32> to vector<1x16xf32>
    %264 = arith.addf %160, %263 : vector<1x16xf32>
    %c2_i32_175 = arith.constant 2 : i32
    %cst_176 = arith.constant 3.906250e-03 : f32
    %265 = vector.broadcast %cst_176 : f32 to vector<1x16xf32>
    %266 = arith.mulf %264, %265 : vector<1x16xf32>
    %267 = vector.shape_cast %266 : vector<1x16xf32> to vector<1x16xf32>
    %268 = vector.broadcast %267 : vector<1x16xf32> to vector<8x16xf32>
    %c0_177 = arith.constant 0 : index
    %c0_178 = arith.constant 0 : index
    %269 = vector.load %arg6[%c0_177, %c0_178] : memref<16x2xf32, #tpu.memory_space<vmem>>, vector<16x2xf32>
    %cst_179 = arith.constant dense<0.000000e+00> : vector<8x2xf32>
    %270 = tpu.matmul %268, %269, %cst_179 {dimension_numbers = #tpu.dot_dimension_numbers<[1], [0], [0], [1], [0, 0, 1, 1], [], []>} : vector<8x16xf32>, vector<16x2xf32>, vector<8x2xf32> -> vector<8x2xf32>
    %c0_180 = arith.constant 0 : index
    %c0_181 = arith.constant 0 : index
    %271 = vector.load %arg7[%c0_180, %c0_181] : memref<1x2xf32, #tpu.memory_space<vmem>>, vector<1x2xf32>
    %272 = vector.broadcast %271 : vector<1x2xf32> to vector<8x2xf32>
    %273 = arith.addf %270, %272 : vector<8x2xf32>
    %cst_182 = arith.constant 3.000000e+00 : f32
    %274 = vector.broadcast %cst_182 : f32 to vector<8x2xf32>
    %275 = arith.addf %273, %274 : vector<8x2xf32>
    %cst_183 = arith.constant 0.000000e+00 : f32
    %cst_184 = arith.constant 6.000000e+00 : f32
    %276 = vector.broadcast %cst_183 : f32 to vector<8x2xf32>
    %277 = arith.maximumf %276, %275 : vector<8x2xf32>
    %278 = vector.broadcast %cst_184 : f32 to vector<8x2xf32>
    %279 = arith.minimumf %278, %277 : vector<8x2xf32>
    %280 = arith.mulf %273, %279 : vector<8x2xf32>
    %cst_185 = arith.constant 0.166666672 : f32
    %281 = vector.broadcast %cst_185 : f32 to vector<8x2xf32>
    %282 = arith.mulf %280, %281 : vector<8x2xf32>
    %c0_186 = arith.constant 0 : index
    %c0_187 = arith.constant 0 : index
    %283 = vector.load %arg8[%c0_186, %c0_187] : memref<2x16xf32, #tpu.memory_space<vmem>>, vector<2x16xf32>
    %cst_188 = arith.constant dense<0.000000e+00> : vector<8x16xf32>
    %284 = tpu.matmul %282, %283, %cst_188 {dimension_numbers = #tpu.dot_dimension_numbers<[1], [0], [0], [1], [0, 0, 1, 1], [], []>} : vector<8x2xf32>, vector<2x16xf32>, vector<8x16xf32> -> vector<8x16xf32>
    %c0_189 = arith.constant 0 : index
    %c0_190 = arith.constant 0 : index
    %285 = vector.load %arg9[%c0_189, %c0_190] : memref<1x16xf32, #tpu.memory_space<vmem>>, vector<1x16xf32>
    %286 = vector.broadcast %285 : vector<1x16xf32> to vector<8x16xf32>
    %287 = arith.addf %284, %286 : vector<8x16xf32>
    %288 = arith.negf %287 : vector<8x16xf32>
    %289 = math.exp %288 : vector<8x16xf32>
    %cst_191 = arith.constant 1.000000e+00 : f32
    %290 = vector.broadcast %cst_191 : f32 to vector<8x16xf32>
    %291 = arith.addf %290, %289 : vector<8x16xf32>
    %292 = arith.divf %290, %291 : vector<8x16xf32>
    %293 = vector.extract_strided_slice %292 {offsets = [0, 0], sizes = [1, 16], strides = [1, 1]} : vector<8x16xf32> to vector<1x16xf32>
    %c0_192 = arith.constant 0 : index
    %c0_193 = arith.constant 0 : index
    %294 = vector.load %arg10[%c0_192, %c0_193] : memref<8x16xf32, #tpu.memory_space<vmem>>, vector<8x16xf32>
    %295 = vector.broadcast %293 : vector<1x16xf32> to vector<8x16xf32>
    %296 = arith.mulf %294, %295 : vector<8x16xf32>
    %c0_i32_194 = arith.constant 0 : i32
    %c8_i32_195 = arith.constant 8 : i32
    %297 = arith.muli %c0_i32_194, %c8_i32_195 : i32
    %298 = tpu.assume_multiple %297, 8 : i32
    %299 = arith.index_cast %298 : i32 to index
    %c0_196 = arith.constant 0 : index
    %c0_197 = arith.constant 0 : index
    %300 = vector.load %arg15[%299, %c0_196, %c0_197] : memref<16x16x16xf32, #tpu.memory_space<vmem>>, vector<8x16x16xf32>
    %301 = vector.shape_cast %300 : vector<8x16x16xf32> to vector<128x16xf32>
    %cst_198 = arith.constant dense<0.000000e+00> : vector<128x8xf32>
    %302 = tpu.matmul %301, %296, %cst_198 {dimension_numbers = #tpu.dot_dimension_numbers<[1], [1], [0], [0], [0, 0, 1, 0], [], []>} : vector<128x16xf32>, vector<8x16xf32>, vector<128x8xf32> -> vector<128x8xf32>
    %c0_199 = arith.constant 0 : index
    %c0_200 = arith.constant 0 : index
    %303 = vector.load %arg11[%c0_199, %c0_200] : memref<1x8xf32, #tpu.memory_space<vmem>>, vector<1x8xf32>
    %304 = vector.broadcast %303 : vector<1x8xf32> to vector<128x8xf32>
    %305 = arith.addf %302, %304 : vector<128x8xf32>
    %306 = vector.shape_cast %305 : vector<128x8xf32> to vector<8x16x8xf32>
    %c0_201 = arith.constant 0 : index
    %307 = arith.index_cast %298 : i32 to index
    %c0_202 = arith.constant 0 : index
    %c0_203 = arith.constant 0 : index
    %308 = vector.load %arg12[%c0_201, %307, %c0_202, %c0_203] : memref<1x16x16x8xf32, #tpu.memory_space<vmem>>, vector<1x8x16x8xf32>
    %309 = vector.shape_cast %308 : vector<1x8x16x8xf32> to vector<8x16x8xf32>
    %310 = arith.addf %306, %309 : vector<8x16x8xf32>
    %c0_204 = arith.constant 0 : index
    %311 = arith.index_cast %298 : i32 to index
    %c0_205 = arith.constant 0 : index
    %c0_206 = arith.constant 0 : index
    %312 = vector.load %arg13[%c0_204, %311, %c0_205, %c0_206] : memref<1x16x16x8xf32, #tpu.memory_space<vmem>>, vector<1x8x16x8xf32>
    %313 = vector.shape_cast %312 : vector<1x8x16x8xf32> to vector<8x16x8xf32>
    %314 = vector.shape_cast %310 : vector<8x16x8xf32> to vector<1x8x16x8xf32>
    tpu.vector_store %arg13[%c0_204, %311, %c0_205, %c0_206], %314 {strides = array<i32>} : memref<1x16x16x8xf32, #tpu.memory_space<vmem>>, vector<1x8x16x8xf32>,
    %c1_i32_207 = arith.constant 1 : i32
    %c8_i32_208 = arith.constant 8 : i32
    %315 = arith.muli %c1_i32_207, %c8_i32_208 : i32
    %316 = tpu.assume_multiple %315, 8 : i32
    %317 = arith.index_cast %316 : i32 to index
    %c0_209 = arith.constant 0 : index
    %c0_210 = arith.constant 0 : index
    %318 = vector.load %arg15[%317, %c0_209, %c0_210] : memref<16x16x16xf32, #tpu.memory_space<vmem>>, vector<8x16x16xf32>
    %319 = vector.shape_cast %318 : vector<8x16x16xf32> to vector<128x16xf32>
    %cst_211 = arith.constant dense<0.000000e+00> : vector<128x8xf32>
    %320 = tpu.matmul %319, %296, %cst_211 {dimension_numbers = #tpu.dot_dimension_numbers<[1], [1], [0], [0], [0, 0, 1, 0], [], []>} : vector<128x16xf32>, vector<8x16xf32>, vector<128x8xf32> -> vector<128x8xf32>
    %c0_212 = arith.constant 0 : index
    %c0_213 = arith.constant 0 : index
    %321 = vector.load %arg11[%c0_212, %c0_213] : memref<1x8xf32, #tpu.memory_space<vmem>>, vector<1x8xf32>
    %322 = vector.broadcast %321 : vector<1x8xf32> to vector<128x8xf32>
    %323 = arith.addf %320, %322 : vector<128x8xf32>
    %324 = vector.shape_cast %323 : vector<128x8xf32> to vector<8x16x8xf32>
    %c0_214 = arith.constant 0 : index
    %325 = arith.index_cast %316 : i32 to index
    %c0_215 = arith.constant 0 : index
    %c0_216 = arith.constant 0 : index
    %326 = vector.load %arg12[%c0_214, %325, %c0_215, %c0_216] : memref<1x16x16x8xf32, #tpu.memory_space<vmem>>, vector<1x8x16x8xf32>
    %327 = vector.shape_cast %326 : vector<1x8x16x8xf32> to vector<8x16x8xf32>
    %328 = arith.addf %324, %327 : vector<8x16x8xf32>
    %c0_217 = arith.constant 0 : index
    %329 = arith.index_cast %316 : i32 to index
    %c0_218 = arith.constant 0 : index
    %c0_219 = arith.constant 0 : index
    %330 = vector.load %arg13[%c0_217, %329, %c0_218, %c0_219] : memref<1x16x16x8xf32, #tpu.memory_space<vmem>>, vector<1x8x16x8xf32>
    %331 = vector.shape_cast %330 : vector<1x8x16x8xf32> to vector<8x16x8xf32>
    %332 = vector.shape_cast %328 : vector<8x16x8xf32> to vector<1x8x16x8xf32>
    tpu.vector_store %arg13[%c0_217, %329, %c0_218, %c0_219], %332 {strides = array<i32>} : memref<1x16x16x8xf32, #tpu.memory_space<vmem>>, vector<1x8x16x8xf32>,
    %c2_i32_220 = arith.constant 2 : i32
    return
  }
  func.func @transform_0(%arg0: i32) -> (i32, i32, i32, i32) {
    %c0_i32 = arith.constant 0 : i32
    %c0_i32_0 = arith.constant 0 : i32
    %c0_i32_1 = arith.constant 0 : i32
    %c0_i32_2 = arith.constant 0 : i32
    return %arg0, %c0_i32, %c0_i32_0, %c0_i32_1 : i32, i32, i32, i32
  }
  func.func @transform_1(%arg0: i32) -> (i32, i32) {
    %c0_i32 = arith.constant 0 : i32
    %c0_i32_0 = arith.constant 0 : i32
    %c0_i32_1 = arith.constant 0 : i32
    return %c0_i32, %c0_i32_0 : i32, i32
  }
  func.func @transform_2(%arg0: i32) -> (i32, i32) {
    %c0_i32 = arith.constant 0 : i32
    %c0_i32_0 = arith.constant 0 : i32
    %c0_i32_1 = arith.constant 0 : i32
    return %c0_i32, %c0_i32_0 : i32, i32
  }
  func.func @transform_3(%arg0: i32) -> (i32, i32, i32) {
    %c0_i32 = arith.constant 0 : i32
    %c0_i32_0 = arith.constant 0 : i32
    %c0_i32_1 = arith.constant 0 : i32
    %c0_i32_2 = arith.constant 0 : i32
    return %c0_i32, %c0_i32_0, %c0_i32_1 : i32, i32, i32
  }
  func.func @transform_4(%arg0: i32) -> (i32, i32) {
    %c0_i32 = arith.constant 0 : i32
    %c0_i32_0 = arith.constant 0 : i32
    %c0_i32_1 = arith.constant 0 : i32
    return %c0_i32, %c0_i32_0 : i32, i32
  }
  func.func @transform_5(%arg0: i32) -> (i32, i32) {
    %c0_i32 = arith.constant 0 : i32
    %c0_i32_0 = arith.constant 0 : i32
    %c0_i32_1 = arith.constant 0 : i32
    return %c0_i32, %c0_i32_0 : i32, i32
  }
  func.func @transform_6(%arg0: i32) -> (i32, i32) {
    %c0_i32 = arith.constant 0 : i32
    %c0_i32_0 = arith.constant 0 : i32
    %c0_i32_1 = arith.constant 0 : i32
    return %c0_i32, %c0_i32_0 : i32, i32
  }
  func.func @transform_7(%arg0: i32) -> (i32, i32) {
    %c0_i32 = arith.constant 0 : i32
    %c0_i32_0 = arith.constant 0 : i32
    %c0_i32_1 = arith.constant 0 : i32
    return %c0_i32, %c0_i32_0 : i32, i32
  }
  func.func @transform_8(%arg0: i32) -> (i32, i32) {
    %c0_i32 = arith.constant 0 : i32
    %c0_i32_0 = arith.constant 0 : i32
    %c0_i32_1 = arith.constant 0 : i32
    return %c0_i32, %c0_i32_0 : i32, i32
  }
  func.func @transform_9(%arg0: i32) -> (i32, i32) {
    %c0_i32 = arith.constant 0 : i32
    %c0_i32_0 = arith.constant 0 : i32
    %c0_i32_1 = arith.constant 0 : i32
    return %c0_i32, %c0_i32_0 : i32, i32
  }
  func.func @transform_10(%arg0: i32) -> (i32, i32) {
    %c0_i32 = arith.constant 0 : i32
    %c0_i32_0 = arith.constant 0 : i32
    %c0_i32_1 = arith.constant 0 : i32
    return %c0_i32, %c0_i32_0 : i32, i32
  }
  func.func @transform_11(%arg0: i32) -> (i32, i32, i32, i32) {
    %c0_i32 = arith.constant 0 : i32
    %c0_i32_0 = arith.constant 0 : i32
    %c0_i32_1 = arith.constant 0 : i32
    %c0_i32_2 = arith.constant 0 : i32
    return %arg0, %c0_i32, %c0_i32_0, %c0_i32_1 : i32, i32, i32, i32
  }
  func.func @transform_12(%arg0: i32) -> (i32, i32, i32, i32) {
    %c0_i32 = arith.constant 0 : i32
    %c0_i32_0 = arith.constant 0 : i32
    %c0_i32_1 = arith.constant 0 : i32
    %c0_i32_2 = arith.constant 0 : i32
    return %arg0, %c0_i32, %c0_i32_0, %c0_i32_1 : i32, i32, i32, i32
  }
}

</mosaic_0001>

<llo_original>
// kernel: tpu_custom_call.1
$region0: #{tpu_custom_call.1}
  #allocation0 [shape = 'u32[]', space=smem, size = 0x4, offset = 0x4, fixed_abs, tag = 'smem constant byte address 0x4 - core index']
  #allocation1 [shape = 'u32[144,128]{1,0:T(1,128)}', space=vmem, size = 0x12000, scoped, tag = 'internal scratch']
  #allocation2 [shape = 'f32[18,18,16]{2,1,0:T(8,128)}', space=vmem, size = 0x36000, scoped, tag = 'scratch operand']
  #allocation3 [shape = 'f32[16,16,16]{2,1,0:T(8,128)}', space=vmem, size = 0x20000, scoped, tag = 'scratch operand']
  %s0 = inlined_call_operand.vmem [shape: f32[2,16,16,8], index: 0, kind: input, shape index: {}]
  %s1 = inlined_call_operand.vmem [shape: f32[8,16], index: 1, kind: input, shape index: {}]
  %s2 = inlined_call_operand.vmem [shape: f32[1,16], index: 2, kind: input, shape index: {}]
  %s3 = inlined_call_operand.vmem [shape: f32[3,3,16], index: 3, kind: input, shape index: {}]
  %s4 = inlined_call_operand.vmem [shape: f32[1,16], index: 4, kind: input, shape index: {}]
  %s5 = inlined_call_operand.vmem [shape: f32[16,2], index: 5, kind: input, shape index: {}]
  %s6 = inlined_call_operand.vmem [shape: f32[1,2], index: 6, kind: input, shape index: {}]
  %s7 = inlined_call_operand.vmem [shape: f32[2,16], index: 7, kind: input, shape index: {}]
  %s8 = inlined_call_operand.vmem [shape: f32[1,16], index: 8, kind: input, shape index: {}]
  %s9 = inlined_call_operand.vmem [shape: f32[8,16], index: 9, kind: input, shape index: {}]
  %s10 = inlined_call_operand.vmem [shape: f32[1,8], index: 10, kind: input, shape index: {}]
  %s11 = inlined_call_operand.vmem [shape: f32[2,16,16,8], index: 11, kind: input, shape index: {}]
  %s12 = inlined_call_operand.vmem [shape: f32[2,16,16,8], index: 12, kind: output, shape index: {}]
  %s13 = sld [smem:[#allocation0]]
  $region81: #{tpu_custom_call.1} parent=0
    _
  %s15 = ssub.s32 1, %s13
  %s16 = scalar_select 0, %s15, %s13
  loop: start=0, step=1, limit=4
  $region2: #{tpu_custom_call.1} parent=0 // loop_pre_header
    _
  $region3: #{tpu_custom_call.1} parent=0 // loop_header
    %s18 = sphi 0, %s22
    %p19 = scmp.ge.s32.totalorder %s18, 4
    %s28 = sphi 0, %s30
    %s31 = sphi 0, %s28
    %s32 = sphi 0, %s31
    %s48 = sphi 0, %s32
    %s52 = sphi 0, %s52
    %s54 = sphi 0, %s52
    %s55 = sphi 0, %s54
    %s69 = sphi 0, %s55
    %s73 = sphi 0, %s73
    %s75 = sphi 0, %s73
    %s76 = sphi 0, %s75
    %s90 = sphi 0, %s76
    %s94 = sphi 0, %s94
    %s96 = sphi 0, %s94
    %s97 = sphi 0, %s96
    %s111 = sphi 0, %s97
    %s115 = sphi 0, %s115
    %s117 = sphi 0, %s115
    %s118 = sphi 0, %s117
    %s132 = sphi 0, %s118
    %s136 = sphi 0, %s136
    %s138 = sphi 0, %s136
    %s139 = sphi 0, %s138
    %s153 = sphi 0, %s139
    %s157 = sphi 0, %s157
    %s159 = sphi 0, %s157
    %s160 = sphi 0, %s159
    %s174 = sphi 0, %s160
    %s178 = sphi 0, %s178
    %s180 = sphi 0, %s178
    %s181 = sphi 0, %s180
    %s195 = sphi 0, %s181
    %s199 = sphi 0, %s199
    %s201 = sphi 0, %s199
    %s202 = sphi 0, %s201
    %s216 = sphi 0, %s202
    %s220 = sphi 0, %s220
    %s222 = sphi 0, %s220
    %s223 = sphi 0, %s222
    %s237 = sphi 0, %s223
    %s241 = sphi 0, %s241
    %s243 = sphi 0, %s241
    %s244 = sphi 0, %s243
    %s258 = sphi 0, %s244
    %s264 = sphi 0, %s266
    %s267 = sphi 0, %s264
    %s268 = sphi 0, %s267
    %s284 = sphi 0, %s268
    %s290 = sphi 0, %s292
    %s293 = sphi 0, %s290
    %s294 = sphi 0, %s293
    %s310 = sphi 0, %s294
  $region4: #{tpu_custom_call.1} parent=0 // loop_header_branch
    %21 = sbr.rel (%p19) target = $region8
  $region5: #{tpu_custom_call.1} parent=0 // loop_body
    %s23 = ssub.s32 %s18, 1
    %s24 = ssub.s32 %s18, 2
    %s25 = sadd.s32 %s18, 1
    %s26 = ssub.s32 %s18, %s25
    %p27 = scmp.eq.s32.totalorder %s26, 0
    %s29 = sadd.s32 %s28, 1
    %s30 = scalar_select %p27, %s28, %s29
    %p33 = pneg %p27
    %p34 = scmp.eq.s32.totalorder %s18, 1
    %p35 = por %p33, %p34
    %p36 = scmp.ne.s32.totalorder %s28, %s31
    %p37 = scmp.eq.s32.totalorder %s18, 0
    %p38 = por %p36, %p37
    %p39 = scmp.ne.s32.totalorder %s28, %s31
    %p40 = scmp.eq.s32.totalorder %s23, 1
    %p41 = por %p39, %p40
    %p42 = scmp.ne.s32.totalorder %s31, %s32
    %p43 = scmp.eq.s32.totalorder %s23, 0
    %p44 = por %p42, %p43
    %p45 = scmp.ne.s32.totalorder %s31, %s32
    %p46 = scmp.eq.s32.totalorder %s24, 1
    %p47 = por %p45, %p46
    %p49 = scmp.ne.s32.totalorder %s32, %s48
    %p50 = scmp.eq.s32.totalorder %s24, 0
    %p51 = por %p49, %p50
    %s53 = sadd.s32 %s52, 1
    %p56 = scmp.eq.s32.totalorder %s18, 1
    %p57 = scmp.ne.s32.totalorder %s52, %s54
    %p58 = scmp.eq.s32.totalorder %s18, 0
    %p59 = por %p57, %p58
    %p60 = scmp.ne.s32.totalorder %s52, %s54
    %p61 = scmp.eq.s32.totalorder %s23, 1
    %p62 = por %p60, %p61
    %p63 = scmp.ne.s32.totalorder %s54, %s55
    %p64 = scmp.eq.s32.totalorder %s23, 0
    %p65 = por %p63, %p64
    %p66 = scmp.ne.s32.totalorder %s54, %s55
    %p67 = scmp.eq.s32.totalorder %s24, 1
    %p68 = por %p66, %p67
    %p70 = scmp.ne.s32.totalorder %s55, %s69
    %p71 = scmp.eq.s32.totalorder %s24, 0
    %p72 = por %p70, %p71
    %s74 = sadd.s32 %s73, 1
    %p77 = scmp.eq.s32.totalorder %s18, 1
    %p78 = scmp.ne.s32.totalorder %s73, %s75
    %p79 = scmp.eq.s32.totalorder %s18, 0
    %p80 = por %p78, %p79
    %p81 = scmp.ne.s32.totalorder %s73, %s75
    %p82 = scmp.eq.s32.totalorder %s23, 1
    %p83 = por %p81, %p82
    %p84 = scmp.ne.s32.totalorder %s75, %s76
    %p85 = scmp.eq.s32.totalorder %s23, 0
    %p86 = por %p84, %p85
    %p87 = scmp.ne.s32.totalorder %s75, %s76
    %p88 = scmp.eq.s32.totalorder %s24, 1
    %p89 = por %p87, %p88
    %p91 = scmp.ne.s32.totalorder %s76, %s90
    %p92 = scmp.eq.s32.totalorder %s24, 0
    %p93 = por %p91, %p92
    %s95 = sadd.s32 %s94, 1
    %p98 = scmp.eq.s32.totalorder %s18, 1
    %p99 = scmp.ne.s32.totalorder %s94, %s96
    %p100 = scmp.eq.s32.totalorder %s18, 0
    %p101 = por %p99, %p100
    %p102 = scmp.ne.s32.totalorder %s94, %s96
    %p103 = scmp.eq.s32.totalorder %s23, 1
    %p104 = por %p102, %p103
    %p105 = scmp.ne.s32.totalorder %s96, %s97
    %p106 = scmp.eq.s32.totalorder %s23, 0
    %p107 = por %p105, %p106
    %p108 = scmp.ne.s32.totalorder %s96, %s97
    %p109 = scmp.eq.s32.totalorder %s24, 1
    %p110 = por %p108, %p109
    %p112 = scmp.ne.s32.totalorder %s97, %s111
    %p113 = scmp.eq.s32.totalorder %s24, 0
    %p114 = por %p112, %p113
    %s116 = sadd.s32 %s115, 1
    %p119 = scmp.eq.s32.totalorder %s18, 1
    %p120 = scmp.ne.s32.totalorder %s115, %s117
    %p121 = scmp.eq.s32.totalorder %s18, 0
    %p122 = por %p120, %p121
    %p123 = scmp.ne.s32.totalorder %s115, %s117
    %p124 = scmp.eq.s32.totalorder %s23, 1
    %p125 = por %p123, %p124
    %p126 = scmp.ne.s32.totalorder %s117, %s118
    %p127 = scmp.eq.s32.totalorder %s23, 0
    %p128 = por %p126, %p127
    %p129 = scmp.ne.s32.totalorder %s117, %s118
    %p130 = scmp.eq.s32.totalorder %s24, 1
    %p131 = por %p129, %p130
    %p133 = scmp.ne.s32.totalorder %s118, %s132
    %p134 = scmp.eq.s32.totalorder %s24, 0
    %p135 = por %p133, %p134
    %s137 = sadd.s32 %s136, 1
    %p140 = scmp.eq.s32.totalorder %s18, 1
    %p141 = scmp.ne.s32.totalorder %s136, %s138
    %p142 = scmp.eq.s32.totalorder %s18, 0
    %p143 = por %p141, %p142
    %p144 = scmp.ne.s32.totalorder %s136, %s138
    %p145 = scmp.eq.s32.totalorder %s23, 1
    %p146 = por %p144, %p145
    %p147 = scmp.ne.s32.totalorder %s138, %s139
    %p148 = scmp.eq.s32.totalorder %s23, 0
    %p149 = por %p147, %p148
    %p150 = scmp.ne.s32.totalorder %s138, %s139
    %p151 = scmp.eq.s32.totalorder %s24, 1
    %p152 = por %p150, %p151
    %p154 = scmp.ne.s32.totalorder %s139, %s153
    %p155 = scmp.eq.s32.totalorder %s24, 0
    %p156 = por %p154, %p155
    %s158 = sadd.s32 %s157, 1
    %p161 = scmp.eq.s32.totalorder %s18, 1
    %p162 = scmp.ne.s32.totalorder %s157, %s159
    %p163 = scmp.eq.s32.totalorder %s18, 0
    %p164 = por %p162, %p163
    %p165 = scmp.ne.s32.totalorder %s157, %s159
    %p166 = scmp.eq.s32.totalorder %s23, 1
    %p167 = por %p165, %p166
    %p168 = scmp.ne.s32.totalorder %s159, %s160
    %p169 = scmp.eq.s32.totalorder %s23, 0
    %p170 = por %p168, %p169
    %p171 = scmp.ne.s32.totalorder %s159, %s160
    %p172 = scmp.eq.s32.totalorder %s24, 1
    %p173 = por %p171, %p172
    %p175 = scmp.ne.s32.totalorder %s160, %s174
    %p176 = scmp.eq.s32.totalorder %s24, 0
    %p177 = por %p175, %p176
    %s179 = sadd.s32 %s178, 1
    %p182 = scmp.eq.s32.totalorder %s18, 1
    %p183 = scmp.ne.s32.totalorder %s178, %s180
    %p184 = scmp.eq.s32.totalorder %s18, 0
    %p185 = por %p183, %p184
    %p186 = scmp.ne.s32.totalorder %s178, %s180
    %p187 = scmp.eq.s32.totalorder %s23, 1
    %p188 = por %p186, %p187
    %p189 = scmp.ne.s32.totalorder %s180, %s181
    %p190 = scmp.eq.s32.totalorder %s23, 0
    %p191 = por %p189, %p190
    %p192 = scmp.ne.s32.totalorder %s180, %s181
    %p193 = scmp.eq.s32.totalorder %s24, 1
    %p194 = por %p192, %p193
    %p196 = scmp.ne.s32.totalorder %s181, %s195
    %p197 = scmp.eq.s32.totalorder %s24, 0
    %p198 = por %p196, %p197
    %s200 = sadd.s32 %s199, 1
    %p203 = scmp.eq.s32.totalorder %s18, 1
    %p204 = scmp.ne.s32.totalorder %s199, %s201
    %p205 = scmp.eq.s32.totalorder %s18, 0
    %p206 = por %p204, %p205
    %p207 = scmp.ne.s32.totalorder %s199, %s201
    %p208 = scmp.eq.s32.totalorder %s23, 1
    %p209 = por %p207, %p208
    %p210 = scmp.ne.s32.totalorder %s201, %s202
    %p211 = scmp.eq.s32.totalorder %s23, 0
    %p212 = por %p210, %p211
    %p213 = scmp.ne.s32.totalorder %s201, %s202
    %p214 = scmp.eq.s32.totalorder %s24, 1
    %p215 = por %p213, %p214
    %p217 = scmp.ne.s32.totalorder %s202, %s216
    %p218 = scmp.eq.s32.totalorder %s24, 0
    %p219 = por %p217, %p218
    %s221 = sadd.s32 %s220, 1
    %p224 = scmp.eq.s32.totalorder %s18, 1
    %p225 = scmp.ne.s32.totalorder %s220, %s222
    %p226 = scmp.eq.s32.totalorder %s18, 0
    %p227 = por %p225, %p226
    %p228 = scmp.ne.s32.totalorder %s220, %s222
    %p229 = scmp.eq.s32.totalorder %s23, 1
    %p230 = por %p228, %p229
    %p231 = scmp.ne.s32.totalorder %s222, %s223
    %p232 = scmp.eq.s32.totalorder %s23, 0
    %p233 = por %p231, %p232
    %p234 = scmp.ne.s32.totalorder %s222, %s223
    %p235 = scmp.eq.s32.totalorder %s24, 1
    %p236 = por %p234, %p235
    %p238 = scmp.ne.s32.totalorder %s223, %s237
    %p239 = scmp.eq.s32.totalorder %s24, 0
    %p240 = por %p238, %p239
    %s242 = sadd.s32 %s241, 1
    %p245 = scmp.eq.s32.totalorder %s18, 1
    %p246 = scmp.ne.s32.totalorder %s241, %s243
    %p247 = scmp.eq.s32.totalorder %s18, 0
    %p248 = por %p246, %p247
    %p249 = scmp.ne.s32.totalorder %s241, %s243
    %p250 = scmp.eq.s32.totalorder %s23, 1
    %p251 = por %p249, %p250
    %p252 = scmp.ne.s32.totalorder %s243, %s244
    %p253 = scmp.eq.s32.totalorder %s23, 0
    %p254 = por %p252, %p253
    %p255 = scmp.ne.s32.totalorder %s243, %s244
    %p256 = scmp.eq.s32.totalorder %s24, 1
    %p257 = por %p255, %p256
    %p259 = scmp.ne.s32.totalorder %s244, %s258
    %p260 = scmp.eq.s32.totalorder %s24, 0
    %p261 = por %p259, %p260
    %s262 = ssub.s32 %s18, %s25
    %p263 = scmp.eq.s32.totalorder %s262, 0
    %s265 = sadd.s32 %s264, 1
    %s266 = scalar_select %p263, %s264, %s265
    %p269 = pneg %p263
    %p270 = scmp.eq.s32.totalorder %s18, 1
    %p271 = por %p269, %p270
    %p272 = scmp.ne.s32.totalorder %s264, %s267
    %p273 = scmp.eq.s32.totalorder %s18, 0
    %p274 = por %p272, %p273
    %p275 = scmp.ne.s32.totalorder %s264, %s267
    %p276 = scmp.eq.s32.totalorder %s23, 1
    %p277 = por %p275, %p276
    %p278 = scmp.ne.s32.totalorder %s267, %s268
    %p279 = scmp.eq.s32.totalorder %s23, 0
    %p280 = por %p278, %p279
    %p281 = scmp.ne.s32.totalorder %s267, %s268
    %p282 = scmp.eq.s32.totalorder %s24, 1
    %p283 = por %p281, %p282
    %p285 = scmp.ne.s32.totalorder %s268, %s284
    %p286 = scmp.eq.s32.totalorder %s24, 0
    %p287 = por %p285, %p286
    %s288 = ssub.s32 %s18, %s25
    %p289 = scmp.eq.s32.totalorder %s288, 0
    %s291 = sadd.s32 %s290, 1
    %s292 = scalar_select %p289, %s290, %s291
    %p295 = pneg %p289
    %p296 = scmp.eq.s32.totalorder %s18, 1
    %p297 = por %p295, %p296
    %p298 = scmp.ne.s32.totalorder %s290, %s293
    %p299 = scmp.eq.s32.totalorder %s18, 0
    %p300 = por %p298, %p299
    %p301 = scmp.ne.s32.totalorder %s290, %s293
    %p302 = scmp.eq.s32.totalorder %s23, 1
    %p303 = por %p301, %p302
    %p304 = scmp.ne.s32.totalorder %s293, %s294
    %p305 = scmp.eq.s32.totalorder %s23, 0
    %p306 = por %p304, %p305
    %p307 = scmp.ne.s32.totalorder %s293, %s294
    %p308 = scmp.eq.s32.totalorder %s24, 1
    %p309 = por %p307, %p308
    %p311 = scmp.ne.s32.totalorder %s294, %s310
    %p312 = scmp.eq.s32.totalorder %s24, 0
    %p313 = por %p311, %p312
    %p314 = scmp.le.s32.totalorder 1, %s18
    %p315 = scmp.lt.s32.totalorder %s18, 3
    %p316 = pnand %p314, %p315
    %p317 = pneg %p316
    // Predicated region
    $region9: #{tpu_custom_call.1} parent=5 // pred_check
      _
    $region10: #{tpu_custom_call.1} parent=5 // pred_check_branch
      %319 = sbr.rel (%p316) target = $region12
    $region11: #{tpu_custom_call.1} parent=5 // pred_region
      %s320 = ssub.s32 %s18, 1
      // Predicated region
      $region13: #{tpu_custom_call.1} parent=11 // pred_check
        %p321 = pneg %p65
      $region14: #{tpu_custom_call.1} parent=11 // pred_check_branch
        %323 = sbr.rel (%p321) target = $region16
      $region15: #{tpu_custom_call.1} parent=11 // pred_region
        _
      $region16: #{tpu_custom_call.1} parent=11 // pred_fallthru
        _
      // Predicated region
      $region17: #{tpu_custom_call.1} parent=11 // pred_check
        %p324 = pneg %p86
      $region18: #{tpu_custom_call.1} parent=11 // pred_check_branch
        %326 = sbr.rel (%p324) target = $region20
      $region19: #{tpu_custom_call.1} parent=11 // pred_region
        _
      $region20: #{tpu_custom_call.1} parent=11 // pred_fallthru
        _
      // Predicated region
      $region21: #{tpu_custom_call.1} parent=11 // pred_check
        %p327 = pneg %p107
      $region22: #{tpu_custom_call.1} parent=11 // pred_check_branch
        %329 = sbr.rel (%p327) target = $region24
      $region23: #{tpu_custom_call.1} parent=11 // pred_region
        _
      $region24: #{tpu_custom_call.1} parent=11 // pred_fallthru
        _
      // Predicated region
      $region25: #{tpu_custom_call.1} parent=11 // pred_check
        %p330 = pneg %p128
      $region26: #{tpu_custom_call.1} parent=11 // pred_check_branch
        %332 = sbr.rel (%p330) target = $region28
      $region27: #{tpu_custom_call.1} parent=11 // pred_region
        _
      $region28: #{tpu_custom_call.1} parent=11 // pred_fallthru
        _
      // Predicated region
      $region29: #{tpu_custom_call.1} parent=11 // pred_check
        %p333 = pneg %p149
      $region30: #{tpu_custom_call.1} parent=11 // pred_check_branch
        %335 = sbr.rel (%p333) target = $region32
      $region31: #{tpu_custom_call.1} parent=11 // pred_region
        _
      $region32: #{tpu_custom_call.1} parent=11 // pred_fallthru
        _
      // Predicated region
      $region33: #{tpu_custom_call.1} parent=11 // pred_check
        %p336 = pneg %p170
      $region34: #{tpu_custom_call.1} parent=11 // pred_check_branch
        %338 = sbr.rel (%p336) target = $region36
      $region35: #{tpu_custom_call.1} parent=11 // pred_region
        _
      $region36: #{tpu_custom_call.1} parent=11 // pred_fallthru
        _
      // Predicated region
      $region37: #{tpu_custom_call.1} parent=11 // pred_check
        %p339 = pneg %p191
      $region38: #{tpu_custom_call.1} parent=11 // pred_check_branch
        %341 = sbr.rel (%p339) target = $region40
      $region39: #{tpu_custom_call.1} parent=11 // pred_region
        _
      $region40: #{tpu_custom_call.1} parent=11 // pred_fallthru
        _
      // Predicated region
      $region41: #{tpu_custom_call.1} parent=11 // pred_check
        %p342 = pneg %p212
      $region42: #{tpu_custom_call.1} parent=11 // pred_check_branch
        %344 = sbr.rel (%p342) target = $region44
      $region43: #{tpu_custom_call.1} parent=11 // pred_region
        _
      $region44: #{tpu_custom_call.1} parent=11 // pred_fallthru
        _
      // Predicated region
      $region45: #{tpu_custom_call.1} parent=11 // pred_check
        %p345 = pneg %p233
      $region46: #{tpu_custom_call.1} parent=11 // pred_check_branch
        %347 = sbr.rel (%p345) target = $region48
      $region47: #{tpu_custom_call.1} parent=11 // pred_region
        _
      $region48: #{tpu_custom_call.1} parent=11 // pred_fallthru
        _
      // Predicated region
      $region49: #{tpu_custom_call.1} parent=11 // pred_check
        %p348 = pneg %p254
      $region50: #{tpu_custom_call.1} parent=11 // pred_check_branch
        %350 = sbr.rel (%p348) target = $region52
      $region51: #{tpu_custom_call.1} parent=11 // pred_region
        _
      $region52: #{tpu_custom_call.1} parent=11 // pred_fallthru
        _
    $region12: #{tpu_custom_call.1} parent=5 // pred_fallthru
      _
    %p351 = scmp.lt.s32.totalorder %s18, 2
    // Predicated region
    $region53: #{tpu_custom_call.1} parent=5 // pred_check
      %p352 = pneg %p351
    $region54: #{tpu_custom_call.1} parent=5 // pred_check_branch
      %354 = sbr.rel (%p352) target = $region56
    $region55: #{tpu_custom_call.1} parent=5 // pred_region
      // Predicated region
      $region57: #{tpu_custom_call.1} parent=55 // pred_check
        %p355 = pneg %p38
      $region58: #{tpu_custom_call.1} parent=55 // pred_check_branch
        %357 = sbr.rel (%p355) target = $region60
      $region59: #{tpu_custom_call.1} parent=55 // pred_region
        %p358 = scmp.lt.s32.totalorder %s18, 1
        %s359 = scalar_select %p358, %s18, 1
        %s360 = smul.addr %s359, 32
        %s361 = smul.addr %s360, 8
        %s362 = scalar_lea.vmem %s0, %s361
      $region60: #{tpu_custom_call.1} parent=55 // pred_fallthru
        _
      // Predicated region
      $region61: #{tpu_custom_call.1} parent=55 // pred_check
        %p363 = pneg %p274
      $region62: #{tpu_custom_call.1} parent=55 // pred_check_branch
        %365 = sbr.rel (%p363) target = $region64
      $region63: #{tpu_custom_call.1} parent=55 // pred_region
        %p366 = scmp.lt.s32.totalorder %s18, 1
        %s367 = scalar_select %p366, %s18, 1
        %s368 = smul.addr %s367, 32
        %s369 = smul.addr %s368, 8
        %s370 = scalar_lea.vmem %s11, %s369
      $region64: #{tpu_custom_call.1} parent=55 // pred_fallthru
        _
    $region56: #{tpu_custom_call.1} parent=5 // pred_fallthru
      _
    %p371 = scmp.le.s32.totalorder 1, %s18
    %p372 = scmp.lt.s32.totalorder %s18, 3
    %p373 = pnand %p371, %p372
    %p374 = pneg %p373
    // Predicated region
    $region65: #{tpu_custom_call.1} parent=5 // pred_check
      _
    $region66: #{tpu_custom_call.1} parent=5 // pred_check_branch
      %376 = sbr.rel (%p373) target = $region68
    $region67: #{tpu_custom_call.1} parent=5 // pred_region
      %s377 = ssub.s32 %s18, 1
      %p378 = scmp.lt.s32.totalorder %s23, 1
      %s379 = scalar_select %p378, %s23, 1
      %s380 = smul.addr %s379, 32
      %s381 = smul.addr %s380, 8
      %s382 = scalar_lea.vmem %s0, %s381
      %p383 = pneg %p44
      %p384 = pneg %p41
      %p385 = pneg %p65
      %p386 = pneg %p62
      %p387 = pneg %p86
      %p388 = pneg %p83
      %p389 = pneg %p107
      %p390 = pneg %p104
      %p391 = pneg %p128
      %p392 = pneg %p125
      %p393 = pneg %p149
      %p394 = pneg %p146
      %p395 = pneg %p170
      %p396 = pneg %p167
      %p397 = pneg %p191
      %p398 = pneg %p188
      %p399 = pneg %p212
      %p400 = pneg %p209
      %p401 = pneg %p233
      %p402 = pneg %p230
      %p403 = pneg %p254
      %p404 = pneg %p251
      %p405 = scmp.lt.s32.totalorder %s23, 1
      %s406 = scalar_select %p405, %s23, 1
      %s407 = smul.addr %s406, 32
      %s408 = smul.addr %s407, 8
      %s409 = scalar_lea.vmem %s11, %s408
      %p410 = pneg %p280
      %p411 = pneg %p277
      %p412 = pneg %p306
      %p413 = pneg %p303
      %p414 = scmp.lt.s32.totalorder %s23, 1
      %s415 = scalar_select %p414, %s23, 1
      %s416 = smul.addr %s415, 32
      %s417 = smul.addr %s416, 8
      %s418 = scalar_lea.vmem %s12, %s417
      %p419 = scmp.lt.s32.totalorder %s23, 1
      %s420 = scalar_select %p419, %s23, 1
      %s421 = smul.addr %s420, 32
      %s422 = smul.addr %s421, 8
      %s423 = scalar_lea.vmem %s0, %s422
      %p424 = scmp.lt.s32.totalorder %s23, 1
      %s425 = scalar_select %p424, %s23, 1
      %s426 = smul.addr %s425, 32
      %s427 = smul.addr %s426, 8
      %s428 = scalar_lea.vmem %s11, %s427
      %p429 = scmp.lt.s32.totalorder %s23, 1
      %s430 = scalar_select %p429, %s23, 1
      %s431 = smul.addr %s430, 32
      %s432 = smul.addr %s431, 8
      %s433 = scalar_lea.vmem %s12, %s432
      %vm434 = vcmask 130048
      %435 = vst.msk [vmem:[#allocation2] sm:$0xff] %vm434, 0.0
      %436 = vst.msk [vmem:[#allocation2 + $0x8] sm:$0xff] %vm434, 0.0
      %vm437 = vcmask 123904
      %438 = vst.msk [vmem:[#allocation2 + $0x10] sm:$0x3] %vm437, 0.0
      %s439 = scalar_lea.vmem [#allocation2], 408
      %440 = vst.msk [vmem:[%s439] sm:$0xff] %vm434, 0.0
      %441 = vst.msk [vmem:[%s439 + $0x8] sm:$0xff] %vm434, 0.0
      %442 = vst.msk [vmem:[%s439 + $0x10] sm:$0x3] %vm437, 0.0
      %s443 = scalar_lea.vmem [#allocation2], 24
      %vm444 = vcmask 122880
      %445 = vst.msk [vmem:[%s443] sm:$0x1] %vm444, 0.0
      %446 = vst.msk [vmem:[%s443 + $0x18] sm:$0x1] %vm444, 0.0
      %447 = vst.msk [vmem:[%s443 + $0x30] sm:$0x1] %vm444, 0.0
      %448 = vst.msk [vmem:[%s443 + $0x48] sm:$0x1] %vm444, 0.0
      %449 = vst.msk [vmem:[%s443 + $0x60] sm:$0x1] %vm444, 0.0
      %450 = vst.msk [vmem:[%s443 + $0x78] sm:$0x1] %vm444, 0.0
      %451 = vst.msk [vmem:[%s443 + $0x90] sm:$0x1] %vm444, 0.0
      %452 = vst.msk [vmem:[%s443 + $0xa8] sm:$0x1] %vm444, 0.0
      %453 = vst.msk [vmem:[%s443 + $0xc0] sm:$0x1] %vm444, 0.0
      %454 = vst.msk [vmem:[%s443 + $0xd8] sm:$0x1] %vm444, 0.0
      %455 = vst.msk [vmem:[%s443 + $0xf0] sm:$0x1] %vm444, 0.0
      %456 = vst.msk [vmem:[%s443 + $0x108] sm:$0x1] %vm444, 0.0
      %457 = vst.msk [vmem:[%s443 + $0x120] sm:$0x1] %vm444, 0.0
      %458 = vst.msk [vmem:[%s443 + $0x138] sm:$0x1] %vm444, 0.0
      %459 = vst.msk [vmem:[%s443 + $0x150] sm:$0x1] %vm444, 0.0
      %460 = vst.msk [vmem:[%s443 + $0x168] sm:$0x1] %vm444, 0.0
      %461 = vst.msk [vmem:[%s443 + $0x11] sm:$0x1] %vm444, 0.0
      %462 = vst.msk [vmem:[%s443 + $0x29] sm:$0x1] %vm444, 0.0
      %463 = vst.msk [vmem:[%s443 + $0x41] sm:$0x1] %vm444, 0.0
      %464 = vst.msk [vmem:[%s443 + $0x59] sm:$0x1] %vm444, 0.0
      %465 = vst.msk [vmem:[%s443 + $0x71] sm:$0x1] %vm444, 0.0
      %466 = vst.msk [vmem:[%s443 + $0x89] sm:$0x1] %vm444, 0.0
      %467 = vst.msk [vmem:[%s443 + $0xa1] sm:$0x1] %vm444, 0.0
      %468 = vst.msk [vmem:[%s443 + $0xb9] sm:$0x1] %vm444, 0.0
      %469 = vst.msk [vmem:[%s443 + $0xd1] sm:$0x1] %vm444, 0.0
      %470 = vst.msk [vmem:[%s443 + $0xe9] sm:$0x1] %vm444, 0.0
      %471 = vst.msk [vmem:[%s443 + $0x101] sm:$0x1] %vm444, 0.0
      %472 = vst.msk [vmem:[%s443 + $0x119] sm:$0x1] %vm444, 0.0
      %473 = vst.msk [vmem:[%s443 + $0x131] sm:$0x1] %vm444, 0.0
      %474 = vst.msk [vmem:[%s443 + $0x149] sm:$0x1] %vm444, 0.0
      %475 = vst.msk [vmem:[%s443 + $0x161] sm:$0x1] %vm444, 0.0
      %476 = vst.msk [vmem:[%s443 + $0x179] sm:$0x1] %vm444, 0.0
      %s477 = smul.u32 0, 16
      %s478 = scalar_lea.vmem %s423, %s477
      %v479 = vld [vmem:[%s478] sm:$0xff]
      %v480 = vld [vmem:[%s478 + $0x8] sm:$0xff]
      %v481 = vld [vmem:[%s478 + $0x10] sm:$0xff]
      %v482 = vld [vmem:[%s478 + $0x18] sm:$0xff]
      %v483 = vld [vmem:[%s478 + $0x20] sm:$0xff]
      %v484 = vld [vmem:[%s478 + $0x28] sm:$0xff]
      %v485 = vld [vmem:[%s478 + $0x30] sm:$0xff]
      %v486 = vld [vmem:[%s478 + $0x38] sm:$0xff]
      %v487 = vld [vmem:[%s478 + $0x40] sm:$0xff]
      %v488 = vld [vmem:[%s478 + $0x48] sm:$0xff]
      %v489 = vld [vmem:[%s478 + $0x50] sm:$0xff]
      %v490 = vld [vmem:[%s478 + $0x58] sm:$0xff]
      %v491 = vld [vmem:[%s478 + $0x60] sm:$0xff]
      %v492 = vld [vmem:[%s478 + $0x68] sm:$0xff]
      %v493 = vld [vmem:[%s478 + $0x70] sm:$0xff]
      %v494 = vld [vmem:[%s478 + $0x78] sm:$0xff]
      %v495 = vld [vmem:[%s1] sm:$0xff]
      %v496 = vld [vmem:[%s2] sm:$0x1]
      %v498 = vlaneseq
      %v499 = vshrl.u32 %v498, 7
      %v500 = vsub.s32 0, %v499
      %v501 = vrot.slane %v496, %v500
      %vm503 = vcmask 64512
      %v505 = vsel %vm503, %v479, 0
      %v508 = vsel %vm503, %v480, 0
      %v511 = vsel %vm503, %v481, 0
      %v514 = vsel %vm503, %v482, 0
      %v517 = vsel %vm503, %v483, 0
      %v520 = vsel %vm503, %v484, 0
      %v523 = vsel %vm503, %v485, 0
      %v526 = vsel %vm503, %v486, 0
      %v529 = vsel %vm503, %v487, 0
      %v532 = vsel %vm503, %v488, 0
      %v535 = vsel %vm503, %v489, 0
      %v538 = vsel %vm503, %v490, 0
      %v541 = vsel %vm503, %v491, 0
      %v544 = vsel %vm503, %v492, 0
      %v547 = vsel %vm503, %v493, 0
      %v550 = vsel %vm503, %v494, 0
      %552 = vmatprep.subr.mxu0 0.0
      %553 = vmatpush1.msra.mxu0 %v495
      %554 = vmatprep.subr.mxu0 0.0
      %555 = vmatpush1.msra.mxu0 0.0
      %556 = vmatprep.subr.mxu0 0.0
      %557 = vmatpush1.msra.mxu0 0.0
      %558 = vmatprep.subr.mxu0 0.0
      %559 = vmatpush1.msra.mxu0 0.0
      %560 = vmatprep.subr.mxu0 0.0
      %561 = vmatpush1.msra.mxu0 0.0
      %562 = vmatprep.subr.mxu0 0.0
      %563 = vmatpush1.msra.mxu0 0.0
      %564 = vmatprep.subr.mxu0 0.0
      %565 = vmatpush1.msra.mxu0 0.0
      %566 = vmatprep.subr.mxu0 0.0
      %567 = vmatpush1.msra.mxu0 0.0
      %568 = vmatprep.subr.mxu0 0.0
      %569 = vmatpush1.msra.mxu0 0.0
      %570 = vmatprep.subr.mxu0 0.0
      %571 = vmatpush1.msra.mxu0 0.0
      %572 = vmatprep.subr.mxu0 0.0
      %573 = vmatpush1.msra.mxu0 0.0
      %574 = vmatprep.subr.mxu0 0.0
      %575 = vmatpush1.msra.mxu0 0.0
      %576 = vmatprep.subr.mxu0 0.0
      %577 = vmatpush1.msra.mxu0 0.0
      %578 = vmatprep.subr.mxu0 0.0
      %579 = vmatpush1.msra.mxu0 0.0
      %580 = vmatprep.subr.mxu0 0.0
      %581 = vmatpush1.msra.mxu0 0.0
      %582 = vmatprep.subr.mxu0 0.0
      %583 = vmatpush1.msra.mxu0 0.0
      %584 = vmatprep.subr.mxu0 0.0
      %585 = vmatpush1.msra.mxu0 0.0
      %586 = vmatprep.subr.mxu0 0.0
      %587 = vmatpush1.msra.mxu0 0.0
      %588 = vmatprep.subr.mxu0 0.0
      %589 = vmatpush1.msra.mxu0 0.0
      %590 = vmatprep.subr.mxu0 0.0
      %591 = vmatpush1.msra.mxu0 0.0
      %592 = vmatprep.subr.mxu0 0.0
      %593 = vmatpush1.msra.mxu0 0.0
      %594 = vmatprep.subr.mxu0 0.0
      %595 = vmatpush1.msra.mxu0 0.0
      %596 = vmatprep.subr.mxu0 0.0
      %597 = vmatpush1.msra.mxu0 0.0
      %598 = vmatprep.subr.mxu0 0.0
      %599 = vmatpush1.msra.mxu0 0.0
      %600 = vmatprep.subr.mxu0 0.0
      %601 = vmatpush1.msra.mxu0 0.0
      %602 = vmatprep.subr.mxu0 0.0
      %603 = vmatpush1.msra.mxu0 0.0
      %604 = vmatprep.subr.mxu0 0.0
      %605 = vmatpush1.msra.mxu0 0.0
      %606 = vmatprep.subr.mxu0 0.0
      %607 = vmatpush1.msra.mxu0 0.0
      %608 = vmatprep.subr.mxu0 0.0
      %609 = vmatpush1.msra.mxu0 0.0
      %610 = vmatprep.subr.mxu0 0.0
      %611 = vmatpush1.msra.mxu0 0.0
      %612 = vmatprep.subr.mxu0 0.0
      %613 = vmatpush1.msra.mxu0 0.0
      %614 = vmatprep.subr.mxu0 0.0
      %615 = vmatpush1.msra.mxu0 0.0
      %616 = vmatprep.mubr.f32.mxu0 0.0
      %617 = vmatmul.mubr.f32.gmra.mrb[0].mxu0 %v505
      %v618 = vpop.f32.mrb[0].mxu0
      %v619 = vadd.f32 %v501, %v618
      %v620 = vpop.f32.mrb[0].mxu0
      %621 = vmatprep.mubr.f32.mxu0 0.0
      %622 = vmatmul.mubr.f32.gmra.mrb[0].mxu0 %v508
      %v623 = vpop.f32.mrb[0].mxu0
      %v624 = vadd.f32 %v501, %v623
      %v625 = vpop.f32.mrb[0].mxu0
      %626 = vmatprep.mubr.f32.mxu0 0.0
      %627 = vmatmul.mubr.f32.gmra.mrb[0].mxu0 %v511
      %v628 = vpop.f32.mrb[0].mxu0
      %v629 = vadd.f32 %v501, %v628
      %v630 = vpop.f32.mrb[0].mxu0
      %631 = vmatprep.mubr.f32.mxu0 0.0
      %632 = vmatmul.mubr.f32.gmra.mrb[0].mxu0 %v514
      %v633 = vpop.f32.mrb[0].mxu0
      %v634 = vadd.f32 %v501, %v633
      %v635 = vpop.f32.mrb[0].mxu0
      %636 = vmatprep.mubr.f32.mxu0 0.0
      %637 = vmatmul.mubr.f32.gmra.mrb[0].mxu0 %v517
      %v638 = vpop.f32.mrb[0].mxu0
      %v639 = vadd.f32 %v501, %v638
      %v640 = vpop.f32.mrb[0].mxu0
      %641 = vmatprep.mubr.f32.mxu0 0.0
      %642 = vmatmul.mubr.f32.gmra.mrb[0].mxu0 %v520
      %v643 = vpop.f32.mrb[0].mxu0
      %v644 = vadd.f32 %v501, %v643
      %v645 = vpop.f32.mrb[0].mxu0
      %646 = vmatprep.mubr.f32.mxu0 0.0
      %647 = vmatmul.mubr.f32.gmra.mrb[0].mxu0 %v523
      %v648 = vpop.f32.mrb[0].mxu0
      %v649 = vadd.f32 %v501, %v648
      %v650 = vpop.f32.mrb[0].mxu0
      %651 = vmatprep.mubr.f32.mxu0 0.0
      %652 = vmatmul.mubr.f32.gmra.mrb[0].mxu0 %v526
      %v653 = vpop.f32.mrb[0].mxu0
      %v654 = vadd.f32 %v501, %v653
      %v655 = vpop.f32.mrb[0].mxu0
      %656 = vmatprep.mubr.f32.mxu0 0.0
      %657 = vmatmul.mubr.f32.gmra.mrb[0].mxu0 %v529
      %v658 = vpop.f32.mrb[0].mxu0
      %v659 = vadd.f32 %v501, %v658
      %v660 = vpop.f32.mrb[0].mxu0
      %661 = vmatprep.mubr.f32.mxu0 0.0
      %662 = vmatmul.mubr.f32.gmra.mrb[0].mxu0 %v532
      %v663 = vpop.f32.mrb[0].mxu0
      %v664 = vadd.f32 %v501, %v663
      %v665 = vpop.f32.mrb[0].mxu0
      %666 = vmatprep.mubr.f32.mxu0 0.0
      %667 = vmatmul.mubr.f32.gmra.mrb[0].mxu0 %v535
      %v668 = vpop.f32.mrb[0].mxu0
      %v669 = vadd.f32 %v501, %v668
      %v670 = vpop.f32.mrb[0].mxu0
      %671 = vmatprep.mubr.f32.mxu0 0.0
      %672 = vmatmul.mubr.f32.gmra.mrb[0].mxu0 %v538
      %v673 = vpop.f32.mrb[0].mxu0
      %v674 = vadd.f32 %v501, %v673
      %v675 = vpop.f32.mrb[0].mxu0
      %676 = vmatprep.mubr.f32.mxu0 0.0
      %677 = vmatmul.mubr.f32.gmra.mrb[0].mxu0 %v541
      %v678 = vpop.f32.mrb[0].mxu0
      %v679 = vadd.f32 %v501, %v678
      %v680 = vpop.f32.mrb[0].mxu0
      %681 = vmatprep.mubr.f32.mxu0 0.0
      %682 = vmatmul.mubr.f32.gmra.mrb[0].mxu0 %v544
      %v683 = vpop.f32.mrb[0].mxu0
      %v684 = vadd.f32 %v501, %v683
      %v685 = vpop.f32.mrb[0].mxu0
      %686 = vmatprep.mubr.f32.mxu0 0.0
      %687 = vmatmul.mubr.f32.gmra.mrb[0].mxu0 %v547
      %v688 = vpop.f32.mrb[0].mxu0
      %v689 = vadd.f32 %v501, %v688
      %v690 = vpop.f32.mrb[0].mxu0
      %691 = vmatprep.mubr.f32.mxu0 0.0
      %692 = vmatmul.mubr.f32.gmra.mrb[0].mxu0 %v550
      %v693 = vpop.f32.mrb[0].mxu0
      %v694 = vadd.f32 %v501, %v693
      %v695 = vpop.f32.mrb[0].mxu0
      %696 = vdwg.mxu0
      %v697 = vadd.f32 %v619, 3.0
      %v698 = vadd.f32 %v624, 3.0
      %v699 = vadd.f32 %v629, 3.0
      %v700 = vadd.f32 %v634, 3.0
      %v701 = vadd.f32 %v639, 3.0
      %v702 = vadd.f32 %v644, 3.0
      %v703 = vadd.f32 %v649, 3.0
      %v704 = vadd.f32 %v654, 3.0
      %v705 = vadd.f32 %v659, 3.0
      %v706 = vadd.f32 %v664, 3.0
      %v707 = vadd.f32 %v669, 3.0
      %v708 = vadd.f32 %v674, 3.0
      %v709 = vadd.f32 %v679, 3.0
      %v710 = vadd.f32 %v684, 3.0
      %v711 = vadd.f32 %v689, 3.0
      %v712 = vadd.f32 %v694, 3.0
      %v713 = vmax.f32 %v697, 0.0
      %v714 = vmax.f32 %v698, 0.0
      %v715 = vmax.f32 %v699, 0.0
      %v716 = vmax.f32 %v700, 0.0
      %v717 = vmax.f32 %v701, 0.0
      %v718 = vmax.f32 %v702, 0.0
      %v719 = vmax.f32 %v703, 0.0
      %v720 = vmax.f32 %v704, 0.0
      %v721 = vmax.f32 %v705, 0.0
      %v722 = vmax.f32 %v706, 0.0
      %v723 = vmax.f32 %v707, 0.0
      %v724 = vmax.f32 %v708, 0.0
      %v725 = vmax.f32 %v709, 0.0
      %v726 = vmax.f32 %v710, 0.0
      %v727 = vmax.f32 %v711, 0.0
      %v728 = vmax.f32 %v712, 0.0
      %v729 = vmin.f32 %v713, 6.0
      %v730 = vmin.f32 %v714, 6.0
      %v731 = vmin.f32 %v715, 6.0
      %v732 = vmin.f32 %v716, 6.0
      %v733 = vmin.f32 %v717, 6.0
      %v734 = vmin.f32 %v718, 6.0
      %v735 = vmin.f32 %v719, 6.0
      %v736 = vmin.f32 %v720, 6.0
      %v737 = vmin.f32 %v721, 6.0
      %v738 = vmin.f32 %v722, 6.0
      %v739 = vmin.f32 %v723, 6.0
      %v740 = vmin.f32 %v724, 6.0
      %v741 = vmin.f32 %v725, 6.0
      %v742 = vmin.f32 %v726, 6.0
      %v743 = vmin.f32 %v727, 6.0
      %v744 = vmin.f32 %v728, 6.0
      %v745 = vmul.f32 %v619, %v729
      %v746 = vmul.f32 %v624, %v730
      %v747 = vmul.f32 %v629, %v731
      %v748 = vmul.f32 %v634, %v732
      %v749 = vmul.f32 %v639, %v733
      %v750 = vmul.f32 %v644, %v734
      %v751 = vmul.f32 %v649, %v735
      %v752 = vmul.f32 %v654, %v736
      %v753 = vmul.f32 %v659, %v737
      %v754 = vmul.f32 %v664, %v738
      %v755 = vmul.f32 %v669, %v739
      %v756 = vmul.f32 %v674, %v740
      %v757 = vmul.f32 %v679, %v741
      %v758 = vmul.f32 %v684, %v742
      %v759 = vmul.f32 %v689, %v743
      %v760 = vmul.f32 %v694, %v744
      %v761 = vmul.f32 %v745, 0.16666667
      %v762 = vmul.f32 %v746, 0.16666667
      %v763 = vmul.f32 %v747, 0.16666667
      %v764 = vmul.f32 %v748, 0.16666667
      %v765 = vmul.f32 %v749, 0.16666667
      %v766 = vmul.f32 %v750, 0.16666667
      %v767 = vmul.f32 %v751, 0.16666667
      %v768 = vmul.f32 %v752, 0.16666667
      %v769 = vmul.f32 %v753, 0.16666667
      %v770 = vmul.f32 %v754, 0.16666667
      %v771 = vmul.f32 %v755, 0.16666667
      %v772 = vmul.f32 %v756, 0.16666667
      %v773 = vmul.f32 %v757, 0.16666667
      %v774 = vmul.f32 %v758, 0.16666667
      %v775 = vmul.f32 %v759, 0.16666667
      %v776 = vmul.f32 %v760, 0.16666667
      %s777 = sadd.s32 0, 1
      %s778 = smul.u32 %s777, 24
      %s779 = scalar_lea.vmem [#allocation2], %s778
      %780 = vst.msk [vmem:[%s779 + $0x1] sm:$0xff] %vm434, %v761
      %781 = vst.msk [vmem:[%s779 + $0x9] sm:$0xff] %vm434, %v762
      %782 = vst.msk [vmem:[%s779 + $0x19] sm:$0xff] %vm434, %v763
      %783 = vst.msk [vmem:[%s779 + $0x21] sm:$0xff] %vm434, %v764
      %784 = vst.msk [vmem:[%s779 + $0x31] sm:$0xff] %vm434, %v765
      %785 = vst.msk [vmem:[%s779 + $0x39] sm:$0xff] %vm434, %v766
      %786 = vst.msk [vmem:[%s779 + $0x49] sm:$0xff] %vm434, %v767
      %787 = vst.msk [vmem:[%s779 + $0x51] sm:$0xff] %vm434, %v768
      %788 = vst.msk [vmem:[%s779 + $0x61] sm:$0xff] %vm434, %v769
      %789 = vst.msk [vmem:[%s779 + $0x69] sm:$0xff] %vm434, %v770
      %790 = vst.msk [vmem:[%s779 + $0x79] sm:$0xff] %vm434, %v771
      %791 = vst.msk [vmem:[%s779 + $0x81] sm:$0xff] %vm434, %v772
      %792 = vst.msk [vmem:[%s779 + $0x91] sm:$0xff] %vm434, %v773
      %793 = vst.msk [vmem:[%s779 + $0x99] sm:$0xff] %vm434, %v774
      %794 = vst.msk [vmem:[%s779 + $0xa9] sm:$0xff] %vm434, %v775
      %795 = vst.msk [vmem:[%s779 + $0xb1] sm:$0xff] %vm434, %v776
      %s796 = smul.u32 8, 16
      %s797 = scalar_lea.vmem %s423, %s796
      %v798 = vld [vmem:[%s797] sm:$0xff]
      %v799 = vld [vmem:[%s797 + $0x8] sm:$0xff]
      %v800 = vld [vmem:[%s797 + $0x10] sm:$0xff]
      %v801 = vld [vmem:[%s797 + $0x18] sm:$0xff]
      %v802 = vld [vmem:[%s797 + $0x20] sm:$0xff]
      %v803 = vld [vmem:[%s797 + $0x28] sm:$0xff]
      %v804 = vld [vmem:[%s797 + $0x30] sm:$0xff]
      %v805 = vld [vmem:[%s797 + $0x38] sm:$0xff]
      %v806 = vld [vmem:[%s797 + $0x40] sm:$0xff]
      %v807 = vld [vmem:[%s797 + $0x48] sm:$0xff]
      %v808 = vld [vmem:[%s797 + $0x50] sm:$0xff]
      %v809 = vld [vmem:[%s797 + $0x58] sm:$0xff]
      %v810 = vld [vmem:[%s797 + $0x60] sm:$0xff]
      %v811 = vld [vmem:[%s797 + $0x68] sm:$0xff]
      %v812 = vld [vmem:[%s797 + $0x70] sm:$0xff]
      %v813 = vld [vmem:[%s797 + $0x78] sm:$0xff]
      %v814 = vld [vmem:[%s1] sm:$0xff]
      %v815 = vld [vmem:[%s2] sm:$0x1]
      %v817 = vlaneseq
      %v818 = vshrl.u32 %v817, 7
      %v819 = vsub.s32 0, %v818
      %v820 = vrot.slane %v815, %v819
      %v823 = vsel %vm503, %v798, 0
      %v826 = vsel %vm503, %v799, 0
      %v829 = vsel %vm503, %v800, 0
      %v832 = vsel %vm503, %v801, 0
      %v835 = vsel %vm503, %v802, 0
      %v838 = vsel %vm503, %v803, 0
      %v841 = vsel %vm503, %v804, 0
      %v844 = vsel %vm503, %v805, 0
      %v847 = vsel %vm503, %v806, 0
      %v850 = vsel %vm503, %v807, 0
      %v853 = vsel %vm503, %v808, 0
      %v856 = vsel %vm503, %v809, 0
      %v859 = vsel %vm503, %v810, 0
      %v862 = vsel %vm503, %v811, 0
      %v865 = vsel %vm503, %v812, 0
      %v868 = vsel %vm503, %v813, 0
      %870 = vmatprep.subr.mxu0 0.0
      %871 = vmatpush1.msra.mxu0 %v814
      %872 = vmatprep.subr.mxu0 0.0
      %873 = vmatpush1.msra.mxu0 0.0
      %874 = vmatprep.subr.mxu0 0.0
      %875 = vmatpush1.msra.mxu0 0.0
      %876 = vmatprep.subr.mxu0 0.0
      %877 = vmatpush1.msra.mxu0 0.0
      %878 = vmatprep.subr.mxu0 0.0
      %879 = vmatpush1.msra.mxu0 0.0
      %880 = vmatprep.subr.mxu0 0.0
      %881 = vmatpush1.msra.mxu0 0.0
      %882 = vmatprep.subr.mxu0 0.0
      %883 = vmatpush1.msra.mxu0 0.0
      %884 = vmatprep.subr.mxu0 0.0
      %885 = vmatpush1.msra.mxu0 0.0
      %886 = vmatprep.subr.mxu0 0.0
      %887 = vmatpush1.msra.mxu0 0.0
      %888 = vmatprep.subr.mxu0 0.0
      %889 = vmatpush1.msra.mxu0 0.0
      %890 = vmatprep.subr.mxu0 0.0
      %891 = vmatpush1.msra.mxu0 0.0
      %892 = vmatprep.subr.mxu0 0.0
      %893 = vmatpush1.msra.mxu0 0.0
      %894 = vmatprep.subr.mxu0 0.0
      %895 = vmatpush1.msra.mxu0 0.0
      %896 = vmatprep.subr.mxu0 0.0
      %897 = vmatpush1.msra.mxu0 0.0
      %898 = vmatprep.subr.mxu0 0.0
      %899 = vmatpush1.msra.mxu0 0.0
      %900 = vmatprep.subr.mxu0 0.0
      %901 = vmatpush1.msra.mxu0 0.0
      %902 = vmatprep.subr.mxu0 0.0
      %903 = vmatpush1.msra.mxu0 0.0
      %904 = vmatprep.subr.mxu0 0.0
      %905 = vmatpush1.msra.mxu0 0.0
      %906 = vmatprep.subr.mxu0 0.0
      %907 = vmatpush1.msra.mxu0 0.0
      %908 = vmatprep.subr.mxu0 0.0
      %909 = vmatpush1.msra.mxu0 0.0
      %910 = vmatprep.subr.mxu0 0.0
      %911 = vmatpush1.msra.mxu0 0.0
      %912 = vmatprep.subr.mxu0 0.0
      %913 = vmatpush1.msra.mxu0 0.0
      %914 = vmatprep.subr.mxu0 0.0
      %915 = vmatpush1.msra.mxu0 0.0
      %916 = vmatprep.subr.mxu0 0.0
      %917 = vmatpush1.msra.mxu0 0.0
      %918 = vmatprep.subr.mxu0 0.0
      %919 = vmatpush1.msra.mxu0 0.0
      %920 = vmatprep.subr.mxu0 0.0
      %921 = vmatpush1.msra.mxu0 0.0
      %922 = vmatprep.subr.mxu0 0.0
      %923 = vmatpush1.msra.mxu0 0.0
      %924 = vmatprep.subr.mxu0 0.0
      %925 = vmatpush1.msra.mxu0 0.0
      %926 = vmatprep.subr.mxu0 0.0
      %927 = vmatpush1.msra.mxu0 0.0
      %928 = vmatprep.subr.mxu0 0.0
      %929 = vmatpush1.msra.mxu0 0.0
      %930 = vmatprep.subr.mxu0 0.0
      %931 = vmatpush1.msra.mxu0 0.0
      %932 = vmatprep.subr.mxu0 0.0
      %933 = vmatpush1.msra.mxu0 0.0
      %934 = vmatprep.mubr.f32.mxu0 0.0
      %935 = vmatmul.mubr.f32.gmra.mrb[0].mxu0 %v823
      %v936 = vpop.f32.mrb[0].mxu0
      %v937 = vadd.f32 %v820, %v936
      %v938 = vpop.f32.mrb[0].mxu0
      %939 = vmatprep.mubr.f32.mxu0 0.0
      %940 = vmatmul.mubr.f32.gmra.mrb[0].mxu0 %v826
      %v941 = vpop.f32.mrb[0].mxu0
      %v942 = vadd.f32 %v820, %v941
      %v943 = vpop.f32.mrb[0].mxu0
      %944 = vmatprep.mubr.f32.mxu0 0.0
      %945 = vmatmul.mubr.f32.gmra.mrb[0].mxu0 %v829
      %v946 = vpop.f32.mrb[0].mxu0
      %v947 = vadd.f32 %v820, %v946
      %v948 = vpop.f32.mrb[0].mxu0
      %949 = vmatprep.mubr.f32.mxu0 0.0
      %950 = vmatmul.mubr.f32.gmra.mrb[0].mxu0 %v832
      %v951 = vpop.f32.mrb[0].mxu0
      %v952 = vadd.f32 %v820, %v951
      %v953 = vpop.f32.mrb[0].mxu0
      %954 = vmatprep.mubr.f32.mxu0 0.0
      %955 = vmatmul.mubr.f32.gmra.mrb[0].mxu0 %v835
      %v956 = vpop.f32.mrb[0].mxu0
      %v957 = vadd.f32 %v820, %v956
      %v958 = vpop.f32.mrb[0].mxu0
      %959 = vmatprep.mubr.f32.mxu0 0.0
      %960 = vmatmul.mubr.f32.gmra.mrb[0].mxu0 %v838
      %v961 = vpop.f32.mrb[0].mxu0
      %v962 = vadd.f32 %v820, %v961
      %v963 = vpop.f32.mrb[0].mxu0
      %964 = vmatprep.mubr.f32.mxu0 0.0
      %965 = vmatmul.mubr.f32.gmra.mrb[0].mxu0 %v841
      %v966 = vpop.f32.mrb[0].mxu0
      %v967 = vadd.f32 %v820, %v966
      %v968 = vpop.f32.mrb[0].mxu0
      %969 = vmatprep.mubr.f32.mxu0 0.0
      %970 = vmatmul.mubr.f32.gmra.mrb[0].mxu0 %v844
      %v971 = vpop.f32.mrb[0].mxu0
      %v972 = vadd.f32 %v820, %v971
      %v973 = vpop.f32.mrb[0].mxu0
      %974 = vmatprep.mubr.f32.mxu0 0.0
      %975 = vmatmul.mubr.f32.gmra.mrb[0].mxu0 %v847
      %v976 = vpop.f32.mrb[0].mxu0
      %v977 = vadd.f32 %v820, %v976
      %v978 = vpop.f32.mrb[0].mxu0
      %979 = vmatprep.mubr.f32.mxu0 0.0
      %980 = vmatmul.mubr.f32.gmra.mrb[0].mxu0 %v850
      %v981 = vpop.f32.mrb[0].mxu0
      %v982 = vadd.f32 %v820, %v981
      %v983 = vpop.f32.mrb[0].mxu0
      %984 = vmatprep.mubr.f32.mxu0 0.0
      %985 = vmatmul.mubr.f32.gmra.mrb[0].mxu0 %v853
      %v986 = vpop.f32.mrb[0].mxu0
      %v987 = vadd.f32 %v820, %v986
      %v988 = vpop.f32.mrb[0].mxu0
      %989 = vmatprep.mubr.f32.mxu0 0.0
      %990 = vmatmul.mubr.f32.gmra.mrb[0].mxu0 %v856
      %v991 = vpop.f32.mrb[0].mxu0
      %v992 = vadd.f32 %v820, %v991
      %v993 = vpop.f32.mrb[0].mxu0
      %994 = vmatprep.mubr.f32.mxu0 0.0
      %995 = vmatmul.mubr.f32.gmra.mrb[0].mxu0 %v859
      %v996 = vpop.f32.mrb[0].mxu0
      %v997 = vadd.f32 %v820, %v996
      %v998 = vpop.f32.mrb[0].mxu0
      %999 = vmatprep.mubr.f32.mxu0 0.0
      %1000 = vmatmul.mubr.f32.gmra.mrb[0].mxu0 %v862
      %v1001 = vpop.f32.mrb[0].mxu0
      %v1002 = vadd.f32 %v820, %v1001
      %v1003 = vpop.f32.mrb[0].mxu0
      %1004 = vmatprep.mubr.f32.mxu0 0.0
      %1005 = vmatmul.mubr.f32.gmra.mrb[0].mxu0 %v865
      %v1006 = vpop.f32.mrb[0].mxu0
      %v1007 = vadd.f32 %v820, %v1006
      %v1008 = vpop.f32.mrb[0].mxu0
      %1009 = vmatprep.mubr.f32.mxu0 0.0
      %1010 = vmatmul.mubr.f32.gmra.mrb[0].mxu0 %v868
      %v1011 = vpop.f32.mrb[0].mxu0
      %v1012 = vadd.f32 %v820, %v1011
      %v1013 = vpop.f32.mrb[0].mxu0
      %1014 = vdwg.mxu0
      %v1015 = vadd.f32 %v937, 3.0
      %v1016 = vadd.f32 %v942, 3.0
      %v1017 = vadd.f32 %v947, 3.0
      %v1018 = vadd.f32 %v952, 3.0
      %v1019 = vadd.f32 %v957, 3.0
      %v1020 = vadd.f32 %v962, 3.0
      %v1021 = vadd.f32 %v967, 3.0
      %v1022 = vadd.f32 %v972, 3.0
      %v1023 = vadd.f32 %v977, 3.0
      %v1024 = vadd.f32 %v982, 3.0
      %v1025 = vadd.f32 %v987, 3.0
      %v1026 = vadd.f32 %v992, 3.0
      %v1027 = vadd.f32 %v997, 3.0
      %v1028 = vadd.f32 %v1002, 3.0
      %v1029 = vadd.f32 %v1007, 3.0
      %v1030 = vadd.f32 %v1012, 3.0
      %v1031 = vmax.f32 %v1015, 0.0
      %v1032 = vmax.f32 %v1016, 0.0
      %v1033 = vmax.f32 %v1017, 0.0
      %v1034 = vmax.f32 %v1018, 0.0
      %v1035 = vmax.f32 %v1019, 0.0
      %v1036 = vmax.f32 %v1020, 0.0
      %v1037 = vmax.f32 %v1021, 0.0
      %v1038 = vmax.f32 %v1022, 0.0
      %v1039 = vmax.f32 %v1023, 0.0
      %v1040 = vmax.f32 %v1024, 0.0
      %v1041 = vmax.f32 %v1025, 0.0
      %v1042 = vmax.f32 %v1026, 0.0
      %v1043 = vmax.f32 %v1027, 0.0
      %v1044 = vmax.f32 %v1028, 0.0
      %v1045 = vmax.f32 %v1029, 0.0
      %v1046 = vmax.f32 %v1030, 0.0
      %v1047 = vmin.f32 %v1031, 6.0
      %v1048 = vmin.f32 %v1032, 6.0
      %v1049 = vmin.f32 %v1033, 6.0
      %v1050 = vmin.f32 %v1034, 6.0
      %v1051 = vmin.f32 %v1035, 6.0
      %v1052 = vmin.f32 %v1036, 6.0
      %v1053 = vmin.f32 %v1037, 6.0
      %v1054 = vmin.f32 %v1038, 6.0
      %v1055 = vmin.f32 %v1039, 6.0
      %v1056 = vmin.f32 %v1040, 6.0
      %v1057 = vmin.f32 %v1041, 6.0
      %v1058 = vmin.f32 %v1042, 6.0
      %v1059 = vmin.f32 %v1043, 6.0
      %v1060 = vmin.f32 %v1044, 6.0
      %v1061 = vmin.f32 %v1045, 6.0
      %v1062 = vmin.f32 %v1046, 6.0
      %v1063 = vmul.f32 %v937, %v1047
      %v1064 = vmul.f32 %v942, %v1048
      %v1065 = vmul.f32 %v947, %v1049
      %v1066 = vmul.f32 %v952, %v1050
      %v1067 = vmul.f32 %v957, %v1051
      %v1068 = vmul.f32 %v962, %v1052
      %v1069 = vmul.f32 %v967, %v1053
      %v1070 = vmul.f32 %v972, %v1054
      %v1071 = vmul.f32 %v977, %v1055
      %v1072 = vmul.f32 %v982, %v1056
      %v1073 = vmul.f32 %v987, %v1057
      %v1074 = vmul.f32 %v992, %v1058
      %v1075 = vmul.f32 %v997, %v1059
      %v1076 = vmul.f32 %v1002, %v1060
      %v1077 = vmul.f32 %v1007, %v1061
      %v1078 = vmul.f32 %v1012, %v1062
      %v1079 = vmul.f32 %v1063, 0.16666667
      %v1080 = vmul.f32 %v1064, 0.16666667
      %v1081 = vmul.f32 %v1065, 0.16666667
      %v1082 = vmul.f32 %v1066, 0.16666667
      %v1083 = vmul.f32 %v1067, 0.16666667
      %v1084 = vmul.f32 %v1068, 0.16666667
      %v1085 = vmul.f32 %v1069, 0.16666667
      %v1086 = vmul.f32 %v1070, 0.16666667
      %v1087 = vmul.f32 %v1071, 0.16666667
      %v1088 = vmul.f32 %v1072, 0.16666667
      %v1089 = vmul.f32 %v1073, 0.16666667
      %v1090 = vmul.f32 %v1074, 0.16666667
      %v1091 = vmul.f32 %v1075, 0.16666667
      %v1092 = vmul.f32 %v1076, 0.16666667
      %v1093 = vmul.f32 %v1077, 0.16666667
      %v1094 = vmul.f32 %v1078, 0.16666667
      %s1095 = sadd.s32 8, 1
      %s1096 = smul.u32 %s1095, 24
      %s1097 = scalar_lea.vmem [#allocation2], %s1096
      %1098 = vst.msk [vmem:[%s1097 + $0x1] sm:$0xff] %vm434, %v1079
      %1099 = vst.msk [vmem:[%s1097 + $0x9] sm:$0xff] %vm434, %v1080
      %1100 = vst.msk [vmem:[%s1097 + $0x19] sm:$0xff] %vm434, %v1081
      %1101 = vst.msk [vmem:[%s1097 + $0x21] sm:$0xff] %vm434, %v1082
      %1102 = vst.msk [vmem:[%s1097 + $0x31] sm:$0xff] %vm434, %v1083
      %1103 = vst.msk [vmem:[%s1097 + $0x39] sm:$0xff] %vm434, %v1084
      %1104 = vst.msk [vmem:[%s1097 + $0x49] sm:$0xff] %vm434, %v1085
      %1105 = vst.msk [vmem:[%s1097 + $0x51] sm:$0xff] %vm434, %v1086
      %1106 = vst.msk [vmem:[%s1097 + $0x61] sm:$0xff] %vm434, %v1087
      %1107 = vst.msk [vmem:[%s1097 + $0x69] sm:$0xff] %vm434, %v1088
      %1108 = vst.msk [vmem:[%s1097 + $0x79] sm:$0xff] %vm434, %v1089
      %1109 = vst.msk [vmem:[%s1097 + $0x81] sm:$0xff] %vm434, %v1090
      %1110 = vst.msk [vmem:[%s1097 + $0x91] sm:$0xff] %vm434, %v1091
      %1111 = vst.msk [vmem:[%s1097 + $0x99] sm:$0xff] %vm434, %v1092
      %1112 = vst.msk [vmem:[%s1097 + $0xa9] sm:$0xff] %vm434, %v1093
      %1113 = vst.msk [vmem:[%s1097 + $0xb1] sm:$0xff] %vm434, %v1094
      %s1114 = smul.u32 0, 24
      %s1115 = scalar_lea.vmem [#allocation2], %s1114
      %v1116 = vld [vmem:[%s1115] sm:$0xff]
      %v1117 = vld [vmem:[%s1115 + $0x8] sm:$0xff]
      %v1118 = vld [vmem:[%s1115 + $0x18] sm:$0xff]
      %v1119 = vld [vmem:[%s1115 + $0x20] sm:$0xff]
      %v1120 = vld [vmem:[%s1115 + $0x30] sm:$0xff]
      %v1121 = vld [vmem:[%s1115 + $0x38] sm:$0xff]
      %v1122 = vld [vmem:[%s1115 + $0x48] sm:$0xff]
      %v1123 = vld [vmem:[%s1115 + $0x50] sm:$0xff]
      %v1124 = vld [vmem:[%s1115 + $0x60] sm:$0xff]
      %v1125 = vld [vmem:[%s1115 + $0x68] sm:$0xff]
      %v1126 = vld [vmem:[%s1115 + $0x78] sm:$0xff]
      %v1127 = vld [vmem:[%s1115 + $0x80] sm:$0xff]
      %v1128 = vld [vmem:[%s1115 + $0x90] sm:$0xff]
      %v1129 = vld [vmem:[%s1115 + $0x98] sm:$0xff]
      %v1130 = vld [vmem:[%s1115 + $0xa8] sm:$0xff]
      %v1131 = vld [vmem:[%s1115 + $0xb0] sm:$0xff]
      %v1132 = vld [vmem:[%s3] sm:$0x1]
      %v1133 = vlaneseq
      %v1134 = vshrl.u32 %v1133, 7
      %v1135 = vsub.s32 0, %v1134
      %v1136 = vrot.slane %v1132, %v1135
      %v1137 = vmul.f32 %v1116, %v1136
      %v1138 = vmul.f32 %v1117, %v1136
      %v1139 = vmul.f32 %v1118, %v1136
      %v1140 = vmul.f32 %v1119, %v1136
      %v1141 = vmul.f32 %v1120, %v1136
      %v1142 = vmul.f32 %v1121, %v1136
      %v1143 = vmul.f32 %v1122, %v1136
      %v1144 = vmul.f32 %v1123, %v1136
      %v1145 = vmul.f32 %v1124, %v1136
      %v1146 = vmul.f32 %v1125, %v1136
      %v1147 = vmul.f32 %v1126, %v1136
      %v1148 = vmul.f32 %v1127, %v1136
      %v1149 = vmul.f32 %v1128, %v1136
      %v1150 = vmul.f32 %v1129, %v1136
      %v1151 = vmul.f32 %v1130, %v1136
      %v1152 = vmul.f32 %v1131, %v1136
      %v1153 = vadd.f32 %v1137, 0.0
      %v1154 = vadd.f32 %v1138, 0.0
      %v1155 = vadd.f32 %v1139, 0.0
      %v1156 = vadd.f32 %v1140, 0.0
      %v1157 = vadd.f32 %v1141, 0.0
      %v1158 = vadd.f32 %v1142, 0.0
      %v1159 = vadd.f32 %v1143, 0.0
      %v1160 = vadd.f32 %v1144, 0.0
      %v1161 = vadd.f32 %v1145, 0.0
      %v1162 = vadd.f32 %v1146, 0.0
      %v1163 = vadd.f32 %v1147, 0.0
      %v1164 = vadd.f32 %v1148, 0.0
      %v1165 = vadd.f32 %v1149, 0.0
      %v1166 = vadd.f32 %v1150, 0.0
      %v1167 = vadd.f32 %v1151, 0.0
      %v1168 = vadd.f32 %v1152, 0.0
      %v1169 = vld [vmem:[%s1115 + $0x1] sm:$0xff]
      %v1170 = vld [vmem:[%s1115 + $0x9] sm:$0xff]
      %v1171 = vld [vmem:[%s1115 + $0x19] sm:$0xff]
      %v1172 = vld [vmem:[%s1115 + $0x21] sm:$0xff]
      %v1173 = vld [vmem:[%s1115 + $0x31] sm:$0xff]
      %v1174 = vld [vmem:[%s1115 + $0x39] sm:$0xff]
      %v1175 = vld [vmem:[%s1115 + $0x49] sm:$0xff]
      %v1176 = vld [vmem:[%s1115 + $0x51] sm:$0xff]
      %v1177 = vld [vmem:[%s1115 + $0x61] sm:$0xff]
      %v1178 = vld [vmem:[%s1115 + $0x69] sm:$0xff]
      %v1179 = vld [vmem:[%s1115 + $0x79] sm:$0xff]
      %v1180 = vld [vmem:[%s1115 + $0x81] sm:$0xff]
      %v1181 = vld [vmem:[%s1115 + $0x91] sm:$0xff]
      %v1182 = vld [vmem:[%s1115 + $0x99] sm:$0xff]
      %v1183 = vld [vmem:[%s1115 + $0xa9] sm:$0xff]
      %v1184 = vld [vmem:[%s1115 + $0xb1] sm:$0xff]
      %v1185 = vld [vmem:[%s3 + $0x1] sm:$0x1]
      %v1186 = vlaneseq
      %v1187 = vshrl.u32 %v1186, 7
      %v1188 = vsub.s32 0, %v1187
      %v1189 = vrot.slane %v1185, %v1188
      %v1190 = vmul.f32 %v1169, %v1189
      %v1191 = vmul.f32 %v1170, %v1189
      %v1192 = vmul.f32 %v1171, %v1189
      %v1193 = vmul.f32 %v1172, %v1189
      %v1194 = vmul.f32 %v1173, %v1189
      %v1195 = vmul.f32 %v1174, %v1189
      %v1196 = vmul.f32 %v1175, %v1189
      %v1197 = vmul.f32 %v1176, %v1189
      %v1198 = vmul.f32 %v1177, %v1189
      %v1199 = vmul.f32 %v1178, %v1189
      %v1200 = vmul.f32 %v1179, %v1189
      %v1201 = vmul.f32 %v1180, %v1189
      %v1202 = vmul.f32 %v1181, %v1189
      %v1203 = vmul.f32 %v1182, %v1189
      %v1204 = vmul.f32 %v1183, %v1189
      %v1205 = vmul.f32 %v1184, %v1189
      %v1206 = vadd.f32 %v1153, %v1190
      %v1207 = vadd.f32 %v1154, %v1191
      %v1208 = vadd.f32 %v1155, %v1192
      %v1209 = vadd.f32 %v1156, %v1193
      %v1210 = vadd.f32 %v1157, %v1194
      %v1211 = vadd.f32 %v1158, %v1195
      %v1212 = vadd.f32 %v1159, %v1196
      %v1213 = vadd.f32 %v1160, %v1197
      %v1214 = vadd.f32 %v1161, %v1198
      %v1215 = vadd.f32 %v1162, %v1199
      %v1216 = vadd.f32 %v1163, %v1200
      %v1217 = vadd.f32 %v1164, %v1201
      %v1218 = vadd.f32 %v1165, %v1202
      %v1219 = vadd.f32 %v1166, %v1203
      %v1220 = vadd.f32 %v1167, %v1204
      %v1221 = vadd.f32 %v1168, %v1205
      %v1222 = vld [vmem:[%s1115 + $0x2] sm:$0xff]
      %v1223 = vld [vmem:[%s1115 + $0xa] sm:$0xff]
      %v1224 = vld [vmem:[%s1115 + $0x1a] sm:$0xff]
      %v1225 = vld [vmem:[%s1115 + $0x22] sm:$0xff]
      %v1226 = vld [vmem:[%s1115 + $0x32] sm:$0xff]
      %v1227 = vld [vmem:[%s1115 + $0x3a] sm:$0xff]
      %v1228 = vld [vmem:[%s1115 + $0x4a] sm:$0xff]
      %v1229 = vld [vmem:[%s1115 + $0x52] sm:$0xff]
      %v1230 = vld [vmem:[%s1115 + $0x62] sm:$0xff]
      %v1231 = vld [vmem:[%s1115 + $0x6a] sm:$0xff]
      %v1232 = vld [vmem:[%s1115 + $0x7a] sm:$0xff]
      %v1233 = vld [vmem:[%s1115 + $0x82] sm:$0xff]
      %v1234 = vld [vmem:[%s1115 + $0x92] sm:$0xff]
      %v1235 = vld [vmem:[%s1115 + $0x9a] sm:$0xff]
      %v1236 = vld [vmem:[%s1115 + $0xaa] sm:$0xff]
      %v1237 = vld [vmem:[%s1115 + $0xb2] sm:$0xff]
      %v1238 = vld [vmem:[%s3 + $0x2] sm:$0x1]
      %v1239 = vlaneseq
      %v1240 = vshrl.u32 %v1239, 7
      %v1241 = vsub.s32 0, %v1240
      %v1242 = vrot.slane %v1238, %v1241
      %v1243 = vmul.f32 %v1222, %v1242
      %v1244 = vmul.f32 %v1223, %v1242
      %v1245 = vmul.f32 %v1224, %v1242
      %v1246 = vmul.f32 %v1225, %v1242
      %v1247 = vmul.f32 %v1226, %v1242
      %v1248 = vmul.f32 %v1227, %v1242
      %v1249 = vmul.f32 %v1228, %v1242
      %v1250 = vmul.f32 %v1229, %v1242
      %v1251 = vmul.f32 %v1230, %v1242
      %v1252 = vmul.f32 %v1231, %v1242
      %v1253 = vmul.f32 %v1232, %v1242
      %v1254 = vmul.f32 %v1233, %v1242
      %v1255 = vmul.f32 %v1234, %v1242
      %v1256 = vmul.f32 %v1235, %v1242
      %v1257 = vmul.f32 %v1236, %v1242
      %v1258 = vmul.f32 %v1237, %v1242
      %v1259 = vadd.f32 %v1206, %v1243
      %v1260 = vadd.f32 %v1207, %v1244
      %v1261 = vadd.f32 %v1208, %v1245
      %v1262 = vadd.f32 %v1209, %v1246
      %v1263 = vadd.f32 %v1210, %v1247
      %v1264 = vadd.f32 %v1211, %v1248
      %v1265 = vadd.f32 %v1212, %v1249
      %v1266 = vadd.f32 %v1213, %v1250
      %v1267 = vadd.f32 %v1214, %v1251
      %v1268 = vadd.f32 %v1215, %v1252
      %v1269 = vadd.f32 %v1216, %v1253
      %v1270 = vadd.f32 %v1217, %v1254
      %v1271 = vadd.f32 %v1218, %v1255
      %v1272 = vadd.f32 %v1219, %v1256
      %v1273 = vadd.f32 %v1220, %v1257
      %v1274 = vadd.f32 %v1221, %v1258
      %v1275 = vld [vmem:[%s779] sm:$0xff]
      %v1276 = vld [vmem:[%s779 + $0x8] sm:$0xff]
      %v1277 = vld [vmem:[%s779 + $0x18] sm:$0xff]
      %v1278 = vld [vmem:[%s779 + $0x20] sm:$0xff]
      %v1279 = vld [vmem:[%s779 + $0x30] sm:$0xff]
      %v1280 = vld [vmem:[%s779 + $0x38] sm:$0xff]
      %v1281 = vld [vmem:[%s779 + $0x48] sm:$0xff]
      %v1282 = vld [vmem:[%s779 + $0x50] sm:$0xff]
      %v1283 = vld [vmem:[%s779 + $0x60] sm:$0xff]
      %v1284 = vld [vmem:[%s779 + $0x68] sm:$0xff]
      %v1285 = vld [vmem:[%s779 + $0x78] sm:$0xff]
      %v1286 = vld [vmem:[%s779 + $0x80] sm:$0xff]
      %v1287 = vld [vmem:[%s779 + $0x90] sm:$0xff]
      %v1288 = vld [vmem:[%s779 + $0x98] sm:$0xff]
      %v1289 = vld [vmem:[%s779 + $0xa8] sm:$0xff]
      %v1290 = vld [vmem:[%s779 + $0xb0] sm:$0xff]
      %s1291 = scalar_lea.vmem %s3, 4
      %v1292 = vld [vmem:[%s1291] sm:$0x1]
      %v1293 = vlaneseq
      %v1294 = vshrl.u32 %v1293, 7
      %v1295 = vsub.s32 0, %v1294
      %v1296 = vrot.slane %v1292, %v1295
      %v1297 = vmul.f32 %v1275, %v1296
      %v1298 = vmul.f32 %v1276, %v1296
      %v1299 = vmul.f32 %v1277, %v1296
      %v1300 = vmul.f32 %v1278, %v1296
      %v1301 = vmul.f32 %v1279, %v1296
      %v1302 = vmul.f32 %v1280, %v1296
      %v1303 = vmul.f32 %v1281, %v1296
      %v1304 = vmul.f32 %v1282, %v1296
      %v1305 = vmul.f32 %v1283, %v1296
      %v1306 = vmul.f32 %v1284, %v1296
      %v1307 = vmul.f32 %v1285, %v1296
      %v1308 = vmul.f32 %v1286, %v1296
      %v1309 = vmul.f32 %v1287, %v1296
      %v1310 = vmul.f32 %v1288, %v1296
      %v1311 = vmul.f32 %v1289, %v1296
      %v1312 = vmul.f32 %v1290, %v1296
      %v1313 = vadd.f32 %v1259, %v1297
      %v1314 = vadd.f32 %v1260, %v1298
      %v1315 = vadd.f32 %v1261, %v1299
      %v1316 = vadd.f32 %v1262, %v1300
      %v1317 = vadd.f32 %v1263, %v1301
      %v1318 = vadd.f32 %v1264, %v1302
      %v1319 = vadd.f32 %v1265, %v1303
      %v1320 = vadd.f32 %v1266, %v1304
      %v1321 = vadd.f32 %v1267, %v1305
      %v1322 = vadd.f32 %v1268, %v1306
      %v1323 = vadd.f32 %v1269, %v1307
      %v1324 = vadd.f32 %v1270, %v1308
      %v1325 = vadd.f32 %v1271, %v1309
      %v1326 = vadd.f32 %v1272, %v1310
      %v1327 = vadd.f32 %v1273, %v1311
      %v1328 = vadd.f32 %v1274, %v1312
      %v1329 = vld [vmem:[%s779 + $0x1] sm:$0xff]
      %v1330 = vld [vmem:[%s779 + $0x9] sm:$0xff]
      %v1331 = vld [vmem:[%s779 + $0x19] sm:$0xff]
      %v1332 = vld [vmem:[%s779 + $0x21] sm:$0xff]
      %v1333 = vld [vmem:[%s779 + $0x31] sm:$0xff]
      %v1334 = vld [vmem:[%s779 + $0x39] sm:$0xff]
      %v1335 = vld [vmem:[%s779 + $0x49] sm:$0xff]
      %v1336 = vld [vmem:[%s779 + $0x51] sm:$0xff]
      %v1337 = vld [vmem:[%s779 + $0x61] sm:$0xff]
      %v1338 = vld [vmem:[%s779 + $0x69] sm:$0xff]
      %v1339 = vld [vmem:[%s779 + $0x79] sm:$0xff]
      %v1340 = vld [vmem:[%s779 + $0x81] sm:$0xff]
      %v1341 = vld [vmem:[%s779 + $0x91] sm:$0xff]
      %v1342 = vld [vmem:[%s779 + $0x99] sm:$0xff]
      %v1343 = vld [vmem:[%s779 + $0xa9] sm:$0xff]
      %v1344 = vld [vmem:[%s779 + $0xb1] sm:$0xff]
      %v1345 = vld [vmem:[%s1291 + $0x1] sm:$0x1]
      %v1346 = vlaneseq
      %v1347 = vshrl.u32 %v1346, 7
      %v1348 = vsub.s32 0, %v1347
      %v1349 = vrot.slane %v1345, %v1348
      %v1350 = vmul.f32 %v1329, %v1349
      %v1351 = vmul.f32 %v1330, %v1349
      %v1352 = vmul.f32 %v1331, %v1349
      %v1353 = vmul.f32 %v1332, %v1349
      %v1354 = vmul.f32 %v1333, %v1349
      %v1355 = vmul.f32 %v1334, %v1349
      %v1356 = vmul.f32 %v1335, %v1349
      %v1357 = vmul.f32 %v1336, %v1349
      %v1358 = vmul.f32 %v1337, %v1349
      %v1359 = vmul.f32 %v1338, %v1349
      %v1360 = vmul.f32 %v1339, %v1349
      %v1361 = vmul.f32 %v1340, %v1349
      %v1362 = vmul.f32 %v1341, %v1349
      %v1363 = vmul.f32 %v1342, %v1349
      %v1364 = vmul.f32 %v1343, %v1349
      %v1365 = vmul.f32 %v1344, %v1349
      %v1366 = vadd.f32 %v1313, %v1350
      %v1367 = vadd.f32 %v1314, %v1351
      %v1368 = vadd.f32 %v1315, %v1352
      %v1369 = vadd.f32 %v1316, %v1353
      %v1370 = vadd.f32 %v1317, %v1354
      %v1371 = vadd.f32 %v1318, %v1355
      %v1372 = vadd.f32 %v1319, %v1356
      %v1373 = vadd.f32 %v1320, %v1357
      %v1374 = vadd.f32 %v1321, %v1358
      %v1375 = vadd.f32 %v1322, %v1359
      %v1376 = vadd.f32 %v1323, %v1360
      %v1377 = vadd.f32 %v1324, %v1361
      %v1378 = vadd.f32 %v1325, %v1362
      %v1379 = vadd.f32 %v1326, %v1363
      %v1380 = vadd.f32 %v1327, %v1364
      %v1381 = vadd.f32 %v1328, %v1365
      %v1382 = vld [vmem:[%s779 + $0x2] sm:$0xff]
      %v1383 = vld [vmem:[%s779 + $0xa] sm:$0xff]
      %v1384 = vld [vmem:[%s779 + $0x1a] sm:$0xff]
      %v1385 = vld [vmem:[%s779 + $0x22] sm:$0xff]
      %v1386 = vld [vmem:[%s779 + $0x32] sm:$0xff]
      %v1387 = vld [vmem:[%s779 + $0x3a] sm:$0xff]
      %v1388 = vld [vmem:[%s779 + $0x4a] sm:$0xff]
      %v1389 = vld [vmem:[%s779 + $0x52] sm:$0xff]
      %v1390 = vld [vmem:[%s779 + $0x62] sm:$0xff]
      %v1391 = vld [vmem:[%s779 + $0x6a] sm:$0xff]
      %v1392 = vld [vmem:[%s779 + $0x7a] sm:$0xff]
      %v1393 = vld [vmem:[%s779 + $0x82] sm:$0xff]
      %v1394 = vld [vmem:[%s779 + $0x92] sm:$0xff]
      %v1395 = vld [vmem:[%s779 + $0x9a] sm:$0xff]
      %v1396 = vld [vmem:[%s779 + $0xaa] sm:$0xff]
      %v1397 = vld [vmem:[%s779 + $0xb2] sm:$0xff]
      %v1398 = vld [vmem:[%s1291 + $0x2] sm:$0x1]
      %v1399 = vlaneseq
      %v1400 = vshrl.u32 %v1399, 7
      %v1401 = vsub.s32 0, %v1400
      %v1402 = vrot.slane %v1398, %v1401
      %v1403 = vmul.f32 %v1382, %v1402
      %v1404 = vmul.f32 %v1383, %v1402
      %v1405 = vmul.f32 %v1384, %v1402
      %v1406 = vmul.f32 %v1385, %v1402
      %v1407 = vmul.f32 %v1386, %v1402
      %v1408 = vmul.f32 %v1387, %v1402
      %v1409 = vmul.f32 %v1388, %v1402
      %v1410 = vmul.f32 %v1389, %v1402
      %v1411 = vmul.f32 %v1390, %v1402
      %v1412 = vmul.f32 %v1391, %v1402
      %v1413 = vmul.f32 %v1392, %v1402
      %v1414 = vmul.f32 %v1393, %v1402
      %v1415 = vmul.f32 %v1394, %v1402
      %v1416 = vmul.f32 %v1395, %v1402
      %v1417 = vmul.f32 %v1396, %v1402
      %v1418 = vmul.f32 %v1397, %v1402
      %v1419 = vadd.f32 %v1366, %v1403
      %v1420 = vadd.f32 %v1367, %v1404
      %v1421 = vadd.f32 %v1368, %v1405
      %v1422 = vadd.f32 %v1369, %v1406
      %v1423 = vadd.f32 %v1370, %v1407
      %v1424 = vadd.f32 %v1371, %v1408
      %v1425 = vadd.f32 %v1372, %v1409
      %v1426 = vadd.f32 %v1373, %v1410
      %v1427 = vadd.f32 %v1374, %v1411
      %v1428 = vadd.f32 %v1375, %v1412
      %v1429 = vadd.f32 %v1376, %v1413
      %v1430 = vadd.f32 %v1377, %v1414
      %v1431 = vadd.f32 %v1378, %v1415
      %v1432 = vadd.f32 %v1379, %v1416
      %v1433 = vadd.f32 %v1380, %v1417
      %v1434 = vadd.f32 %v1381, %v1418
      %s1435 = sadd.s32 0, 2
      %s1436 = smul.u32 %s1435, 24
      %s1437 = scalar_lea.vmem [#allocation2], %s1436
      %v1438 = vld [vmem:[%s1437] sm:$0xff]
      %v1439 = vld [vmem:[%s1437 + $0x8] sm:$0xff]
      %v1440 = vld [vmem:[%s1437 + $0x18] sm:$0xff]
      %v1441 = vld [vmem:[%s1437 + $0x20] sm:$0xff]
      %v1442 = vld [vmem:[%s1437 + $0x30] sm:$0xff]
      %v1443 = vld [vmem:[%s1437 + $0x38] sm:$0xff]
      %v1444 = vld [vmem:[%s1437 + $0x48] sm:$0xff]
      %v1445 = vld [vmem:[%s1437 + $0x50] sm:$0xff]
      %v1446 = vld [vmem:[%s1437 + $0x60] sm:$0xff]
      %v1447 = vld [vmem:[%s1437 + $0x68] sm:$0xff]
      %v1448 = vld [vmem:[%s1437 + $0x78] sm:$0xff]
      %v1449 = vld [vmem:[%s1437 + $0x80] sm:$0xff]
      %v1450 = vld [vmem:[%s1437 + $0x90] sm:$0xff]
      %v1451 = vld [vmem:[%s1437 + $0x98] sm:$0xff]
      %v1452 = vld [vmem:[%s1437 + $0xa8] sm:$0xff]
      %v1453 = vld [vmem:[%s1437 + $0xb0] sm:$0xff]
      %s1454 = scalar_lea.vmem %s3, 8
      %v1455 = vld [vmem:[%s1454] sm:$0x1]
      %v1456 = vlaneseq
      %v1457 = vshrl.u32 %v1456, 7
      %v1458 = vsub.s32 0, %v1457
      %v1459 = vrot.slane %v1455, %v1458
      %v1460 = vmul.f32 %v1438, %v1459
      %v1461 = vmul.f32 %v1439, %v1459
      %v1462 = vmul.f32 %v1440, %v1459
      %v1463 = vmul.f32 %v1441, %v1459
      %v1464 = vmul.f32 %v1442, %v1459
      %v1465 = vmul.f32 %v1443, %v1459
      %v1466 = vmul.f32 %v1444, %v1459
      %v1467 = vmul.f32 %v1445, %v1459
      %v1468 = vmul.f32 %v1446, %v1459
      %v1469 = vmul.f32 %v1447, %v1459
      %v1470 = vmul.f32 %v1448, %v1459
      %v1471 = vmul.f32 %v1449, %v1459
      %v1472 = vmul.f32 %v1450, %v1459
      %v1473 = vmul.f32 %v1451, %v1459
      %v1474 = vmul.f32 %v1452, %v1459
      %v1475 = vmul.f32 %v1453, %v1459
      %v1476 = vadd.f32 %v1419, %v1460
      %v1477 = vadd.f32 %v1420, %v1461
      %v1478 = vadd.f32 %v1421, %v1462
      %v1479 = vadd.f32 %v1422, %v1463
      %v1480 = vadd.f32 %v1423, %v1464
      %v1481 = vadd.f32 %v1424, %v1465
      %v1482 = vadd.f32 %v1425, %v1466
      %v1483 = vadd.f32 %v1426, %v1467
      %v1484 = vadd.f32 %v1427, %v1468
      %v1485 = vadd.f32 %v1428, %v1469
      %v1486 = vadd.f32 %v1429, %v1470
      %v1487 = vadd.f32 %v1430, %v1471
      %v1488 = vadd.f32 %v1431, %v1472
      %v1489 = vadd.f32 %v1432, %v1473
      %v1490 = vadd.f32 %v1433, %v1474
      %v1491 = vadd.f32 %v1434, %v1475
      %v1492 = vld [vmem:[%s1437 + $0x1] sm:$0xff]
      %v1493 = vld [vmem:[%s1437 + $0x9] sm:$0xff]
      %v1494 = vld [vmem:[%s1437 + $0x19] sm:$0xff]
      %v1495 = vld [vmem:[%s1437 + $0x21] sm:$0xff]
      %v1496 = vld [vmem:[%s1437 + $0x31] sm:$0xff]
      %v1497 = vld [vmem:[%s1437 + $0x39] sm:$0xff]
      %v1498 = vld [vmem:[%s1437 + $0x49] sm:$0xff]
      %v1499 = vld [vmem:[%s1437 + $0x51] sm:$0xff]
      %v1500 = vld [vmem:[%s1437 + $0x61] sm:$0xff]
      %v1501 = vld [vmem:[%s1437 + $0x69] sm:$0xff]
      %v1502 = vld [vmem:[%s1437 + $0x79] sm:$0xff]
      %v1503 = vld [vmem:[%s1437 + $0x81] sm:$0xff]
      %v1504 = vld [vmem:[%s1437 + $0x91] sm:$0xff]
      %v1505 = vld [vmem:[%s1437 + $0x99] sm:$0xff]
      %v1506 = vld [vmem:[%s1437 + $0xa9] sm:$0xff]
      %v1507 = vld [vmem:[%s1437 + $0xb1] sm:$0xff]
      %v1508 = vld [vmem:[%s1454 + $0x1] sm:$0x1]
      %v1509 = vlaneseq
      %v1510 = vshrl.u32 %v1509, 7
      %v1511 = vsub.s32 0, %v1510
      %v1512 = vrot.slane %v1508, %v1511
      %v1513 = vmul.f32 %v1492, %v1512
      %v1514 = vmul.f32 %v1493, %v1512
      %v1515 = vmul.f32 %v1494, %v1512
      %v1516 = vmul.f32 %v1495, %v1512
      %v1517 = vmul.f32 %v1496, %v1512
      %v1518 = vmul.f32 %v1497, %v1512
      %v1519 = vmul.f32 %v1498, %v1512
      %v1520 = vmul.f32 %v1499, %v1512
      %v1521 = vmul.f32 %v1500, %v1512
      %v1522 = vmul.f32 %v1501, %v1512
      %v1523 = vmul.f32 %v1502, %v1512
      %v1524 = vmul.f32 %v1503, %v1512
      %v1525 = vmul.f32 %v1504, %v1512
      %v1526 = vmul.f32 %v1505, %v1512
      %v1527 = vmul.f32 %v1506, %v1512
      %v1528 = vmul.f32 %v1507, %v1512
      %v1529 = vadd.f32 %v1476, %v1513
      %v1530 = vadd.f32 %v1477, %v1514
      %v1531 = vadd.f32 %v1478, %v1515
      %v1532 = vadd.f32 %v1479, %v1516
      %v1533 = vadd.f32 %v1480, %v1517
      %v1534 = vadd.f32 %v1481, %v1518
      %v1535 = vadd.f32 %v1482, %v1519
      %v1536 = vadd.f32 %v1483, %v1520
      %v1537 = vadd.f32 %v1484, %v1521
      %v1538 = vadd.f32 %v1485, %v1522
      %v1539 = vadd.f32 %v1486, %v1523
      %v1540 = vadd.f32 %v1487, %v1524
      %v1541 = vadd.f32 %v1488, %v1525
      %v1542 = vadd.f32 %v1489, %v1526
      %v1543 = vadd.f32 %v1490, %v1527
      %v1544 = vadd.f32 %v1491, %v1528
      %v1545 = vld [vmem:[%s1437 + $0x2] sm:$0xff]
      %v1546 = vld [vmem:[%s1437 + $0xa] sm:$0xff]
      %v1547 = vld [vmem:[%s1437 + $0x1a] sm:$0xff]
      %v1548 = vld [vmem:[%s1437 + $0x22] sm:$0xff]
      %v1549 = vld [vmem:[%s1437 + $0x32] sm:$0xff]
      %v1550 = vld [vmem:[%s1437 + $0x3a] sm:$0xff]
      %v1551 = vld [vmem:[%s1437 + $0x4a] sm:$0xff]
      %v1552 = vld [vmem:[%s1437 + $0x52] sm:$0xff]
      %v1553 = vld [vmem:[%s1437 + $0x62] sm:$0xff]
      %v1554 = vld [vmem:[%s1437 + $0x6a] sm:$0xff]
      %v1555 = vld [vmem:[%s1437 + $0x7a] sm:$0xff]
      %v1556 = vld [vmem:[%s1437 + $0x82] sm:$0xff]
      %v1557 = vld [vmem:[%s1437 + $0x92] sm:$0xff]
      %v1558 = vld [vmem:[%s1437 + $0x9a] sm:$0xff]
      %v1559 = vld [vmem:[%s1437 + $0xaa] sm:$0xff]
      %v1560 = vld [vmem:[%s1437 + $0xb2] sm:$0xff]
      %v1561 = vld [vmem:[%s1454 + $0x2] sm:$0x1]
      %v1562 = vlaneseq
      %v1563 = vshrl.u32 %v1562, 7
      %v1564 = vsub.s32 0, %v1563
      %v1565 = vrot.slane %v1561, %v1564
      %v1566 = vmul.f32 %v1545, %v1565
      %v1567 = vmul.f32 %v1546, %v1565
      %v1568 = vmul.f32 %v1547, %v1565
      %v1569 = vmul.f32 %v1548, %v1565
      %v1570 = vmul.f32 %v1549, %v1565
      %v1571 = vmul.f32 %v1550, %v1565
      %v1572 = vmul.f32 %v1551, %v1565
      %v1573 = vmul.f32 %v1552, %v1565
      %v1574 = vmul.f32 %v1553, %v1565
      %v1575 = vmul.f32 %v1554, %v1565
      %v1576 = vmul.f32 %v1555, %v1565
      %v1577 = vmul.f32 %v1556, %v1565
      %v1578 = vmul.f32 %v1557, %v1565
      %v1579 = vmul.f32 %v1558, %v1565
      %v1580 = vmul.f32 %v1559, %v1565
      %v1581 = vmul.f32 %v1560, %v1565
      %v1582 = vadd.f32 %v1529, %v1566
      %v1583 = vadd.f32 %v1530, %v1567
      %v1584 = vadd.f32 %v1531, %v1568
      %v1585 = vadd.f32 %v1532, %v1569
      %v1586 = vadd.f32 %v1533, %v1570
      %v1587 = vadd.f32 %v1534, %v1571
      %v1588 = vadd.f32 %v1535, %v1572
      %v1589 = vadd.f32 %v1536, %v1573
      %v1590 = vadd.f32 %v1537, %v1574
      %v1591 = vadd.f32 %v1538, %v1575
      %v1592 = vadd.f32 %v1539, %v1576
      %v1593 = vadd.f32 %v1540, %v1577
      %v1594 = vadd.f32 %v1541, %v1578
      %v1595 = vadd.f32 %v1542, %v1579
      %v1596 = vadd.f32 %v1543, %v1580
      %v1597 = vadd.f32 %v1544, %v1581
      %v1598 = vld [vmem:[%s4] sm:$0x1]
      %v1600 = vlaneseq
      %v1601 = vshrl.u32 %v1600, 7
      %v1602 = vsub.s32 0, %v1601
      %v1603 = vrot.slane %v1598, %v1602
      %v1605 = vadd.f32 %v1582, %v1603
      %v1606 = vadd.f32 %v1583, %v1603
      %v1607 = vadd.f32 %v1584, %v1603
      %v1608 = vadd.f32 %v1585, %v1603
      %v1609 = vadd.f32 %v1586, %v1603
      %v1610 = vadd.f32 %v1587, %v1603
      %v1611 = vadd.f32 %v1588, %v1603
      %v1612 = vadd.f32 %v1589, %v1603
      %v1613 = vadd.f32 %v1590, %v1603
      %v1614 = vadd.f32 %v1591, %v1603
      %v1615 = vadd.f32 %v1592, %v1603
      %v1616 = vadd.f32 %v1593, %v1603
      %v1617 = vadd.f32 %v1594, %v1603
      %v1618 = vadd.f32 %v1595, %v1603
      %v1619 = vadd.f32 %v1596, %v1603
      %v1620 = vadd.f32 %v1597, %v1603
      %v1621 = vadd.f32 %v1605, 3.0
      %v1622 = vadd.f32 %v1606, 3.0
      %v1623 = vadd.f32 %v1607, 3.0
      %v1624 = vadd.f32 %v1608, 3.0
      %v1625 = vadd.f32 %v1609, 3.0
      %v1626 = vadd.f32 %v1610, 3.0
      %v1627 = vadd.f32 %v1611, 3.0
      %v1628 = vadd.f32 %v1612, 3.0
      %v1629 = vadd.f32 %v1613, 3.0
      %v1630 = vadd.f32 %v1614, 3.0
      %v1631 = vadd.f32 %v1615, 3.0
      %v1632 = vadd.f32 %v1616, 3.0
      %v1633 = vadd.f32 %v1617, 3.0
      %v1634 = vadd.f32 %v1618, 3.0
      %v1635 = vadd.f32 %v1619, 3.0
      %v1636 = vadd.f32 %v1620, 3.0
      %v1637 = vmax.f32 %v1621, 0.0
      %v1638 = vmax.f32 %v1622, 0.0
      %v1639 = vmax.f32 %v1623, 0.0
      %v1640 = vmax.f32 %v1624, 0.0
      %v1641 = vmax.f32 %v1625, 0.0
      %v1642 = vmax.f32 %v1626, 0.0
      %v1643 = vmax.f32 %v1627, 0.0
      %v1644 = vmax.f32 %v1628, 0.0
      %v1645 = vmax.f32 %v1629, 0.0
      %v1646 = vmax.f32 %v1630, 0.0
      %v1647 = vmax.f32 %v1631, 0.0
      %v1648 = vmax.f32 %v1632, 0.0
      %v1649 = vmax.f32 %v1633, 0.0
      %v1650 = vmax.f32 %v1634, 0.0
      %v1651 = vmax.f32 %v1635, 0.0
      %v1652 = vmax.f32 %v1636, 0.0
      %v1653 = vmin.f32 %v1637, 6.0
      %v1654 = vmin.f32 %v1638, 6.0
      %v1655 = vmin.f32 %v1639, 6.0
      %v1656 = vmin.f32 %v1640, 6.0
      %v1657 = vmin.f32 %v1641, 6.0
      %v1658 = vmin.f32 %v1642, 6.0
      %v1659 = vmin.f32 %v1643, 6.0
      %v1660 = vmin.f32 %v1644, 6.0
      %v1661 = vmin.f32 %v1645, 6.0
      %v1662 = vmin.f32 %v1646, 6.0
      %v1663 = vmin.f32 %v1647, 6.0
      %v1664 = vmin.f32 %v1648, 6.0
      %v1665 = vmin.f32 %v1649, 6.0
      %v1666 = vmin.f32 %v1650, 6.0
      %v1667 = vmin.f32 %v1651, 6.0
      %v1668 = vmin.f32 %v1652, 6.0
      %v1669 = vmul.f32 %v1605, %v1653
      %v1670 = vmul.f32 %v1606, %v1654
      %v1671 = vmul.f32 %v1607, %v1655
      %v1672 = vmul.f32 %v1608, %v1656
      %v1673 = vmul.f32 %v1609, %v1657
      %v1674 = vmul.f32 %v1610, %v1658
      %v1675 = vmul.f32 %v1611, %v1659
      %v1676 = vmul.f32 %v1612, %v1660
      %v1677 = vmul.f32 %v1613, %v1661
      %v1678 = vmul.f32 %v1614, %v1662
      %v1679 = vmul.f32 %v1615, %v1663
      %v1680 = vmul.f32 %v1616, %v1664
      %v1681 = vmul.f32 %v1617, %v1665
      %v1682 = vmul.f32 %v1618, %v1666
      %v1683 = vmul.f32 %v1619, %v1667
      %v1684 = vmul.f32 %v1620, %v1668
      %v1685 = vmul.f32 %v1669, 0.16666667
      %v1686 = vmul.f32 %v1670, 0.16666667
      %v1687 = vmul.f32 %v1671, 0.16666667
      %v1688 = vmul.f32 %v1672, 0.16666667
      %v1689 = vmul.f32 %v1673, 0.16666667
      %v1690 = vmul.f32 %v1674, 0.16666667
      %v1691 = vmul.f32 %v1675, 0.16666667
      %v1692 = vmul.f32 %v1676, 0.16666667
      %v1693 = vmul.f32 %v1677, 0.16666667
      %v1694 = vmul.f32 %v1678, 0.16666667
      %v1695 = vmul.f32 %v1679, 0.16666667
      %v1696 = vmul.f32 %v1680, 0.16666667
      %v1697 = vmul.f32 %v1681, 0.16666667
      %v1698 = vmul.f32 %v1682, 0.16666667
      %v1699 = vmul.f32 %v1683, 0.16666667
      %v1700 = vmul.f32 %v1684, 0.16666667
      %s1701 = scalar_lea.vmem [#allocation3], %s477
      %1702 = vst.msk [vmem:[%s1701] sm:$0xff] %vm434, %v1685
      %1703 = vst.msk [vmem:[%s1701 + $0x8] sm:$0xff] %vm434, %v1686
      %1704 = vst.msk [vmem:[%s1701 + $0x10] sm:$0xff] %vm434, %v1687
      %1705 = vst.msk [vmem:[%s1701 + $0x18] sm:$0xff] %vm434, %v1688
      %1706 = vst.msk [vmem:[%s1701 + $0x20] sm:$0xff] %vm434, %v1689
      %1707 = vst.msk [vmem:[%s1701 + $0x28] sm:$0xff] %vm434, %v1690
      %1708 = vst.msk [vmem:[%s1701 + $0x30] sm:$0xff] %vm434, %v1691
      %1709 = vst.msk [vmem:[%s1701 + $0x38] sm:$0xff] %vm434, %v1692
      %1710 = vst.msk [vmem:[%s1701 + $0x40] sm:$0xff] %vm434, %v1693
      %1711 = vst.msk [vmem:[%s1701 + $0x48] sm:$0xff] %vm434, %v1694
      %1712 = vst.msk [vmem:[%s1701 + $0x50] sm:$0xff] %vm434, %v1695
      %1713 = vst.msk [vmem:[%s1701 + $0x58] sm:$0xff] %vm434, %v1696
      %1714 = vst.msk [vmem:[%s1701 + $0x60] sm:$0xff] %vm434, %v1697
      %1715 = vst.msk [vmem:[%s1701 + $0x68] sm:$0xff] %vm434, %v1698
      %1716 = vst.msk [vmem:[%s1701 + $0x70] sm:$0xff] %vm434, %v1699
      %1717 = vst.msk [vmem:[%s1701 + $0x78] sm:$0xff] %vm434, %v1700
      %v1718 = vsel %vm434, %v1685, 0.0
      %v1719 = vsel %vm434, %v1686, 0.0
      %v1720 = vadd.f32 %v1718, %v1719
      %v1721 = vsel %vm434, %v1687, 0.0
      %v1722 = vadd.f32 %v1720, %v1721
      %v1723 = vsel %vm434, %v1688, 0.0
      %v1724 = vadd.f32 %v1722, %v1723
      %v1725 = vsel %vm434, %v1689, 0.0
      %v1726 = vadd.f32 %v1724, %v1725
      %v1727 = vsel %vm434, %v1690, 0.0
      %v1728 = vadd.f32 %v1726, %v1727
      %v1729 = vsel %vm434, %v1691, 0.0
      %v1730 = vadd.f32 %v1728, %v1729
      %v1731 = vsel %vm434, %v1692, 0.0
      %v1732 = vadd.f32 %v1730, %v1731
      %v1733 = vsel %vm434, %v1693, 0.0
      %v1734 = vadd.f32 %v1732, %v1733
      %v1735 = vsel %vm434, %v1694, 0.0
      %v1736 = vadd.f32 %v1734, %v1735
      %v1737 = vsel %vm434, %v1695, 0.0
      %v1738 = vadd.f32 %v1736, %v1737
      %v1739 = vsel %vm434, %v1696, 0.0
      %v1740 = vadd.f32 %v1738, %v1739
      %v1741 = vsel %vm434, %v1697, 0.0
      %v1742 = vadd.f32 %v1740, %v1741
      %v1743 = vsel %vm434, %v1698, 0.0
      %v1744 = vadd.f32 %v1742, %v1743
      %v1745 = vsel %vm434, %v1699, 0.0
      %v1746 = vadd.f32 %v1744, %v1745
      %v1747 = vsel %vm434, %v1700, 0.0
      %v1748 = vadd.f32 %v1746, %v1747
      %v1749 = vrot.slane %v1748, 4
      %v1750 = vadd.f32 %v1748, %v1749
      %v1751 = vrot.slane %v1750, 2
      %v1752 = vadd.f32 %v1750, %v1751
      %v1753 = vrot.slane %v1752, 1
      %v1754 = vadd.f32 %v1752, %v1753
      %v1755 = vadd.f32 %v1754, 0.0
      %s1756 = smul.u32 8, 24
      %s1757 = scalar_lea.vmem [#allocation2], %s1756
      %v1758 = vld [vmem:[%s1757] sm:$0xff]
      %v1759 = vld [vmem:[%s1757 + $0x8] sm:$0xff]
      %v1760 = vld [vmem:[%s1757 + $0x18] sm:$0xff]
      %v1761 = vld [vmem:[%s1757 + $0x20] sm:$0xff]
      %v1762 = vld [vmem:[%s1757 + $0x30] sm:$0xff]
      %v1763 = vld [vmem:[%s1757 + $0x38] sm:$0xff]
      %v1764 = vld [vmem:[%s1757 + $0x48] sm:$0xff]
      %v1765 = vld [vmem:[%s1757 + $0x50] sm:$0xff]
      %v1766 = vld [vmem:[%s1757 + $0x60] sm:$0xff]
      %v1767 = vld [vmem:[%s1757 + $0x68] sm:$0xff]
      %v1768 = vld [vmem:[%s1757 + $0x78] sm:$0xff]
      %v1769 = vld [vmem:[%s1757 + $0x80] sm:$0xff]
      %v1770 = vld [vmem:[%s1757 + $0x90] sm:$0xff]
      %v1771 = vld [vmem:[%s1757 + $0x98] sm:$0xff]
      %v1772 = vld [vmem:[%s1757 + $0xa8] sm:$0xff]
      %v1773 = vld [vmem:[%s1757 + $0xb0] sm:$0xff]
      %v1774 = vld [vmem:[%s3] sm:$0x1]
      %v1775 = vlaneseq
      %v1776 = vshrl.u32 %v1775, 7
      %v1777 = vsub.s32 0, %v1776
      %v1778 = vrot.slane %v1774, %v1777
      %v1779 = vmul.f32 %v1758, %v1778
      %v1780 = vmul.f32 %v1759, %v1778
      %v1781 = vmul.f32 %v1760, %v1778
      %v1782 = vmul.f32 %v1761, %v1778
      %v1783 = vmul.f32 %v1762, %v1778
      %v1784 = vmul.f32 %v1763, %v1778
      %v1785 = vmul.f32 %v1764, %v1778
      %v1786 = vmul.f32 %v1765, %v1778
      %v1787 = vmul.f32 %v1766, %v1778
      %v1788 = vmul.f32 %v1767, %v1778
      %v1789 = vmul.f32 %v1768, %v1778
      %v1790 = vmul.f32 %v1769, %v1778
      %v1791 = vmul.f32 %v1770, %v1778
      %v1792 = vmul.f32 %v1771, %v1778
      %v1793 = vmul.f32 %v1772, %v1778
      %v1794 = vmul.f32 %v1773, %v1778
      %v1795 = vadd.f32 %v1779, 0.0
      %v1796 = vadd.f32 %v1780, 0.0
      %v1797 = vadd.f32 %v1781, 0.0
      %v1798 = vadd.f32 %v1782, 0.0
      %v1799 = vadd.f32 %v1783, 0.0
      %v1800 = vadd.f32 %v1784, 0.0
      %v1801 = vadd.f32 %v1785, 0.0
      %v1802 = vadd.f32 %v1786, 0.0
      %v1803 = vadd.f32 %v1787, 0.0
      %v1804 = vadd.f32 %v1788, 0.0
      %v1805 = vadd.f32 %v1789, 0.0
      %v1806 = vadd.f32 %v1790, 0.0
      %v1807 = vadd.f32 %v1791, 0.0
      %v1808 = vadd.f32 %v1792, 0.0
      %v1809 = vadd.f32 %v1793, 0.0
      %v1810 = vadd.f32 %v1794, 0.0
      %v1811 = vld [vmem:[%s1757 + $0x1] sm:$0xff]
      %v1812 = vld [vmem:[%s1757 + $0x9] sm:$0xff]
      %v1813 = vld [vmem:[%s1757 + $0x19] sm:$0xff]
      %v1814 = vld [vmem:[%s1757 + $0x21] sm:$0xff]
      %v1815 = vld [vmem:[%s1757 + $0x31] sm:$0xff]
      %v1816 = vld [vmem:[%s1757 + $0x39] sm:$0xff]
      %v1817 = vld [vmem:[%s1757 + $0x49] sm:$0xff]
      %v1818 = vld [vmem:[%s1757 + $0x51] sm:$0xff]
      %v1819 = vld [vmem:[%s1757 + $0x61] sm:$0xff]
      %v1820 = vld [vmem:[%s1757 + $0x69] sm:$0xff]
      %v1821 = vld [vmem:[%s1757 + $0x79] sm:$0xff]
      %v1822 = vld [vmem:[%s1757 + $0x81] sm:$0xff]
      %v1823 = vld [vmem:[%s1757 + $0x91] sm:$0xff]
      %v1824 = vld [vmem:[%s1757 + $0x99] sm:$0xff]
      %v1825 = vld [vmem:[%s1757 + $0xa9] sm:$0xff]
      %v1826 = vld [vmem:[%s1757 + $0xb1] sm:$0xff]
      %v1827 = vld [vmem:[%s3 + $0x1] sm:$0x1]
      %v1828 = vlaneseq
      %v1829 = vshrl.u32 %v1828, 7
      %v1830 = vsub.s32 0, %v1829
      %v1831 = vrot.slane %v1827, %v1830
      %v1832 = vmul.f32 %v1811, %v1831
      %v1833 = vmul.f32 %v1812, %v1831
      %v1834 = vmul.f32 %v1813, %v1831
      %v1835 = vmul.f32 %v1814, %v1831
      %v1836 = vmul.f32 %v1815, %v1831
      %v1837 = vmul.f32 %v1816, %v1831
      %v1838 = vmul.f32 %v1817, %v1831
      %v1839 = vmul.f32 %v1818, %v1831
      %v1840 = vmul.f32 %v1819, %v1831
      %v1841 = vmul.f32 %v1820, %v1831
      %v1842 = vmul.f32 %v1821, %v1831
      %v1843 = vmul.f32 %v1822, %v1831
      %v1844 = vmul.f32 %v1823, %v1831
      %v1845 = vmul.f32 %v1824, %v1831
      %v1846 = vmul.f32 %v1825, %v1831
      %v1847 = vmul.f32 %v1826, %v1831
      %v1848 = vadd.f32 %v1795, %v1832
      %v1849 = vadd.f32 %v1796, %v1833
      %v1850 = vadd.f32 %v1797, %v1834
      %v1851 = vadd.f32 %v1798, %v1835
      %v1852 = vadd.f32 %v1799, %v1836
      %v1853 = vadd.f32 %v1800, %v1837
      %v1854 = vadd.f32 %v1801, %v1838
      %v1855 = vadd.f32 %v1802, %v1839
      %v1856 = vadd.f32 %v1803, %v1840
      %v1857 = vadd.f32 %v1804, %v1841
      %v1858 = vadd.f32 %v1805, %v1842
      %v1859 = vadd.f32 %v1806, %v1843
      %v1860 = vadd.f32 %v1807, %v1844
      %v1861 = vadd.f32 %v1808, %v1845
      %v1862 = vadd.f32 %v1809, %v1846
      %v1863 = vadd.f32 %v1810, %v1847
      %v1864 = vld [vmem:[%s1757 + $0x2] sm:$0xff]
      %v1865 = vld [vmem:[%s1757 + $0xa] sm:$0xff]
      %v1866 = vld [vmem:[%s1757 + $0x1a] sm:$0xff]
      %v1867 = vld [vmem:[%s1757 + $0x22] sm:$0xff]
      %v1868 = vld [vmem:[%s1757 + $0x32] sm:$0xff]
      %v1869 = vld [vmem:[%s1757 + $0x3a] sm:$0xff]
      %v1870 = vld [vmem:[%s1757 + $0x4a] sm:$0xff]
      %v1871 = vld [vmem:[%s1757 + $0x52] sm:$0xff]
      %v1872 = vld [vmem:[%s1757 + $0x62] sm:$0xff]
      %v1873 = vld [vmem:[%s1757 + $0x6a] sm:$0xff]
      %v1874 = vld [vmem:[%s1757 + $0x7a] sm:$0xff]
      %v1875 = vld [vmem:[%s1757 + $0x82] sm:$0xff]
      %v1876 = vld [vmem:[%s1757 + $0x92] sm:$0xff]
      %v1877 = vld [vmem:[%s1757 + $0x9a] sm:$0xff]
      %v1878 = vld [vmem:[%s1757 + $0xaa] sm:$0xff]
      %v1879 = vld [vmem:[%s1757 + $0xb2] sm:$0xff]
      %v1880 = vld [vmem:[%s3 + $0x2] sm:$0x1]
      %v1881 = vlaneseq
      %v1882 = vshrl.u32 %v1881, 7
      %v1883 = vsub.s32 0, %v1882
      %v1884 = vrot.slane %v1880, %v1883
      %v1885 = vmul.f32 %v1864, %v1884
      %v1886 = vmul.f32 %v1865, %v1884
      %v1887 = vmul.f32 %v1866, %v1884
      %v1888 = vmul.f32 %v1867, %v1884
      %v1889 = vmul.f32 %v1868, %v1884
      %v1890 = vmul.f32 %v1869, %v1884
      %v1891 = vmul.f32 %v1870, %v1884
      %v1892 = vmul.f32 %v1871, %v1884
      %v1893 = vmul.f32 %v1872, %v1884
      %v1894 = vmul.f32 %v1873, %v1884
      %v1895 = vmul.f32 %v1874, %v1884
      %v1896 = vmul.f32 %v1875, %v1884
      %v1897 = vmul.f32 %v1876, %v1884
      %v1898 = vmul.f32 %v1877, %v1884
      %v1899 = vmul.f32 %v1878, %v1884
      %v1900 = vmul.f32 %v1879, %v1884
      %v1901 = vadd.f32 %v1848, %v1885
      %v1902 = vadd.f32 %v1849, %v1886
      %v1903 = vadd.f32 %v1850, %v1887
      %v1904 = vadd.f32 %v1851, %v1888
      %v1905 = vadd.f32 %v1852, %v1889
      %v1906 = vadd.f32 %v1853, %v1890
      %v1907 = vadd.f32 %v1854, %v1891
      %v1908 = vadd.f32 %v1855, %v1892
      %v1909 = vadd.f32 %v1856, %v1893
      %v1910 = vadd.f32 %v1857, %v1894
      %v1911 = vadd.f32 %v1858, %v1895
      %v1912 = vadd.f32 %v1859, %v1896
      %v1913 = vadd.f32 %v1860, %v1897
      %v1914 = vadd.f32 %v1861, %v1898
      %v1915 = vadd.f32 %v1862, %v1899
      %v1916 = vadd.f32 %v1863, %v1900
      %v1917 = vld [vmem:[%s1097] sm:$0xff]
      %v1918 = vld [vmem:[%s1097 + $0x8] sm:$0xff]
      %v1919 = vld [vmem:[%s1097 + $0x18] sm:$0xff]
      %v1920 = vld [vmem:[%s1097 + $0x20] sm:$0xff]
      %v1921 = vld [vmem:[%s1097 + $0x30] sm:$0xff]
      %v1922 = vld [vmem:[%s1097 + $0x38] sm:$0xff]
      %v1923 = vld [vmem:[%s1097 + $0x48] sm:$0xff]
      %v1924 = vld [vmem:[%s1097 + $0x50] sm:$0xff]
      %v1925 = vld [vmem:[%s1097 + $0x60] sm:$0xff]
      %v1926 = vld [vmem:[%s1097 + $0x68] sm:$0xff]
      %v1927 = vld [vmem:[%s1097 + $0x78] sm:$0xff]
      %v1928 = vld [vmem:[%s1097 + $0x80] sm:$0xff]
      %v1929 = vld [vmem:[%s1097 + $0x90] sm:$0xff]
      %v1930 = vld [vmem:[%s1097 + $0x98] sm:$0xff]
      %v1931 = vld [vmem:[%s1097 + $0xa8] sm:$0xff]
      %v1932 = vld [vmem:[%s1097 + $0xb0] sm:$0xff]
      %v1933 = vld [vmem:[%s1291] sm:$0x1]
      %v1934 = vlaneseq
      %v1935 = vshrl.u32 %v1934, 7
      %v1936 = vsub.s32 0, %v1935
      %v1937 = vrot.slane %v1933, %v1936
      %v1938 = vmul.f32 %v1917, %v1937
      %v1939 = vmul.f32 %v1918, %v1937
      %v1940 = vmul.f32 %v1919, %v1937
      %v1941 = vmul.f32 %v1920, %v1937
      %v1942 = vmul.f32 %v1921, %v1937
      %v1943 = vmul.f32 %v1922, %v1937
      %v1944 = vmul.f32 %v1923, %v1937
      %v1945 = vmul.f32 %v1924, %v1937
      %v1946 = vmul.f32 %v1925, %v1937
      %v1947 = vmul.f32 %v1926, %v1937
      %v1948 = vmul.f32 %v1927, %v1937
      %v1949 = vmul.f32 %v1928, %v1937
      %v1950 = vmul.f32 %v1929, %v1937
      %v1951 = vmul.f32 %v1930, %v1937
      %v1952 = vmul.f32 %v1931, %v1937
      %v1953 = vmul.f32 %v1932, %v1937
      %v1954 = vadd.f32 %v1901, %v1938
      %v1955 = vadd.f32 %v1902, %v1939
      %v1956 = vadd.f32 %v1903, %v1940
      %v1957 = vadd.f32 %v1904, %v1941
      %v1958 = vadd.f32 %v1905, %v1942
      %v1959 = vadd.f32 %v1906, %v1943
      %v1960 = vadd.f32 %v1907, %v1944
      %v1961 = vadd.f32 %v1908, %v1945
      %v1962 = vadd.f32 %v1909, %v1946
      %v1963 = vadd.f32 %v1910, %v1947
      %v1964 = vadd.f32 %v1911, %v1948
      %v1965 = vadd.f32 %v1912, %v1949
      %v1966 = vadd.f32 %v1913, %v1950
      %v1967 = vadd.f32 %v1914, %v1951
      %v1968 = vadd.f32 %v1915, %v1952
      %v1969 = vadd.f32 %v1916, %v1953
      %v1970 = vld [vmem:[%s1097 + $0x1] sm:$0xff]
      %v1971 = vld [vmem:[%s1097 + $0x9] sm:$0xff]
      %v1972 = vld [vmem:[%s1097 + $0x19] sm:$0xff]
      %v1973 = vld [vmem:[%s1097 + $0x21] sm:$0xff]
      %v1974 = vld [vmem:[%s1097 + $0x31] sm:$0xff]
      %v1975 = vld [vmem:[%s1097 + $0x39] sm:$0xff]
      %v1976 = vld [vmem:[%s1097 + $0x49] sm:$0xff]
      %v1977 = vld [vmem:[%s1097 + $0x51] sm:$0xff]
      %v1978 = vld [vmem:[%s1097 + $0x61] sm:$0xff]
      %v1979 = vld [vmem:[%s1097 + $0x69] sm:$0xff]
      %v1980 = vld [vmem:[%s1097 + $0x79] sm:$0xff]
      %v1981 = vld [vmem:[%s1097 + $0x81] sm:$0xff]
      %v1982 = vld [vmem:[%s1097 + $0x91] sm:$0xff]
      %v1983 = vld [vmem:[%s1097 + $0x99] sm:$0xff]
      %v1984 = vld [vmem:[%s1097 + $0xa9] sm:$0xff]
      %v1985 = vld [vmem:[%s1097 + $0xb1] sm:$0xff]
      %v1986 = vld [vmem:[%s1291 + $0x1] sm:$0x1]
      %v1987 = vlaneseq
      %v1988 = vshrl.u32 %v1987, 7
      %v1989 = vsub.s32 0, %v1988
      %v1990 = vrot.slane %v1986, %v1989
      %v1991 = vmul.f32 %v1970, %v1990
      %v1992 = vmul.f32 %v1971, %v1990
      %v1993 = vmul.f32 %v1972, %v1990
      %v1994 = vmul.f32 %v1973, %v1990
      %v1995 = vmul.f32 %v1974, %v1990
      %v1996 = vmul.f32 %v1975, %v1990
      %v1997 = vmul.f32 %v1976, %v1990
      %v1998 = vmul.f32 %v1977, %v1990
      %v1999 = vmul.f32 %v1978, %v1990
      %v2000 = vmul.f32 %v1979, %v1990
      %v2001 = vmul.f32 %v1980, %v1990
      %v2002 = vmul.f32 %v1981, %v1990
      %v2003 = vmul.f32 %v1982, %v1990
      %v2004 = vmul.f32 %v1983, %v1990
      %v2005 = vmul.f32 %v1984, %v1990
      %v2006 = vmul.f32 %v1985, %v1990
      %v2007 = vadd.f32 %v1954, %v1991
      %v2008 = vadd.f32 %v1955, %v1992
      %v2009 = vadd.f32 %v1956, %v1993
      %v2010 = vadd.f32 %v1957, %v1994
      %v2011 = vadd.f32 %v1958, %v1995
      %v2012 = vadd.f32 %v1959, %v1996
      %v2013 = vadd.f32 %v1960, %v1997
      %v2014 = vadd.f32 %v1961, %v1998
      %v2015 = vadd.f32 %v1962, %v1999
      %v2016 = vadd.f32 %v1963, %v2000
      %v2017 = vadd.f32 %v1964, %v2001
      %v2018 = vadd.f32 %v1965, %v2002
      %v2019 = vadd.f32 %v1966, %v2003
      %v2020 = vadd.f32 %v1967, %v2004
      %v2021 = vadd.f32 %v1968, %v2005
      %v2022 = vadd.f32 %v1969, %v2006
      %v2023 = vld [vmem:[%s1097 + $0x2] sm:$0xff]
      %v2024 = vld [vmem:[%s1097 + $0xa] sm:$0xff]
      %v2025 = vld [vmem:[%s1097 + $0x1a] sm:$0xff]
      %v2026 = vld [vmem:[%s1097 + $0x22] sm:$0xff]
      %v2027 = vld [vmem:[%s1097 + $0x32] sm:$0xff]
      %v2028 = vld [vmem:[%s1097 + $0x3a] sm:$0xff]
      %v2029 = vld [vmem:[%s1097 + $0x4a] sm:$0xff]
      %v2030 = vld [vmem:[%s1097 + $0x52] sm:$0xff]
      %v2031 = vld [vmem:[%s1097 + $0x62] sm:$0xff]
      %v2032 = vld [vmem:[%s1097 + $0x6a] sm:$0xff]
      %v2033 = vld [vmem:[%s1097 + $0x7a] sm:$0xff]
      %v2034 = vld [vmem:[%s1097 + $0x82] sm:$0xff]
      %v2035 = vld [vmem:[%s1097 + $0x92] sm:$0xff]
      %v2036 = vld [vmem:[%s1097 + $0x9a] sm:$0xff]
      %v2037 = vld [vmem:[%s1097 + $0xaa] sm:$0xff]
      %v2038 = vld [vmem:[%s1097 + $0xb2] sm:$0xff]
      %v2039 = vld [vmem:[%s1291 + $0x2] sm:$0x1]
      %v2040 = vlaneseq
      %v2041 = vshrl.u32 %v2040, 7
      %v2042 = vsub.s32 0, %v2041
      %v2043 = vrot.slane %v2039, %v2042
      %v2044 = vmul.f32 %v2023, %v2043
      %v2045 = vmul.f32 %v2024, %v2043
      %v2046 = vmul.f32 %v2025, %v2043
      %v2047 = vmul.f32 %v2026, %v2043
      %v2048 = vmul.f32 %v2027, %v2043
      %v2049 = vmul.f32 %v2028, %v2043
      %v2050 = vmul.f32 %v2029, %v2043
      %v2051 = vmul.f32 %v2030, %v2043
      %v2052 = vmul.f32 %v2031, %v2043
      %v2053 = vmul.f32 %v2032, %v2043
      %v2054 = vmul.f32 %v2033, %v2043
      %v2055 = vmul.f32 %v2034, %v2043
      %v2056 = vmul.f32 %v2035, %v2043
      %v2057 = vmul.f32 %v2036, %v2043
      %v2058 = vmul.f32 %v2037, %v2043
      %v2059 = vmul.f32 %v2038, %v2043
      %v2060 = vadd.f32 %v2007, %v2044
      %v2061 = vadd.f32 %v2008, %v2045
      %v2062 = vadd.f32 %v2009, %v2046
      %v2063 = vadd.f32 %v2010, %v2047
      %v2064 = vadd.f32 %v2011, %v2048
      %v2065 = vadd.f32 %v2012, %v2049
      %v2066 = vadd.f32 %v2013, %v2050
      %v2067 = vadd.f32 %v2014, %v2051
      %v2068 = vadd.f32 %v2015, %v2052
      %v2069 = vadd.f32 %v2016, %v2053
      %v2070 = vadd.f32 %v2017, %v2054
      %v2071 = vadd.f32 %v2018, %v2055
      %v2072 = vadd.f32 %v2019, %v2056
      %v2073 = vadd.f32 %v2020, %v2057
      %v2074 = vadd.f32 %v2021, %v2058
      %v2075 = vadd.f32 %v2022, %v2059
      %s2076 = sadd.s32 8, 2
      %s2077 = smul.u32 %s2076, 24
      %s2078 = scalar_lea.vmem [#allocation2], %s2077
      %v2079 = vld [vmem:[%s2078] sm:$0xff]
      %v2080 = vld [vmem:[%s2078 + $0x8] sm:$0xff]
      %v2081 = vld [vmem:[%s2078 + $0x18] sm:$0xff]
      %v2082 = vld [vmem:[%s2078 + $0x20] sm:$0xff]
      %v2083 = vld [vmem:[%s2078 + $0x30] sm:$0xff]
      %v2084 = vld [vmem:[%s2078 + $0x38] sm:$0xff]
      %v2085 = vld [vmem:[%s2078 + $0x48] sm:$0xff]
      %v2086 = vld [vmem:[%s2078 + $0x50] sm:$0xff]
      %v2087 = vld [vmem:[%s2078 + $0x60] sm:$0xff]
      %v2088 = vld [vmem:[%s2078 + $0x68] sm:$0xff]
      %v2089 = vld [vmem:[%s2078 + $0x78] sm:$0xff]
      %v2090 = vld [vmem:[%s2078 + $0x80] sm:$0xff]
      %v2091 = vld [vmem:[%s2078 + $0x90] sm:$0xff]
      %v2092 = vld [vmem:[%s2078 + $0x98] sm:$0xff]
      %v2093 = vld [vmem:[%s2078 + $0xa8] sm:$0xff]
      %v2094 = vld [vmem:[%s2078 + $0xb0] sm:$0xff]
      %v2095 = vld [vmem:[%s1454] sm:$0x1]
      %v2096 = vlaneseq
      %v2097 = vshrl.u32 %v2096, 7
      %v2098 = vsub.s32 0, %v2097
      %v2099 = vrot.slane %v2095, %v2098
      %v2100 = vmul.f32 %v2079, %v2099
      %v2101 = vmul.f32 %v2080, %v2099
      %v2102 = vmul.f32 %v2081, %v2099
      %v2103 = vmul.f32 %v2082, %v2099
      %v2104 = vmul.f32 %v2083, %v2099
      %v2105 = vmul.f32 %v2084, %v2099
      %v2106 = vmul.f32 %v2085, %v2099
      %v2107 = vmul.f32 %v2086, %v2099
      %v2108 = vmul.f32 %v2087, %v2099
      %v2109 = vmul.f32 %v2088, %v2099
      %v2110 = vmul.f32 %v2089, %v2099
      %v2111 = vmul.f32 %v2090, %v2099
      %v2112 = vmul.f32 %v2091, %v2099
      %v2113 = vmul.f32 %v2092, %v2099
      %v2114 = vmul.f32 %v2093, %v2099
      %v2115 = vmul.f32 %v2094, %v2099
      %v2116 = vadd.f32 %v2060, %v2100
      %v2117 = vadd.f32 %v2061, %v2101
      %v2118 = vadd.f32 %v2062, %v2102
      %v2119 = vadd.f32 %v2063, %v2103
      %v2120 = vadd.f32 %v2064, %v2104
      %v2121 = vadd.f32 %v2065, %v2105
      %v2122 = vadd.f32 %v2066, %v2106
      %v2123 = vadd.f32 %v2067, %v2107
      %v2124 = vadd.f32 %v2068, %v2108
      %v2125 = vadd.f32 %v2069, %v2109
      %v2126 = vadd.f32 %v2070, %v2110
      %v2127 = vadd.f32 %v2071, %v2111
      %v2128 = vadd.f32 %v2072, %v2112
      %v2129 = vadd.f32 %v2073, %v2113
      %v2130 = vadd.f32 %v2074, %v2114
      %v2131 = vadd.f32 %v2075, %v2115
      %v2132 = vld [vmem:[%s2078 + $0x1] sm:$0xff]
      %v2133 = vld [vmem:[%s2078 + $0x9] sm:$0xff]
      %v2134 = vld [vmem:[%s2078 + $0x19] sm:$0xff]
      %v2135 = vld [vmem:[%s2078 + $0x21] sm:$0xff]
      %v2136 = vld [vmem:[%s2078 + $0x31] sm:$0xff]
      %v2137 = vld [vmem:[%s2078 + $0x39] sm:$0xff]
      %v2138 = vld [vmem:[%s2078 + $0x49] sm:$0xff]
      %v2139 = vld [vmem:[%s2078 + $0x51] sm:$0xff]
      %v2140 = vld [vmem:[%s2078 + $0x61] sm:$0xff]
      %v2141 = vld [vmem:[%s2078 + $0x69] sm:$0xff]
      %v2142 = vld [vmem:[%s2078 + $0x79] sm:$0xff]
      %v2143 = vld [vmem:[%s2078 + $0x81] sm:$0xff]
      %v2144 = vld [vmem:[%s2078 + $0x91] sm:$0xff]
      %v2145 = vld [vmem:[%s2078 + $0x99] sm:$0xff]
      %v2146 = vld [vmem:[%s2078 + $0xa9] sm:$0xff]
      %v2147 = vld [vmem:[%s2078 + $0xb1] sm:$0xff]
      %v2148 = vld [vmem:[%s1454 + $0x1] sm:$0x1]
      %v2149 = vlaneseq
      %v2150 = vshrl.u32 %v2149, 7
      %v2151 = vsub.s32 0, %v2150
      %v2152 = vrot.slane %v2148, %v2151
      %v2153 = vmul.f32 %v2132, %v2152
      %v2154 = vmul.f32 %v2133, %v2152
      %v2155 = vmul.f32 %v2134, %v2152
      %v2156 = vmul.f32 %v2135, %v2152
      %v2157 = vmul.f32 %v2136, %v2152
      %v2158 = vmul.f32 %v2137, %v2152
      %v2159 = vmul.f32 %v2138, %v2152
      %v2160 = vmul.f32 %v2139, %v2152
      %v2161 = vmul.f32 %v2140, %v2152
      %v2162 = vmul.f32 %v2141, %v2152
      %v2163 = vmul.f32 %v2142, %v2152
      %v2164 = vmul.f32 %v2143, %v2152
      %v2165 = vmul.f32 %v2144, %v2152
      %v2166 = vmul.f32 %v2145, %v2152
      %v2167 = vmul.f32 %v2146, %v2152
      %v2168 = vmul.f32 %v2147, %v2152
      %v2169 = vadd.f32 %v2116, %v2153
      %v2170 = vadd.f32 %v2117, %v2154
      %v2171 = vadd.f32 %v2118, %v2155
      %v2172 = vadd.f32 %v2119, %v2156
      %v2173 = vadd.f32 %v2120, %v2157
      %v2174 = vadd.f32 %v2121, %v2158
      %v2175 = vadd.f32 %v2122, %v2159
      %v2176 = vadd.f32 %v2123, %v2160
      %v2177 = vadd.f32 %v2124, %v2161
      %v2178 = vadd.f32 %v2125, %v2162
      %v2179 = vadd.f32 %v2126, %v2163
      %v2180 = vadd.f32 %v2127, %v2164
      %v2181 = vadd.f32 %v2128, %v2165
      %v2182 = vadd.f32 %v2129, %v2166
      %v2183 = vadd.f32 %v2130, %v2167
      %v2184 = vadd.f32 %v2131, %v2168
      %v2185 = vld [vmem:[%s2078 + $0x2] sm:$0xff]
      %v2186 = vld [vmem:[%s2078 + $0xa] sm:$0xff]
      %v2187 = vld [vmem:[%s2078 + $0x1a] sm:$0xff]
      %v2188 = vld [vmem:[%s2078 + $0x22] sm:$0xff]
      %v2189 = vld [vmem:[%s2078 + $0x32] sm:$0xff]
      %v2190 = vld [vmem:[%s2078 + $0x3a] sm:$0xff]
      %v2191 = vld [vmem:[%s2078 + $0x4a] sm:$0xff]
      %v2192 = vld [vmem:[%s2078 + $0x52] sm:$0xff]
      %v2193 = vld [vmem:[%s2078 + $0x62] sm:$0xff]
      %v2194 = vld [vmem:[%s2078 + $0x6a] sm:$0xff]
      %v2195 = vld [vmem:[%s2078 + $0x7a] sm:$0xff]
      %v2196 = vld [vmem:[%s2078 + $0x82] sm:$0xff]
      %v2197 = vld [vmem:[%s2078 + $0x92] sm:$0xff]
      %v2198 = vld [vmem:[%s2078 + $0x9a] sm:$0xff]
      %v2199 = vld [vmem:[%s2078 + $0xaa] sm:$0xff]
      %v2200 = vld [vmem:[%s2078 + $0xb2] sm:$0xff]
      %v2201 = vld [vmem:[%s1454 + $0x2] sm:$0x1]
      %v2202 = vlaneseq
      %v2203 = vshrl.u32 %v2202, 7
      %v2204 = vsub.s32 0, %v2203
      %v2205 = vrot.slane %v2201, %v2204
      %v2206 = vmul.f32 %v2185, %v2205
      %v2207 = vmul.f32 %v2186, %v2205
      %v2208 = vmul.f32 %v2187, %v2205
      %v2209 = vmul.f32 %v2188, %v2205
      %v2210 = vmul.f32 %v2189, %v2205
      %v2211 = vmul.f32 %v2190, %v2205
      %v2212 = vmul.f32 %v2191, %v2205
      %v2213 = vmul.f32 %v2192, %v2205
      %v2214 = vmul.f32 %v2193, %v2205
      %v2215 = vmul.f32 %v2194, %v2205
      %v2216 = vmul.f32 %v2195, %v2205
      %v2217 = vmul.f32 %v2196, %v2205
      %v2218 = vmul.f32 %v2197, %v2205
      %v2219 = vmul.f32 %v2198, %v2205
      %v2220 = vmul.f32 %v2199, %v2205
      %v2221 = vmul.f32 %v2200, %v2205
      %v2222 = vadd.f32 %v2169, %v2206
      %v2223 = vadd.f32 %v2170, %v2207
      %v2224 = vadd.f32 %v2171, %v2208
      %v2225 = vadd.f32 %v2172, %v2209
      %v2226 = vadd.f32 %v2173, %v2210
      %v2227 = vadd.f32 %v2174, %v2211
      %v2228 = vadd.f32 %v2175, %v2212
      %v2229 = vadd.f32 %v2176, %v2213
      %v2230 = vadd.f32 %v2177, %v2214
      %v2231 = vadd.f32 %v2178, %v2215
      %v2232 = vadd.f32 %v2179, %v2216
      %v2233 = vadd.f32 %v2180, %v2217
      %v2234 = vadd.f32 %v2181, %v2218
      %v2235 = vadd.f32 %v2182, %v2219
      %v2236 = vadd.f32 %v2183, %v2220
      %v2237 = vadd.f32 %v2184, %v2221
      %v2238 = vld [vmem:[%s4] sm:$0x1]
      %v2240 = vlaneseq
      %v2241 = vshrl.u32 %v2240, 7
      %v2242 = vsub.s32 0, %v2241
      %v2243 = vrot.slane %v2238, %v2242
      %v2245 = vadd.f32 %v2222, %v2243
      %v2246 = vadd.f32 %v2223, %v2243
      %v2247 = vadd.f32 %v2224, %v2243
      %v2248 = vadd.f32 %v2225, %v2243
      %v2249 = vadd.f32 %v2226, %v2243
      %v2250 = vadd.f32 %v2227, %v2243
      %v2251 = vadd.f32 %v2228, %v2243
      %v2252 = vadd.f32 %v2229, %v2243
      %v2253 = vadd.f32 %v2230, %v2243
      %v2254 = vadd.f32 %v2231, %v2243
      %v2255 = vadd.f32 %v2232, %v2243
      %v2256 = vadd.f32 %v2233, %v2243
      %v2257 = vadd.f32 %v2234, %v2243
      %v2258 = vadd.f32 %v2235, %v2243
      %v2259 = vadd.f32 %v2236, %v2243
      %v2260 = vadd.f32 %v2237, %v2243
      %v2261 = vadd.f32 %v2245, 3.0
      %v2262 = vadd.f32 %v2246, 3.0
      %v2263 = vadd.f32 %v2247, 3.0
      %v2264 = vadd.f32 %v2248, 3.0
      %v2265 = vadd.f32 %v2249, 3.0
      %v2266 = vadd.f32 %v2250, 3.0
      %v2267 = vadd.f32 %v2251, 3.0
      %v2268 = vadd.f32 %v2252, 3.0
      %v2269 = vadd.f32 %v2253, 3.0
      %v2270 = vadd.f32 %v2254, 3.0
      %v2271 = vadd.f32 %v2255, 3.0
      %v2272 = vadd.f32 %v2256, 3.0
      %v2273 = vadd.f32 %v2257, 3.0
      %v2274 = vadd.f32 %v2258, 3.0
      %v2275 = vadd.f32 %v2259, 3.0
      %v2276 = vadd.f32 %v2260, 3.0
      %v2277 = vmax.f32 %v2261, 0.0
      %v2278 = vmax.f32 %v2262, 0.0
      %v2279 = vmax.f32 %v2263, 0.0
      %v2280 = vmax.f32 %v2264, 0.0
      %v2281 = vmax.f32 %v2265, 0.0
      %v2282 = vmax.f32 %v2266, 0.0
      %v2283 = vmax.f32 %v2267, 0.0
      %v2284 = vmax.f32 %v2268, 0.0
      %v2285 = vmax.f32 %v2269, 0.0
      %v2286 = vmax.f32 %v2270, 0.0
      %v2287 = vmax.f32 %v2271, 0.0
      %v2288 = vmax.f32 %v2272, 0.0
      %v2289 = vmax.f32 %v2273, 0.0
      %v2290 = vmax.f32 %v2274, 0.0
      %v2291 = vmax.f32 %v2275, 0.0
      %v2292 = vmax.f32 %v2276, 0.0
      %v2293 = vmin.f32 %v2277, 6.0
      %v2294 = vmin.f32 %v2278, 6.0
      %v2295 = vmin.f32 %v2279, 6.0
      %v2296 = vmin.f32 %v2280, 6.0
      %v2297 = vmin.f32 %v2281, 6.0
      %v2298 = vmin.f32 %v2282, 6.0
      %v2299 = vmin.f32 %v2283, 6.0
      %v2300 = vmin.f32 %v2284, 6.0
      %v2301 = vmin.f32 %v2285, 6.0
      %v2302 = vmin.f32 %v2286, 6.0
      %v2303 = vmin.f32 %v2287, 6.0
      %v2304 = vmin.f32 %v2288, 6.0
      %v2305 = vmin.f32 %v2289, 6.0
      %v2306 = vmin.f32 %v2290, 6.0
      %v2307 = vmin.f32 %v2291, 6.0
      %v2308 = vmin.f32 %v2292, 6.0
      %v2309 = vmul.f32 %v2245, %v2293
      %v2310 = vmul.f32 %v2246, %v2294
      %v2311 = vmul.f32 %v2247, %v2295
      %v2312 = vmul.f32 %v2248, %v2296
      %v2313 = vmul.f32 %v2249, %v2297
      %v2314 = vmul.f32 %v2250, %v2298
      %v2315 = vmul.f32 %v2251, %v2299
      %v2316 = vmul.f32 %v2252, %v2300
      %v2317 = vmul.f32 %v2253, %v2301
      %v2318 = vmul.f32 %v2254, %v2302
      %v2319 = vmul.f32 %v2255, %v2303
      %v2320 = vmul.f32 %v2256, %v2304
      %v2321 = vmul.f32 %v2257, %v2305
      %v2322 = vmul.f32 %v2258, %v2306
      %v2323 = vmul.f32 %v2259, %v2307
      %v2324 = vmul.f32 %v2260, %v2308
      %v2325 = vmul.f32 %v2309, 0.16666667
      %v2326 = vmul.f32 %v2310, 0.16666667
      %v2327 = vmul.f32 %v2311, 0.16666667
      %v2328 = vmul.f32 %v2312, 0.16666667
      %v2329 = vmul.f32 %v2313, 0.16666667
      %v2330 = vmul.f32 %v2314, 0.16666667
      %v2331 = vmul.f32 %v2315, 0.16666667
      %v2332 = vmul.f32 %v2316, 0.16666667
      %v2333 = vmul.f32 %v2317, 0.16666667
      %v2334 = vmul.f32 %v2318, 0.16666667
      %v2335 = vmul.f32 %v2319, 0.16666667
      %v2336 = vmul.f32 %v2320, 0.16666667
      %v2337 = vmul.f32 %v2321, 0.16666667
      %v2338 = vmul.f32 %v2322, 0.16666667
      %v2339 = vmul.f32 %v2323, 0.16666667
      %v2340 = vmul.f32 %v2324, 0.16666667
      %s2341 = scalar_lea.vmem [#allocation3], %s796
      %2342 = vst.msk [vmem:[%s2341] sm:$0xff] %vm434, %v2325
      %2343 = vst.msk [vmem:[%s2341 + $0x8] sm:$0xff] %vm434, %v2326
      %2344 = vst.msk [vmem:[%s2341 + $0x10] sm:$0xff] %vm434, %v2327
      %2345 = vst.msk [vmem:[%s2341 + $0x18] sm:$0xff] %vm434, %v2328
      %2346 = vst.msk [vmem:[%s2341 + $0x20] sm:$0xff] %vm434, %v2329
      %2347 = vst.msk [vmem:[%s2341 + $0x28] sm:$0xff] %vm434, %v2330
      %2348 = vst.msk [vmem:[%s2341 + $0x30] sm:$0xff] %vm434, %v2331
      %2349 = vst.msk [vmem:[%s2341 + $0x38] sm:$0xff] %vm434, %v2332
      %2350 = vst.msk [vmem:[%s2341 + $0x40] sm:$0xff] %vm434, %v2333
      %2351 = vst.msk [vmem:[%s2341 + $0x48] sm:$0xff] %vm434, %v2334
      %2352 = vst.msk [vmem:[%s2341 + $0x50] sm:$0xff] %vm434, %v2335
      %2353 = vst.msk [vmem:[%s2341 + $0x58] sm:$0xff] %vm434, %v2336
      %2354 = vst.msk [vmem:[%s2341 + $0x60] sm:$0xff] %vm434, %v2337
      %2355 = vst.msk [vmem:[%s2341 + $0x68] sm:$0xff] %vm434, %v2338
      %2356 = vst.msk [vmem:[%s2341 + $0x70] sm:$0xff] %vm434, %v2339
      %2357 = vst.msk [vmem:[%s2341 + $0x78] sm:$0xff] %vm434, %v2340
      %v2358 = vsel %vm434, %v2325, 0.0
      %v2359 = vsel %vm434, %v2326, 0.0
      %v2360 = vadd.f32 %v2358, %v2359
      %v2361 = vsel %vm434, %v2327, 0.0
      %v2362 = vadd.f32 %v2360, %v2361
      %v2363 = vsel %vm434, %v2328, 0.0
      %v2364 = vadd.f32 %v2362, %v2363
      %v2365 = vsel %vm434, %v2329, 0.0
      %v2366 = vadd.f32 %v2364, %v2365
      %v2367 = vsel %vm434, %v2330, 0.0
      %v2368 = vadd.f32 %v2366, %v2367
      %v2369 = vsel %vm434, %v2331, 0.0
      %v2370 = vadd.f32 %v2368, %v2369
      %v2371 = vsel %vm434, %v2332, 0.0
      %v2372 = vadd.f32 %v2370, %v2371
      %v2373 = vsel %vm434, %v2333, 0.0
      %v2374 = vadd.f32 %v2372, %v2373
      %v2375 = vsel %vm434, %v2334, 0.0
      %v2376 = vadd.f32 %v2374, %v2375
      %v2377 = vsel %vm434, %v2335, 0.0
      %v2378 = vadd.f32 %v2376, %v2377
      %v2379 = vsel %vm434, %v2336, 0.0
      %v2380 = vadd.f32 %v2378, %v2379
      %v2381 = vsel %vm434, %v2337, 0.0
      %v2382 = vadd.f32 %v2380, %v2381
      %v2383 = vsel %vm434, %v2338, 0.0
      %v2384 = vadd.f32 %v2382, %v2383
      %v2385 = vsel %vm434, %v2339, 0.0
      %v2386 = vadd.f32 %v2384, %v2385
      %v2387 = vsel %vm434, %v2340, 0.0
      %v2388 = vadd.f32 %v2386, %v2387
      %v2389 = vrot.slane %v2388, 4
      %v2390 = vadd.f32 %v2388, %v2389
      %v2391 = vrot.slane %v2390, 2
      %v2392 = vadd.f32 %v2390, %v2391
      %v2393 = vrot.slane %v2392, 1
      %v2394 = vadd.f32 %v2392, %v2393
      %v2395 = vadd.f32 %v1755, %v2394
      %v2396 = vmul.f32 %v2395, 0.00390625
      %v2397 = vld [vmem:[%s5] sm:$0xff]
      %v2398 = vld [vmem:[%s5 + $0x8] sm:$0xff]
      %v2399 = vld [vmem:[%s6] sm:$0x1]
      %v2401 = vlaneseq
      %v2402 = vshrl.u32 %v2401, 7
      %v2403 = vsub.s32 0, %v2402
      %v2404 = vrot.slane %v2399, %v2403
      %v2407 = vsel %vm434, %v2396, 0
      %2409 = vmatprep.subr.mxu0 0.0
      %2410 = vmatpush1.msra.mxu0 %v2397
      %2411 = vmatprep.subr.mxu0 0.0
      %2412 = vmatpush1.msra.mxu0 %v2398
      %2413 = vmatprep.subr.mxu0 0.0
      %2414 = vmatpush1.msra.mxu0 0.0
      %2415 = vmatprep.subr.mxu0 0.0
      %2416 = vmatpush1.msra.mxu0 0.0
      %2417 = vmatprep.subr.mxu0 0.0
      %2418 = vmatpush1.msra.mxu0 0.0
      %2419 = vmatprep.subr.mxu0 0.0
      %2420 = vmatpush1.msra.mxu0 0.0
      %2421 = vmatprep.subr.mxu0 0.0
      %2422 = vmatpush1.msra.mxu0 0.0
      %2423 = vmatprep.subr.mxu0 0.0
      %2424 = vmatpush1.msra.mxu0 0.0
      %2425 = vmatprep.subr.mxu0 0.0
      %2426 = vmatpush1.msra.mxu0 0.0
      %2427 = vmatprep.subr.mxu0 0.0
      %2428 = vmatpush1.msra.mxu0 0.0
      %2429 = vmatprep.subr.mxu0 0.0
      %2430 = vmatpush1.msra.mxu0 0.0
      %2431 = vmatprep.subr.mxu0 0.0
      %2432 = vmatpush1.msra.mxu0 0.0
      %2433 = vmatprep.subr.mxu0 0.0
      %2434 = vmatpush1.msra.mxu0 0.0
      %2435 = vmatprep.subr.mxu0 0.0
      %2436 = vmatpush1.msra.mxu0 0.0
      %2437 = vmatprep.subr.mxu0 0.0
      %2438 = vmatpush1.msra.mxu0 0.0
      %2439 = vmatprep.subr.mxu0 0.0
      %2440 = vmatpush1.msra.mxu0 0.0
      %2441 = vmatprep.subr.mxu0 0.0
      %2442 = vmatpush1.msra.mxu0 0.0
      %2443 = vmatprep.subr.mxu0 0.0
      %2444 = vmatpush1.msra.mxu0 0.0
      %2445 = vmatprep.subr.mxu0 0.0
      %2446 = vmatpush1.msra.mxu0 0.0
      %2447 = vmatprep.subr.mxu0 0.0
      %2448 = vmatpush1.msra.mxu0 0.0
      %2449 = vmatprep.subr.mxu0 0.0
      %2450 = vmatpush1.msra.mxu0 0.0
      %2451 = vmatprep.subr.mxu0 0.0
      %2452 = vmatpush1.msra.mxu0 0.0
      %2453 = vmatprep.subr.mxu0 0.0
      %2454 = vmatpush1.msra.mxu0 0.0
      %2455 = vmatprep.subr.mxu0 0.0
      %2456 = vmatpush1.msra.mxu0 0.0
      %2457 = vmatprep.subr.mxu0 0.0
      %2458 = vmatpush1.msra.mxu0 0.0
      %2459 = vmatprep.subr.mxu0 0.0
      %2460 = vmatpush1.msra.mxu0 0.0
      %2461 = vmatprep.subr.mxu0 0.0
      %2462 = vmatpush1.msra.mxu0 0.0
      %2463 = vmatprep.subr.mxu0 0.0
      %2464 = vmatpush1.msra.mxu0 0.0
      %2465 = vmatprep.subr.mxu0 0.0
      %2466 = vmatpush1.msra.mxu0 0.0
      %2467 = vmatprep.subr.mxu0 0.0
      %2468 = vmatpush1.msra.mxu0 0.0
      %2469 = vmatprep.subr.mxu0 0.0
      %2470 = vmatpush1.msra.mxu0 0.0
      %2471 = vmatprep.subr.mxu0 0.0
      %2472 = vmatpush1.msra.mxu0 0.0
      %2473 = vmatprep.mubr.f32.mxu0 0.0
      %2474 = vmatmul.mubr.f32.gmra.mrb[0].mxu0 %v2407
      %v2475 = vpop.f32.mrb[0].mxu0
      %v2476 = vadd.f32 %v2404, %v2475
      %v2477 = vpop.f32.mrb[0].mxu0
      %2478 = vdwg.mxu0
      %v2479 = vadd.f32 %v2476, 3.0
      %v2480 = vmax.f32 %v2479, 0.0
      %v2481 = vmin.f32 %v2480, 6.0
      %v2482 = vmul.f32 %v2476, %v2481
      %v2483 = vmul.f32 %v2482, 0.16666667
      %v2484 = vld [vmem:[%s7] sm:$0x3]
      %v2485 = vld [vmem:[%s8] sm:$0x1]
      %v2487 = vlaneseq
      %v2488 = vshrl.u32 %v2487, 7
      %v2489 = vsub.s32 0, %v2488
      %v2490 = vrot.slane %v2485, %v2489
      %vm2492 = vcmask 15360
      %v2494 = vsel %vm2492, %v2483, 0
      %vm2496 = vcmask 1041408
      %v2498 = vsel %vm2496, %v2484, 0
      %2500 = vmatprep.subr.mxu0 0.0
      %2501 = vmatpush1.msra.mxu0 %v2498
      %2502 = vmatprep.subr.mxu0 0.0
      %2503 = vmatpush1.msra.mxu0 0.0
      %2504 = vmatprep.subr.mxu0 0.0
      %2505 = vmatpush1.msra.mxu0 0.0
      %2506 = vmatprep.subr.mxu0 0.0
      %2507 = vmatpush1.msra.mxu0 0.0
      %2508 = vmatprep.subr.mxu0 0.0
      %2509 = vmatpush1.msra.mxu0 0.0
      %2510 = vmatprep.subr.mxu0 0.0
      %2511 = vmatpush1.msra.mxu0 0.0
      %2512 = vmatprep.subr.mxu0 0.0
      %2513 = vmatpush1.msra.mxu0 0.0
      %2514 = vmatprep.subr.mxu0 0.0
      %2515 = vmatpush1.msra.mxu0 0.0
      %2516 = vmatprep.subr.mxu0 0.0
      %2517 = vmatpush1.msra.mxu0 0.0
      %2518 = vmatprep.subr.mxu0 0.0
      %2519 = vmatpush1.msra.mxu0 0.0
      %2520 = vmatprep.subr.mxu0 0.0
      %2521 = vmatpush1.msra.mxu0 0.0
      %2522 = vmatprep.subr.mxu0 0.0
      %2523 = vmatpush1.msra.mxu0 0.0
      %2524 = vmatprep.subr.mxu0 0.0
      %2525 = vmatpush1.msra.mxu0 0.0
      %2526 = vmatprep.subr.mxu0 0.0
      %2527 = vmatpush1.msra.mxu0 0.0
      %2528 = vmatprep.subr.mxu0 0.0
      %2529 = vmatpush1.msra.mxu0 0.0
      %2530 = vmatprep.subr.mxu0 0.0
      %2531 = vmatpush1.msra.mxu0 0.0
      %2532 = vmatprep.subr.mxu0 0.0
      %2533 = vmatpush1.msra.mxu0 0.0
      %2534 = vmatprep.subr.mxu0 0.0
      %2535 = vmatpush1.msra.mxu0 0.0
      %2536 = vmatprep.subr.mxu0 0.0
      %2537 = vmatpush1.msra.mxu0 0.0
      %2538 = vmatprep.subr.mxu0 0.0
      %2539 = vmatpush1.msra.mxu0 0.0
      %2540 = vmatprep.subr.mxu0 0.0
      %2541 = vmatpush1.msra.mxu0 0.0
      %2542 = vmatprep.subr.mxu0 0.0
      %2543 = vmatpush1.msra.mxu0 0.0
      %2544 = vmatprep.subr.mxu0 0.0
      %2545 = vmatpush1.msra.mxu0 0.0
      %2546 = vmatprep.subr.mxu0 0.0
      %2547 = vmatpush1.msra.mxu0 0.0
      %2548 = vmatprep.subr.mxu0 0.0
      %2549 = vmatpush1.msra.mxu0 0.0
      %2550 = vmatprep.subr.mxu0 0.0
      %2551 = vmatpush1.msra.mxu0 0.0
      %2552 = vmatprep.subr.mxu0 0.0
      %2553 = vmatpush1.msra.mxu0 0.0
      %2554 = vmatprep.subr.mxu0 0.0
      %2555 = vmatpush1.msra.mxu0 0.0
      %2556 = vmatprep.subr.mxu0 0.0
      %2557 = vmatpush1.msra.mxu0 0.0
      %2558 = vmatprep.subr.mxu0 0.0
      %2559 = vmatpush1.msra.mxu0 0.0
      %2560 = vmatprep.subr.mxu0 0.0
      %2561 = vmatpush1.msra.mxu0 0.0
      %2562 = vmatprep.subr.mxu0 0.0
      %2563 = vmatpush1.msra.mxu0 0.0
      %2564 = vmatprep.mubr.f32.mxu0 0.0
      %2565 = vmatmul.mubr.f32.gmra.mrb[0].mxu0 %v2494
      %v2566 = vpop.f32.mrb[0].mxu0
      %v2567 = vadd.f32 %v2490, %v2566
      %v2568 = vpop.f32.mrb[0].mxu0
      %2569 = vdwg.mxu0
      %v2570 = vxor.u32 %v2567, 2147483648
      %v2571 = vmul.f32 %v2570, 1.442695
      %v2572 = vpow.pop %v2571
      %v2573 = vadd.f32 %v2572, 1.0
      %v2574 = vrcp.pop %v2573
      %v2575 = vmul.f32 1.0, %v2574
      %v2576 = vld [vmem:[%s9] sm:$0xff]
      %v2577 = vlaneseq
      %v2578 = vshrl.u32 %v2577, 7
      %v2579 = vsub.s32 0, %v2578
      %v2580 = vrot.slane %v2575, %v2579
      %v2581 = vmul.f32 %v2576, %v2580
      %v2582 = vld [vmem:[%s1701] sm:$0xff]
      %v2583 = vld [vmem:[%s1701 + $0x8] sm:$0xff]
      %v2584 = vld [vmem:[%s1701 + $0x10] sm:$0xff]
      %v2585 = vld [vmem:[%s1701 + $0x18] sm:$0xff]
      %v2586 = vld [vmem:[%s1701 + $0x20] sm:$0xff]
      %v2587 = vld [vmem:[%s1701 + $0x28] sm:$0xff]
      %v2588 = vld [vmem:[%s1701 + $0x30] sm:$0xff]
      %v2589 = vld [vmem:[%s1701 + $0x38] sm:$0xff]
      %v2590 = vld [vmem:[%s1701 + $0x40] sm:$0xff]
      %v2591 = vld [vmem:[%s1701 + $0x48] sm:$0xff]
      %v2592 = vld [vmem:[%s1701 + $0x50] sm:$0xff]
      %v2593 = vld [vmem:[%s1701 + $0x58] sm:$0xff]
      %v2594 = vld [vmem:[%s1701 + $0x60] sm:$0xff]
      %v2595 = vld [vmem:[%s1701 + $0x68] sm:$0xff]
      %v2596 = vld [vmem:[%s1701 + $0x70] sm:$0xff]
      %v2597 = vld [vmem:[%s1701 + $0x78] sm:$0xff]
      %v2598 = vld [vmem:[%s10] sm:$0x1]
      %v2600 = vlaneseq
      %v2601 = vshrl.u32 %v2600, 7
      %v2602 = vsub.s32 0, %v2601
      %v2603 = vrot.slane %v2598, %v2602
      %v2606 = vsel %vm434, %v2582, 0
      %v2609 = vsel %vm434, %v2583, 0
      %v2612 = vsel %vm434, %v2584, 0
      %v2615 = vsel %vm434, %v2585, 0
      %v2618 = vsel %vm434, %v2586, 0
      %v2621 = vsel %vm434, %v2587, 0
      %v2624 = vsel %vm434, %v2588, 0
      %v2627 = vsel %vm434, %v2589, 0
      %v2630 = vsel %vm434, %v2590, 0
      %v2633 = vsel %vm434, %v2591, 0
      %v2636 = vsel %vm434, %v2592, 0
      %v2639 = vsel %vm434, %v2593, 0
      %v2642 = vsel %vm434, %v2594, 0
      %v2645 = vsel %vm434, %v2595, 0
      %v2648 = vsel %vm434, %v2596, 0
      %v2651 = vsel %vm434, %v2597, 0
      %v2654 = vsel %vm434, %v2581, 0
      %2656 = vmatprep.subr.mxu0 0.0
      %2657 = vmatpush1.xpose.msra.mxu0 %v2654
      %2658 = vmatprep.subr.mxu0 0.0
      %2659 = vmatpush1.xpose.msra.mxu0 0.0
      %2660 = vmatprep.subr.mxu0 0.0
      %2661 = vmatpush1.xpose.msra.mxu0 0.0
      %2662 = vmatprep.subr.mxu0 0.0
      %2663 = vmatpush1.xpose.msra.mxu0 0.0
      %2664 = vmatprep.subr.mxu0 0.0
      %2665 = vmatpush1.xpose.msra.mxu0 0.0
      %2666 = vmatprep.subr.mxu0 0.0
      %2667 = vmatpush1.xpose.msra.mxu0 0.0
      %2668 = vmatprep.subr.mxu0 0.0
      %2669 = vmatpush1.xpose.msra.mxu0 0.0
      %2670 = vmatprep.subr.mxu0 0.0
      %2671 = vmatpush1.xpose.msra.mxu0 0.0
      %2672 = vmatprep.subr.mxu0 0.0
      %2673 = vmatpush1.xpose.msra.mxu0 0.0
      %2674 = vmatprep.subr.mxu0 0.0
      %2675 = vmatpush1.xpose.msra.mxu0 0.0
      %2676 = vmatprep.subr.mxu0 0.0
      %2677 = vmatpush1.xpose.msra.mxu0 0.0
      %2678 = vmatprep.subr.mxu0 0.0
      %2679 = vmatpush1.xpose.msra.mxu0 0.0
      %2680 = vmatprep.subr.mxu0 0.0
      %2681 = vmatpush1.xpose.msra.mxu0 0.0
      %2682 = vmatprep.subr.mxu0 0.0
      %2683 = vmatpush1.xpose.msra.mxu0 0.0
      %2684 = vmatprep.subr.mxu0 0.0
      %2685 = vmatpush1.xpose.msra.mxu0 0.0
      %2686 = vmatprep.subr.mxu0 0.0
      %2687 = vmatpush1.xpose.msra.mxu0 0.0
      %2688 = vmatprep.subr.mxu0 0.0
      %2689 = vmatpush1.xpose.msra.mxu0 0.0
      %2690 = vmatprep.subr.mxu0 0.0
      %2691 = vmatpush1.xpose.msra.mxu0 0.0
      %2692 = vmatprep.subr.mxu0 0.0
      %2693 = vmatpush1.xpose.msra.mxu0 0.0
      %2694 = vmatprep.subr.mxu0 0.0
      %2695 = vmatpush1.xpose.msra.mxu0 0.0
      %2696 = vmatprep.subr.mxu0 0.0
      %2697 = vmatpush1.xpose.msra.mxu0 0.0
      %2698 = vmatprep.subr.mxu0 0.0
      %2699 = vmatpush1.xpose.msra.mxu0 0.0
      %2700 = vmatprep.subr.mxu0 0.0
      %2701 = vmatpush1.xpose.msra.mxu0 0.0
      %2702 = vmatprep.subr.mxu0 0.0
      %2703 = vmatpush1.xpose.msra.mxu0 0.0
      %2704 = vmatprep.subr.mxu0 0.0
      %2705 = vmatpush1.xpose.msra.mxu0 0.0
      %2706 = vmatprep.subr.mxu0 0.0
      %2707 = vmatpush1.xpose.msra.mxu0 0.0
      %2708 = vmatprep.subr.mxu0 0.0
      %2709 = vmatpush1.xpose.msra.mxu0 0.0
      %2710 = vmatprep.subr.mxu0 0.0
      %2711 = vmatpush1.xpose.msra.mxu0 0.0
      %2712 = vmatprep.subr.mxu0 0.0
      %2713 = vmatpush1.xpose.msra.mxu0 0.0
      %2714 = vmatprep.subr.mxu0 0.0
      %2715 = vmatpush1.xpose.msra.mxu0 0.0
      %2716 = vmatprep.subr.mxu0 0.0
      %2717 = vmatpush1.xpose.msra.mxu0 0.0
      %2718 = vmatprep.subr.mxu0 0.0
      %2719 = vmatpush1.xpose.msra.mxu0 0.0
      %2720 = vmatprep.mubr.f32.mxu0 0.0
      %2721 = vmatmul.mubr.f32.gmra.mrb[0].mxu0 %v2606
      %v2722 = vpop.f32.mrb[0].mxu0
      %v2723 = vadd.f32 %v2603, %v2722
      %v2724 = vpop.f32.mrb[0].mxu0
      %2725 = vmatprep.mubr.f32.mxu0 0.0
      %2726 = vmatmul.mubr.f32.gmra.mrb[0].mxu0 %v2609
      %v2727 = vpop.f32.mrb[0].mxu0
      %v2728 = vadd.f32 %v2603, %v2727
      %v2729 = vpop.f32.mrb[0].mxu0
      %2730 = vmatprep.mubr.f32.mxu0 0.0
      %2731 = vmatmul.mubr.f32.gmra.mrb[0].mxu0 %v2612
      %v2732 = vpop.f32.mrb[0].mxu0
      %v2733 = vadd.f32 %v2603, %v2732
      %v2734 = vpop.f32.mrb[0].mxu0
      %2735 = vmatprep.mubr.f32.mxu0 0.0
      %2736 = vmatmul.mubr.f32.gmra.mrb[0].mxu0 %v2615
      %v2737 = vpop.f32.mrb[0].mxu0
      %v2738 = vadd.f32 %v2603, %v2737
      %v2739 = vpop.f32.mrb[0].mxu0
      %2740 = vmatprep.mubr.f32.mxu0 0.0
      %2741 = vmatmul.mubr.f32.gmra.mrb[0].mxu0 %v2618
      %v2742 = vpop.f32.mrb[0].mxu0
      %v2743 = vadd.f32 %v2603, %v2742
      %v2744 = vpop.f32.mrb[0].mxu0
      %2745 = vmatprep.mubr.f32.mxu0 0.0
      %2746 = vmatmul.mubr.f32.gmra.mrb[0].mxu0 %v2621
      %v2747 = vpop.f32.mrb[0].mxu0
      %v2748 = vadd.f32 %v2603, %v2747
      %v2749 = vpop.f32.mrb[0].mxu0
      %2750 = vmatprep.mubr.f32.mxu0 0.0
      %2751 = vmatmul.mubr.f32.gmra.mrb[0].mxu0 %v2624
      %v2752 = vpop.f32.mrb[0].mxu0
      %v2753 = vadd.f32 %v2603, %v2752
      %v2754 = vpop.f32.mrb[0].mxu0
      %2755 = vmatprep.mubr.f32.mxu0 0.0
      %2756 = vmatmul.mubr.f32.gmra.mrb[0].mxu0 %v2627
      %v2757 = vpop.f32.mrb[0].mxu0
      %v2758 = vadd.f32 %v2603, %v2757
      %v2759 = vpop.f32.mrb[0].mxu0
      %2760 = vmatprep.mubr.f32.mxu0 0.0
      %2761 = vmatmul.mubr.f32.gmra.mrb[0].mxu0 %v2630
      %v2762 = vpop.f32.mrb[0].mxu0
      %v2763 = vadd.f32 %v2603, %v2762
      %v2764 = vpop.f32.mrb[0].mxu0
      %2765 = vmatprep.mubr.f32.mxu0 0.0
      %2766 = vmatmul.mubr.f32.gmra.mrb[0].mxu0 %v2633
      %v2767 = vpop.f32.mrb[0].mxu0
      %v2768 = vadd.f32 %v2603, %v2767
      %v2769 = vpop.f32.mrb[0].mxu0
      %2770 = vmatprep.mubr.f32.mxu0 0.0
      %2771 = vmatmul.mubr.f32.gmra.mrb[0].mxu0 %v2636
      %v2772 = vpop.f32.mrb[0].mxu0
      %v2773 = vadd.f32 %v2603, %v2772
      %v2774 = vpop.f32.mrb[0].mxu0
      %2775 = vmatprep.mubr.f32.mxu0 0.0
      %2776 = vmatmul.mubr.f32.gmra.mrb[0].mxu0 %v2639
      %v2777 = vpop.f32.mrb[0].mxu0
      %v2778 = vadd.f32 %v2603, %v2777
      %v2779 = vpop.f32.mrb[0].mxu0
      %2780 = vmatprep.mubr.f32.mxu0 0.0
      %2781 = vmatmul.mubr.f32.gmra.mrb[0].mxu0 %v2642
      %v2782 = vpop.f32.mrb[0].mxu0
      %v2783 = vadd.f32 %v2603, %v2782
      %v2784 = vpop.f32.mrb[0].mxu0
      %2785 = vmatprep.mubr.f32.mxu0 0.0
      %2786 = vmatmul.mubr.f32.gmra.mrb[0].mxu0 %v2645
      %v2787 = vpop.f32.mrb[0].mxu0
      %v2788 = vadd.f32 %v2603, %v2787
      %v2789 = vpop.f32.mrb[0].mxu0
      %2790 = vmatprep.mubr.f32.mxu0 0.0
      %2791 = vmatmul.mubr.f32.gmra.mrb[0].mxu0 %v2648
      %v2792 = vpop.f32.mrb[0].mxu0
      %v2793 = vadd.f32 %v2603, %v2792
      %v2794 = vpop.f32.mrb[0].mxu0
      %2795 = vmatprep.mubr.f32.mxu0 0.0
      %2796 = vmatmul.mubr.f32.gmra.mrb[0].mxu0 %v2651
      %v2797 = vpop.f32.mrb[0].mxu0
      %v2798 = vadd.f32 %v2603, %v2797
      %v2799 = vpop.f32.mrb[0].mxu0
      %2800 = vdwg.mxu0
      %s2801 = scalar_lea.vmem %s428, %s477
      %v2802 = vld [vmem:[%s2801] sm:$0xff]
      %v2803 = vld [vmem:[%s2801 + $0x8] sm:$0xff]
      %v2804 = vld [vmem:[%s2801 + $0x10] sm:$0xff]
      %v2805 = vld [vmem:[%s2801 + $0x18] sm:$0xff]
      %v2806 = vld [vmem:[%s2801 + $0x20] sm:$0xff]
      %v2807 = vld [vmem:[%s2801 + $0x28] sm:$0xff]
      %v2808 = vld [vmem:[%s2801 + $0x30] sm:$0xff]
      %v2809 = vld [vmem:[%s2801 + $0x38] sm:$0xff]
      %v2810 = vld [vmem:[%s2801 + $0x40] sm:$0xff]
      %v2811 = vld [vmem:[%s2801 + $0x48] sm:$0xff]
      %v2812 = vld [vmem:[%s2801 + $0x50] sm:$0xff]
      %v2813 = vld [vmem:[%s2801 + $0x58] sm:$0xff]
      %v2814 = vld [vmem:[%s2801 + $0x60] sm:$0xff]
      %v2815 = vld [vmem:[%s2801 + $0x68] sm:$0xff]
      %v2816 = vld [vmem:[%s2801 + $0x70] sm:$0xff]
      %v2817 = vld [vmem:[%s2801 + $0x78] sm:$0xff]
      %v2818 = vadd.f32 %v2723, %v2802
      %v2819 = vadd.f32 %v2728, %v2803
      %v2820 = vadd.f32 %v2733, %v2804
      %v2821 = vadd.f32 %v2738, %v2805
      %v2822 = vadd.f32 %v2743, %v2806
      %v2823 = vadd.f32 %v2748, %v2807
      %v2824 = vadd.f32 %v2753, %v2808
      %v2825 = vadd.f32 %v2758, %v2809
      %v2826 = vadd.f32 %v2763, %v2810
      %v2827 = vadd.f32 %v2768, %v2811
      %v2828 = vadd.f32 %v2773, %v2812
      %v2829 = vadd.f32 %v2778, %v2813
      %v2830 = vadd.f32 %v2783, %v2814
      %v2831 = vadd.f32 %v2788, %v2815
      %v2832 = vadd.f32 %v2793, %v2816
      %v2833 = vadd.f32 %v2798, %v2817
      %s2834 = scalar_lea.vmem %s433, %s477
      %2835 = vst.msk [vmem:[%s2834] sm:$0xff] %vm503, %v2818
      %2836 = vst.msk [vmem:[%s2834 + $0x8] sm:$0xff] %vm503, %v2819
      %2837 = vst.msk [vmem:[%s2834 + $0x10] sm:$0xff] %vm503, %v2820
      %2838 = vst.msk [vmem:[%s2834 + $0x18] sm:$0xff] %vm503, %v2821
      %2839 = vst.msk [vmem:[%s2834 + $0x20] sm:$0xff] %vm503, %v2822
      %2840 = vst.msk [vmem:[%s2834 + $0x28] sm:$0xff] %vm503, %v2823
      %2841 = vst.msk [vmem:[%s2834 + $0x30] sm:$0xff] %vm503, %v2824
      %2842 = vst.msk [vmem:[%s2834 + $0x38] sm:$0xff] %vm503, %v2825
      %2843 = vst.msk [vmem:[%s2834 + $0x40] sm:$0xff] %vm503, %v2826
      %2844 = vst.msk [vmem:[%s2834 + $0x48] sm:$0xff] %vm503, %v2827
      %2845 = vst.msk [vmem:[%s2834 + $0x50] sm:$0xff] %vm503, %v2828
      %2846 = vst.msk [vmem:[%s2834 + $0x58] sm:$0xff] %vm503, %v2829
      %2847 = vst.msk [vmem:[%s2834 + $0x60] sm:$0xff] %vm503, %v2830
      %2848 = vst.msk [vmem:[%s2834 + $0x68] sm:$0xff] %vm503, %v2831
      %2849 = vst.msk [vmem:[%s2834 + $0x70] sm:$0xff] %vm503, %v2832
      %2850 = vst.msk [vmem:[%s2834 + $0x78] sm:$0xff] %vm503, %v2833
      %v2851 = vld [vmem:[%s2341] sm:$0xff]
      %v2852 = vld [vmem:[%s2341 + $0x8] sm:$0xff]
      %v2853 = vld [vmem:[%s2341 + $0x10] sm:$0xff]
      %v2854 = vld [vmem:[%s2341 + $0x18] sm:$0xff]
      %v2855 = vld [vmem:[%s2341 + $0x20] sm:$0xff]
      %v2856 = vld [vmem:[%s2341 + $0x28] sm:$0xff]
      %v2857 = vld [vmem:[%s2341 + $0x30] sm:$0xff]
      %v2858 = vld [vmem:[%s2341 + $0x38] sm:$0xff]
      %v2859 = vld [vmem:[%s2341 + $0x40] sm:$0xff]
      %v2860 = vld [vmem:[%s2341 + $0x48] sm:$0xff]
      %v2861 = vld [vmem:[%s2341 + $0x50] sm:$0xff]
      %v2862 = vld [vmem:[%s2341 + $0x58] sm:$0xff]
      %v2863 = vld [vmem:[%s2341 + $0x60] sm:$0xff]
      %v2864 = vld [vmem:[%s2341 + $0x68] sm:$0xff]
      %v2865 = vld [vmem:[%s2341 + $0x70] sm:$0xff]
      %v2866 = vld [vmem:[%s2341 + $0x78] sm:$0xff]
      %v2867 = vld [vmem:[%s10] sm:$0x1]
      %v2869 = vlaneseq
      %v2870 = vshrl.u32 %v2869, 7
      %v2871 = vsub.s32 0, %v2870
      %v2872 = vrot.slane %v2867, %v2871
      %v2875 = vsel %vm434, %v2851, 0
      %v2878 = vsel %vm434, %v2852, 0
      %v2881 = vsel %vm434, %v2853, 0
      %v2884 = vsel %vm434, %v2854, 0
      %v2887 = vsel %vm434, %v2855, 0
      %v2890 = vsel %vm434, %v2856, 0
      %v2893 = vsel %vm434, %v2857, 0
      %v2896 = vsel %vm434, %v2858, 0
      %v2899 = vsel %vm434, %v2859, 0
      %v2902 = vsel %vm434, %v2860, 0
      %v2905 = vsel %vm434, %v2861, 0
      %v2908 = vsel %vm434, %v2862, 0
      %v2911 = vsel %vm434, %v2863, 0
      %v2914 = vsel %vm434, %v2864, 0
      %v2917 = vsel %vm434, %v2865, 0
      %v2920 = vsel %vm434, %v2866, 0
      %2922 = vmatprep.subr.mxu0 0.0
      %2923 = vmatpush1.xpose.msra.mxu0 %v2654
      %2924 = vmatprep.subr.mxu0 0.0
      %2925 = vmatpush1.xpose.msra.mxu0 0.0
      %2926 = vmatprep.subr.mxu0 0.0
      %2927 = vmatpush1.xpose.msra.mxu0 0.0
      %2928 = vmatprep.subr.mxu0 0.0
      %2929 = vmatpush1.xpose.msra.mxu0 0.0
      %2930 = vmatprep.subr.mxu0 0.0
      %2931 = vmatpush1.xpose.msra.mxu0 0.0
      %2932 = vmatprep.subr.mxu0 0.0
      %2933 = vmatpush1.xpose.msra.mxu0 0.0
      %2934 = vmatprep.subr.mxu0 0.0
      %2935 = vmatpush1.xpose.msra.mxu0 0.0
      %2936 = vmatprep.subr.mxu0 0.0
      %2937 = vmatpush1.xpose.msra.mxu0 0.0
      %2938 = vmatprep.subr.mxu0 0.0
      %2939 = vmatpush1.xpose.msra.mxu0 0.0
      %2940 = vmatprep.subr.mxu0 0.0
      %2941 = vmatpush1.xpose.msra.mxu0 0.0
      %2942 = vmatprep.subr.mxu0 0.0
      %2943 = vmatpush1.xpose.msra.mxu0 0.0
      %2944 = vmatprep.subr.mxu0 0.0
      %2945 = vmatpush1.xpose.msra.mxu0 0.0
      %2946 = vmatprep.subr.mxu0 0.0
      %2947 = vmatpush1.xpose.msra.mxu0 0.0
      %2948 = vmatprep.subr.mxu0 0.0
      %2949 = vmatpush1.xpose.msra.mxu0 0.0
      %2950 = vmatprep.subr.mxu0 0.0
      %2951 = vmatpush1.xpose.msra.mxu0 0.0
      %2952 = vmatprep.subr.mxu0 0.0
      %2953 = vmatpush1.xpose.msra.mxu0 0.0
      %2954 = vmatprep.subr.mxu0 0.0
      %2955 = vmatpush1.xpose.msra.mxu0 0.0
      %2956 = vmatprep.subr.mxu0 0.0
      %2957 = vmatpush1.xpose.msra.mxu0 0.0
      %2958 = vmatprep.subr.mxu0 0.0
      %2959 = vmatpush1.xpose.msra.mxu0 0.0
      %2960 = vmatprep.subr.mxu0 0.0
      %2961 = vmatpush1.xpose.msra.mxu0 0.0
      %2962 = vmatprep.subr.mxu0 0.0
      %2963 = vmatpush1.xpose.msra.mxu0 0.0
      %2964 = vmatprep.subr.mxu0 0.0
      %2965 = vmatpush1.xpose.msra.mxu0 0.0
      %2966 = vmatprep.subr.mxu0 0.0
      %2967 = vmatpush1.xpose.msra.mxu0 0.0
      %2968 = vmatprep.subr.mxu0 0.0
      %2969 = vmatpush1.xpose.msra.mxu0 0.0
      %2970 = vmatprep.subr.mxu0 0.0
      %2971 = vmatpush1.xpose.msra.mxu0 0.0
      %2972 = vmatprep.subr.mxu0 0.0
      %2973 = vmatpush1.xpose.msra.mxu0 0.0
      %2974 = vmatprep.subr.mxu0 0.0
      %2975 = vmatpush1.xpose.msra.mxu0 0.0
      %2976 = vmatprep.subr.mxu0 0.0
      %2977 = vmatpush1.xpose.msra.mxu0 0.0
      %2978 = vmatprep.subr.mxu0 0.0
      %2979 = vmatpush1.xpose.msra.mxu0 0.0
      %2980 = vmatprep.subr.mxu0 0.0
      %2981 = vmatpush1.xpose.msra.mxu0 0.0
      %2982 = vmatprep.subr.mxu0 0.0
      %2983 = vmatpush1.xpose.msra.mxu0 0.0
      %2984 = vmatprep.subr.mxu0 0.0
      %2985 = vmatpush1.xpose.msra.mxu0 0.0
      %2986 = vmatprep.mubr.f32.mxu0 0.0
      %2987 = vmatmul.mubr.f32.gmra.mrb[0].mxu0 %v2875
      %v2988 = vpop.f32.mrb[0].mxu0
      %v2989 = vadd.f32 %v2872, %v2988
      %v2990 = vpop.f32.mrb[0].mxu0
      %2991 = vmatprep.mubr.f32.mxu0 0.0
      %2992 = vmatmul.mubr.f32.gmra.mrb[0].mxu0 %v2878
      %v2993 = vpop.f32.mrb[0].mxu0
      %v2994 = vadd.f32 %v2872, %v2993
      %v2995 = vpop.f32.mrb[0].mxu0
      %2996 = vmatprep.mubr.f32.mxu0 0.0
      %2997 = vmatmul.mubr.f32.gmra.mrb[0].mxu0 %v2881
      %v2998 = vpop.f32.mrb[0].mxu0
      %v2999 = vadd.f32 %v2872, %v2998
      %v3000 = vpop.f32.mrb[0].mxu0
      %3001 = vmatprep.mubr.f32.mxu0 0.0
      %3002 = vmatmul.mubr.f32.gmra.mrb[0].mxu0 %v2884
      %v3003 = vpop.f32.mrb[0].mxu0
      %v3004 = vadd.f32 %v2872, %v3003
      %v3005 = vpop.f32.mrb[0].mxu0
      %3006 = vmatprep.mubr.f32.mxu0 0.0
      %3007 = vmatmul.mubr.f32.gmra.mrb[0].mxu0 %v2887
      %v3008 = vpop.f32.mrb[0].mxu0
      %v3009 = vadd.f32 %v2872, %v3008
      %v3010 = vpop.f32.mrb[0].mxu0
      %3011 = vmatprep.mubr.f32.mxu0 0.0
      %3012 = vmatmul.mubr.f32.gmra.mrb[0].mxu0 %v2890
      %v3013 = vpop.f32.mrb[0].mxu0
      %v3014 = vadd.f32 %v2872, %v3013
      %v3015 = vpop.f32.mrb[0].mxu0
      %3016 = vmatprep.mubr.f32.mxu0 0.0
      %3017 = vmatmul.mubr.f32.gmra.mrb[0].mxu0 %v2893
      %v3018 = vpop.f32.mrb[0].mxu0
      %v3019 = vadd.f32 %v2872, %v3018
      %v3020 = vpop.f32.mrb[0].mxu0
      %3021 = vmatprep.mubr.f32.mxu0 0.0
      %3022 = vmatmul.mubr.f32.gmra.mrb[0].mxu0 %v2896
      %v3023 = vpop.f32.mrb[0].mxu0
      %v3024 = vadd.f32 %v2872, %v3023
      %v3025 = vpop.f32.mrb[0].mxu0
      %3026 = vmatprep.mubr.f32.mxu0 0.0
      %3027 = vmatmul.mubr.f32.gmra.mrb[0].mxu0 %v2899
      %v3028 = vpop.f32.mrb[0].mxu0
      %v3029 = vadd.f32 %v2872, %v3028
      %v3030 = vpop.f32.mrb[0].mxu0
      %3031 = vmatprep.mubr.f32.mxu0 0.0
      %3032 = vmatmul.mubr.f32.gmra.mrb[0].mxu0 %v2902
      %v3033 = vpop.f32.mrb[0].mxu0
      %v3034 = vadd.f32 %v2872, %v3033
      %v3035 = vpop.f32.mrb[0].mxu0
      %3036 = vmatprep.mubr.f32.mxu0 0.0
      %3037 = vmatmul.mubr.f32.gmra.mrb[0].mxu0 %v2905
      %v3038 = vpop.f32.mrb[0].mxu0
      %v3039 = vadd.f32 %v2872, %v3038
      %v3040 = vpop.f32.mrb[0].mxu0
      %3041 = vmatprep.mubr.f32.mxu0 0.0
      %3042 = vmatmul.mubr.f32.gmra.mrb[0].mxu0 %v2908
      %v3043 = vpop.f32.mrb[0].mxu0
      %v3044 = vadd.f32 %v2872, %v3043
      %v3045 = vpop.f32.mrb[0].mxu0
      %3046 = vmatprep.mubr.f32.mxu0 0.0
      %3047 = vmatmul.mubr.f32.gmra.mrb[0].mxu0 %v2911
      %v3048 = vpop.f32.mrb[0].mxu0
      %v3049 = vadd.f32 %v2872, %v3048
      %v3050 = vpop.f32.mrb[0].mxu0
      %3051 = vmatprep.mubr.f32.mxu0 0.0
      %3052 = vmatmul.mubr.f32.gmra.mrb[0].mxu0 %v2914
      %v3053 = vpop.f32.mrb[0].mxu0
      %v3054 = vadd.f32 %v2872, %v3053
      %v3055 = vpop.f32.mrb[0].mxu0
      %3056 = vmatprep.mubr.f32.mxu0 0.0
      %3057 = vmatmul.mubr.f32.gmra.mrb[0].mxu0 %v2917
      %v3058 = vpop.f32.mrb[0].mxu0
      %v3059 = vadd.f32 %v2872, %v3058
      %v3060 = vpop.f32.mrb[0].mxu0
      %3061 = vmatprep.mubr.f32.mxu0 0.0
      %3062 = vmatmul.mubr.f32.gmra.mrb[0].mxu0 %v2920
      %v3063 = vpop.f32.mrb[0].mxu0
      %v3064 = vadd.f32 %v2872, %v3063
      %v3065 = vpop.f32.mrb[0].mxu0
      %3066 = vdwg.mxu0
      %s3067 = scalar_lea.vmem %s428, %s796
      %v3068 = vld [vmem:[%s3067] sm:$0xff]
      %v3069 = vld [vmem:[%s3067 + $0x8] sm:$0xff]
      %v3070 = vld [vmem:[%s3067 + $0x10] sm:$0xff]
      %v3071 = vld [vmem:[%s3067 + $0x18] sm:$0xff]
      %v3072 = vld [vmem:[%s3067 + $0x20] sm:$0xff]
      %v3073 = vld [vmem:[%s3067 + $0x28] sm:$0xff]
      %v3074 = vld [vmem:[%s3067 + $0x30] sm:$0xff]
      %v3075 = vld [vmem:[%s3067 + $0x38] sm:$0xff]
      %v3076 = vld [vmem:[%s3067 + $0x40] sm:$0xff]
      %v3077 = vld [vmem:[%s3067 + $0x48] sm:$0xff]
      %v3078 = vld [vmem:[%s3067 + $0x50] sm:$0xff]
      %v3079 = vld [vmem:[%s3067 + $0x58] sm:$0xff]
      %v3080 = vld [vmem:[%s3067 + $0x60] sm:$0xff]
      %v3081 = vld [vmem:[%s3067 + $0x68] sm:$0xff]
      %v3082 = vld [vmem:[%s3067 + $0x70] sm:$0xff]
      %v3083 = vld [vmem:[%s3067 + $0x78] sm:$0xff]
      %v3084 = vadd.f32 %v2989, %v3068
      %v3085 = vadd.f32 %v2994, %v3069
      %v3086 = vadd.f32 %v2999, %v3070
      %v3087 = vadd.f32 %v3004, %v3071
      %v3088 = vadd.f32 %v3009, %v3072
      %v3089 = vadd.f32 %v3014, %v3073
      %v3090 = vadd.f32 %v3019, %v3074
      %v3091 = vadd.f32 %v3024, %v3075
      %v3092 = vadd.f32 %v3029, %v3076
      %v3093 = vadd.f32 %v3034, %v3077
      %v3094 = vadd.f32 %v3039, %v3078
      %v3095 = vadd.f32 %v3044, %v3079
      %v3096 = vadd.f32 %v3049, %v3080
      %v3097 = vadd.f32 %v3054, %v3081
      %v3098 = vadd.f32 %v3059, %v3082
      %v3099 = vadd.f32 %v3064, %v3083
      %s3100 = scalar_lea.vmem %s433, %s796
      %3101 = vst.msk [vmem:[%s3100] sm:$0xff] %vm503, %v3084
      %3102 = vst.msk [vmem:[%s3100 + $0x8] sm:$0xff] %vm503, %v3085
      %3103 = vst.msk [vmem:[%s3100 + $0x10] sm:$0xff] %vm503, %v3086
      %3104 = vst.msk [vmem:[%s3100 + $0x18] sm:$0xff] %vm503, %v3087
      %3105 = vst.msk [vmem:[%s3100 + $0x20] sm:$0xff] %vm503, %v3088
      %3106 = vst.msk [vmem:[%s3100 + $0x28] sm:$0xff] %vm503, %v3089
      %3107 = vst.msk [vmem:[%s3100 + $0x30] sm:$0xff] %vm503, %v3090
      %3108 = vst.msk [vmem:[%s3100 + $0x38] sm:$0xff] %vm503, %v3091
      %3109 = vst.msk [vmem:[%s3100 + $0x40] sm:$0xff] %vm503, %v3092
      %3110 = vst.msk [vmem:[%s3100 + $0x48] sm:$0xff] %vm503, %v3093
      %3111 = vst.msk [vmem:[%s3100 + $0x50] sm:$0xff] %vm503, %v3094
      %3112 = vst.msk [vmem:[%s3100 + $0x58] sm:$0xff] %vm503, %v3095
      %3113 = vst.msk [vmem:[%s3100 + $0x60] sm:$0xff] %vm503, %v3096
      %3114 = vst.msk [vmem:[%s3100 + $0x68] sm:$0xff] %vm503, %v3097
      %3115 = vst.msk [vmem:[%s3100 + $0x70] sm:$0xff] %vm503, %v3098
      %3116 = vst.msk [vmem:[%s3100 + $0x78] sm:$0xff] %vm503, %v3099
      %p3117 = scmp.lt.s32.totalorder %s23, 1
      %s3118 = scalar_select %p3117, %s23, 1
      %s3119 = smul.addr %s3118, 32
      %s3120 = smul.addr %s3119, 8
      %s3121 = scalar_lea.vmem %s12, %s3120
      // Predicated region
      $region69: #{tpu_custom_call.1} parent=67 // pred_check
        %p3122 = pneg %p303
      $region70: #{tpu_custom_call.1} parent=67 // pred_check_branch
        %3124 = sbr.rel (%p3122) target = $region72
      $region71: #{tpu_custom_call.1} parent=67 // pred_region
        _
      $region72: #{tpu_custom_call.1} parent=67 // pred_fallthru
        _
    $region68: #{tpu_custom_call.1} parent=5 // pred_fallthru
      _
    %p3125 = scmp.le.s32.totalorder 2, %s18
    // Predicated region
    $region73: #{tpu_custom_call.1} parent=5 // pred_check
      %p3126 = pneg %p3125
    $region74: #{tpu_custom_call.1} parent=5 // pred_check_branch
      %3128 = sbr.rel (%p3126) target = $region76
    $region75: #{tpu_custom_call.1} parent=5 // pred_region
      %s3129 = ssub.s32 %s18, 2
      // Predicated region
      $region77: #{tpu_custom_call.1} parent=75 // pred_check
        %p3130 = pneg %p309
      $region78: #{tpu_custom_call.1} parent=75 // pred_check_branch
        %3132 = sbr.rel (%p3130) target = $region80
      $region79: #{tpu_custom_call.1} parent=75 // pred_region
        %p3133 = scmp.lt.s32.totalorder %s24, 1
        %s3134 = scalar_select %p3133, %s24, 1
        %s3135 = smul.addr %s3134, 32
        %s3136 = smul.addr %s3135, 8
        %s3137 = scalar_lea.vmem %s12, %s3136
      $region80: #{tpu_custom_call.1} parent=75 // pred_fallthru
        _
    $region76: #{tpu_custom_call.1} parent=5 // pred_fallthru
      _
  $region6: #{tpu_custom_call.1} parent=0 // loop_footer
    %s22 = sadd.s32 1, %s18
  $region7: #{tpu_custom_call.1} parent=0 // loop_footer_branch
    %17 = sbr.rel target = $region3
  $region8: #{tpu_custom_call.1} parent=0 // loop_exit
    _

</llo_original>
